<compile_context>
chip_gen: v7x
topology: tpu7x:2x2x1
jax: 0.10.0
libtpu: 0.0.40
codegen_flags: <defaults>
</compile_context>

<pallas_src>
import functools

import jax
import jax.numpy as jnp
from jax.experimental import pallas as pl
from jax.experimental.pallas import tpu as pltpu

_VMEM_LIMIT = 32 * 1024 * 1024


# --------------------- fused conv3x3 (pad=1) + ReLU + maxpool2x2 ---------------------

def _conv_relu_pool_kernel(x_ref, w_ref, b_ref, o_ref):
    # x_ref: (1, 9*Cin, 4*L)  im2col columns; the four 2x2-pool window positions are four
    #        contiguous lane chunks of width L = nb*Hp*Wp (>=128 lanes when nb>=2), each
    #        sharing the same (n, i, j) column order.
    # w_ref: (Cout, 9*Cin);  b_ref: (Cout, 1);  o_ref: (1, Cout, L)  lane-dense output.
    L = o_ref.shape[-1]
    y = jnp.dot(w_ref[...], x_ref[0], preferred_element_type=jnp.float32) + b_ref[...]
    # Max over the four pool-position chunks (slices at 128-lane-aligned offsets -> VPU only),
    # then ReLU.  ReLU is monotone, so relu(max(.)) == max(relu(.)) == torch relu -> pool.
    m = jnp.maximum(jnp.maximum(y[:, 0 * L:1 * L], y[:, 1 * L:2 * L]),
                    jnp.maximum(y[:, 2 * L:3 * L], y[:, 3 * L:4 * L]))
    o_ref[0] = jnp.maximum(m, 0.0).astype(o_ref.dtype)


def _im2col_pool_merged(x, nb):
    # x: (N, Cin, H, W) NCHW -> (N//nb, 9*Cin, 4*nb*Hp*Wp)
    # Lane-dim column order is (pool_y, pool_x, n_in_block, i, j): four pool-position chunks
    # of width nb*Hp*Wp, so the kernel needs one matmul + an elementwise max.
    N, Cin, H, W = x.shape
    Hp, Wp = H // 2, W // 2
    G = N // nb
    xp = jnp.pad(x, ((0, 0), (0, 0), (1, 1), (1, 1)))
    taps = [xp[:, :, dy:dy + H, dx:dx + W] for dy in range(3) for dx in range(3)]
    xcol = jnp.stack(taps, axis=1).reshape(N, 9 * Cin, H, W)      # K index = tap*Cin + cin
    xcol = xcol.reshape(G, nb, 9 * Cin, Hp, 2, Wp, 2)             # (g, n, k, i, py, j, px)
    xcol = xcol.transpose(0, 2, 4, 6, 1, 3, 5)                    # (g, k, py, px, n, i, j)
    return xcol.reshape(G, 9 * Cin, 4 * nb * Hp * Wp)


def conv3x3_relu_pool(x, w, b, nb):
    # x: (N, Cin, H, W) NCHW; w: (3, 3, Cin, Cout) HWIO; b: (Cout,)  ->  (N, Cout, Hp, Wp)
    N, Cin, H, W = x.shape
    Cout = w.shape[-1]
    Hp, Wp = H // 2, W // 2
    G = N // nb
    L = nb * Hp * Wp

    xcol = _im2col_pool_merged(x, nb)
    wr = w.reshape(9 * Cin, Cout).T          # (Cout, 9*Cin), K index = (ky*3+kx)*Cin + cin
    br = b.reshape(Cout, 1)

    out = pl.pallas_call(
        _conv_relu_pool_kernel,
        out_shape=jax.ShapeDtypeStruct((G, Cout, L), x.dtype),
        grid_spec=pltpu.PrefetchScalarGridSpec(
            num_scalar_prefetch=0,
            grid=(G,),
            in_specs=[
                pl.BlockSpec((1, 9 * Cin, 4 * L), lambda g: (g, 0, 0)),
                pl.BlockSpec((Cout, 9 * Cin), lambda g: (0, 0)),
                pl.BlockSpec((Cout, 1), lambda g: (0, 0)),
            ],
            out_specs=pl.BlockSpec((1, Cout, L), lambda g: (g, 0, 0)),
        ),
        compiler_params=pltpu.CompilerParams(
            dimension_semantics=("parallel",),
            vmem_limit_bytes=_VMEM_LIMIT,
        ),
    )(xcol, wr, br)

    # (G, Cout, nb*Hp*Wp) -> (N, Cout, Hp, Wp): tiny XLA layout glue (<= 64 KB/image).
    out = out.reshape(G, Cout, nb, Hp, Wp).transpose(0, 2, 1, 3, 4)
    return out.reshape(N, Cout, Hp, Wp)


# ----------------------- fused fc1 + ReLU + (dropout) + fc2 -----------------------

def _fc_fused_kernel(x_ref, w1_ref, b1_ref, w2_ref, b2_ref, o_ref, acc_ref):
    # grid = (K // tk,): fc1 accumulates into a resident f32 VMEM scratch (single M tile);
    # the k==last epilogue applies bias+ReLU and computes fc2 in-place, so the (N, 512)
    # hidden activation never goes to HBM and fc2 costs no extra kernel launch.
    k = pl.program_id(0)

    @pl.when(k == 0)
    def _():
        acc_ref[...] = jnp.broadcast_to(b1_ref[...], acc_ref.shape)

    acc_ref[...] += jnp.dot(x_ref[...], w1_ref[...], preferred_element_type=jnp.float32)

    @pl.when(k == pl.num_programs(0) - 1)
    def _():
        h = jnp.maximum(acc_ref[...], 0.0)
        # TODO(synk): nn.Dropout(0.5) sits between fc1-ReLU and fc2; identity in eval mode.
        o_ref[...] = (jnp.dot(h, w2_ref[...], preferred_element_type=jnp.float32)
                      + b2_ref[...]).astype(o_ref.dtype)


def fc1_relu_fc2(x, w1, b1, w2, b2, *, tk=2048):
    # x: (N, K); w1: (K, Hd); b1: (Hd,); w2: (Hd, M); b2: (M,)
    N, K = x.shape
    Hd = w1.shape[1]
    M = w2.shape[1]
    if K % tk != 0:
        tk = K
    return pl.pallas_call(
        _fc_fused_kernel,
        out_shape=jax.ShapeDtypeStruct((N, M), jnp.float32),
        grid_spec=pltpu.PrefetchScalarGridSpec(
            num_scalar_prefetch=0,
            grid=(K // tk,),                       # reduction over K only; single M tile
            in_specs=[
                pl.BlockSpec((N, tk), lambda k: (0, k)),
                pl.BlockSpec((tk, Hd), lambda k: (k, 0)),
                pl.BlockSpec((1, Hd), lambda k: (0, 0)),
                pl.BlockSpec((Hd, M), lambda k: (0, 0)),
                pl.BlockSpec((1, M), lambda k: (0, 0)),
            ],
            out_specs=pl.BlockSpec((N, M), lambda k: (0, 0)),
            scratch_shapes=[pltpu.VMEM((N, Hd), jnp.float32)],
        ),
        compiler_params=pltpu.CompilerParams(
            dimension_semantics=("arbitrary",),
            vmem_limit_bytes=_VMEM_LIMIT,
        ),
    )(x, w1, b1.reshape(1, Hd), w2, b2.reshape(1, M))


# ----------------------------- full forward pass -----------------------------

def cnn_forward(x_nchw, params):
    # x_nchw: (N, 3, 32, 32) float32, NCHW (PyTorch convention); stays NCHW throughout.
    N = x_nchw.shape[0]
    # Images per conv grid step: merges >=2 images onto the lane axis so the stage-2
    # blocks are >=128 lanes wide and per-step overhead amortises over the block.
    nb = next(d for d in (8, 4, 2, 1) if N % d == 0)
    h = conv3x3_relu_pool(x_nchw, params["w_conv1"], params["b_conv1"], nb)  # (N,32,16,16)
    h = conv3x3_relu_pool(h, params["w_conv2"], params["b_conv2"], nb)       # (N,64,8,8)
    h = h.reshape(N, 64 * 8 * 8)          # NCHW flatten order == torch x.view(-1, 64*8*8)
    return fc1_relu_fc2(h, params["w_fc1"], params["b_fc1"],
                        params["w_fc2"], params["b_fc2"])                    # (N, 10)


def init_params(key):
    ks = jax.random.split(key, 8)

    def u(k, shape, fan_in):
        bound = 1.0 / jnp.sqrt(fan_in)
        return jax.random.uniform(k, shape, jnp.float32, -bound, bound)

    return {
        "w_conv1": u(ks[0], (3, 3, 3, 32), 3 * 9),       # HWIO (permute if loading torch OIHW)
        "b_conv1": u(ks[1], (32,), 3 * 9),
        "w_conv2": u(ks[2], (3, 3, 32, 64), 32 * 9),
        "b_conv2": u(ks[3], (64,), 32 * 9),
        "w_fc1": u(ks[4], (64 * 8 * 8, 512), 64 * 8 * 8),   # (K, M) == torch weight.T
        "b_fc1": u(ks[5], (512,), 64 * 8 * 8),
        "w_fc2": u(ks[6], (512, 10), 512),
        "b_fc2": u(ks[7], (10,), 512),
    }


if __name__ == "__main__":
    key = jax.random.PRNGKey(0)
    k_params, k_x = jax.random.split(key)
    params = init_params(k_params)
    # 32x32 spatial input is required by fc1 = Linear(64*8*8, 512) after two 2x pools.
    x = jax.random.normal(k_x, (2, 3, 32, 32), jnp.float32)

    out = jax.jit(cnn_forward)(x, params)
    out = jax.block_until_ready(out)
    assert out.shape == (2, 10) and out.dtype == jnp.float32
    print("KERNEL_OK")
</pallas_src>

<mosaic_0001>
module attributes {stable_mosaic.version = 11 : i64} {
  func.func @_conv_relu_pool_kernel(%arg0: i32, %arg1: memref<1x27x2048xf32, #tpu.memory_space<vmem>>, %arg2: memref<32x27xf32, #tpu.memory_space<vmem>>, %arg3: memref<32x1xf32, #tpu.memory_space<vmem>>, %arg4: memref<1x32x512xf32, #tpu.memory_space<vmem>>) attributes {dimension_semantics = [#tpu.dimension_semantics<parallel>], iteration_bounds = array<i64: 1>, scalar_prefetch = 0 : i64, scratch_operands = 0 : i64, tpu.core_type = #tpu.core_type<tc>, window_params = [{transform_indices = @transform_0, window_bounds = array<i64: 1, 27, 2048>}, {pipeline_mode = #tpu.pipeline_mode<synchronous>, transform_indices = @transform_1, window_bounds = array<i64: 32, 27>}, {pipeline_mode = #tpu.pipeline_mode<synchronous>, transform_indices = @transform_2, window_bounds = array<i64: 32, 1>}, {transform_indices = @transform_3, window_bounds = array<i64: 1, 32, 512>}]} {
    %c0 = arith.constant 0 : index
    %c0_0 = arith.constant 0 : index
    %0 = vector.load %arg2[%c0, %c0_0] : memref<32x27xf32, #tpu.memory_space<vmem>>, vector<32x27xf32>
    %c0_1 = arith.constant 0 : index
    %c0_2 = arith.constant 0 : index
    %c0_3 = arith.constant 0 : index
    %1 = vector.load %arg1[%c0_1, %c0_2, %c0_3] : memref<1x27x2048xf32, #tpu.memory_space<vmem>>, vector<1x27x2048xf32>
    %2 = vector.shape_cast %1 : vector<1x27x2048xf32> to vector<27x2048xf32>
    %cst = arith.constant dense<0.000000e+00> : vector<32x2048xf32>
    %3 = tpu.matmul %0, %2, %cst {dimension_numbers = #tpu.dot_dimension_numbers<[1], [0], [0], [1], [0, 0, 1, 1], [], []>} : vector<32x27xf32>, vector<27x2048xf32>, vector<32x2048xf32> -> vector<32x2048xf32>
    %c0_4 = arith.constant 0 : index
    %c0_5 = arith.constant 0 : index
    %4 = vector.load %arg3[%c0_4, %c0_5] : memref<32x1xf32, #tpu.memory_space<vmem>>, vector<32x1xf32>
    %5 = vector.broadcast %4 : vector<32x1xf32> to vector<32x2048xf32>
    %6 = arith.addf %3, %5 : vector<32x2048xf32>
    %7 = vector.extract_strided_slice %6 {offsets = [0, 0], sizes = [32, 512], strides = [1, 1]} : vector<32x2048xf32> to vector<32x512xf32>
    %8 = vector.extract_strided_slice %6 {offsets = [0, 512], sizes = [32, 512], strides = [1, 1]} : vector<32x2048xf32> to vector<32x512xf32>
    %9 = arith.maximumf %7, %8 : vector<32x512xf32>
    %10 = vector.extract_strided_slice %6 {offsets = [0, 1024], sizes = [32, 512], strides = [1, 1]} : vector<32x2048xf32> to vector<32x512xf32>
    %11 = vector.extract_strided_slice %6 {offsets = [0, 1536], sizes = [32, 512], strides = [1, 1]} : vector<32x2048xf32> to vector<32x512xf32>
    %12 = arith.maximumf %10, %11 : vector<32x512xf32>
    %13 = arith.maximumf %9, %12 : vector<32x512xf32>
    %cst_6 = arith.constant 0.000000e+00 : f32
    %14 = vector.broadcast %cst_6 : f32 to vector<32x512xf32>
    %15 = arith.maximumf %13, %14 : vector<32x512xf32>
    %c0_7 = arith.constant 0 : index
    %c0_8 = arith.constant 0 : index
    %c0_9 = arith.constant 0 : index
    %16 = vector.load %arg4[%c0_7, %c0_8, %c0_9] : memref<1x32x512xf32, #tpu.memory_space<vmem>>, vector<1x32x512xf32>
    %17 = vector.shape_cast %16 : vector<1x32x512xf32> to vector<32x512xf32>
    %18 = vector.shape_cast %15 : vector<32x512xf32> to vector<1x32x512xf32>
    tpu.vector_store %arg4[%c0_7, %c0_8, %c0_9], %18 {strides = array<i32>} : memref<1x32x512xf32, #tpu.memory_space<vmem>>, vector<1x32x512xf32>,
    return
  }
  func.func @transform_0(%arg0: i32) -> (i32, i32, i32) {
    %c0_i32 = arith.constant 0 : i32
    %c0_i32_0 = arith.constant 0 : i32
    %c0_i32_1 = arith.constant 0 : i32
    return %arg0, %c0_i32, %c0_i32_0 : i32, i32, i32
  }
  func.func @transform_1(%arg0: i32) -> (i32, i32) {
    %c0_i32 = arith.constant 0 : i32
    %c0_i32_0 = arith.constant 0 : i32
    %c0_i32_1 = arith.constant 0 : i32
    return %c0_i32, %c0_i32_0 : i32, i32
  }
  func.func @transform_2(%arg0: i32) -> (i32, i32) {
    %c0_i32 = arith.constant 0 : i32
    %c0_i32_0 = arith.constant 0 : i32
    %c0_i32_1 = arith.constant 0 : i32
    return %c0_i32, %c0_i32_0 : i32, i32
  }
  func.func @transform_3(%arg0: i32) -> (i32, i32, i32) {
    %c0_i32 = arith.constant 0 : i32
    %c0_i32_0 = arith.constant 0 : i32
    %c0_i32_1 = arith.constant 0 : i32
    return %arg0, %c0_i32, %c0_i32_0 : i32, i32, i32
  }
}

module attributes {stable_mosaic.version = 11 : i64} {
  func.func @_conv_relu_pool_kernel(%arg0: i32, %arg1: memref<1x288x512xf32, #tpu.memory_space<vmem>>, %arg2: memref<64x288xf32, #tpu.memory_space<vmem>>, %arg3: memref<64x1xf32, #tpu.memory_space<vmem>>, %arg4: memref<1x64x128xf32, #tpu.memory_space<vmem>>) attributes {dimension_semantics = [#tpu.dimension_semantics<parallel>], iteration_bounds = array<i64: 1>, scalar_prefetch = 0 : i64, scratch_operands = 0 : i64, tpu.core_type = #tpu.core_type<tc>, window_params = [{transform_indices = @transform_0, window_bounds = array<i64: 1, 288, 512>}, {pipeline_mode = #tpu.pipeline_mode<synchronous>, transform_indices = @transform_1, window_bounds = array<i64: 64, 288>}, {pipeline_mode = #tpu.pipeline_mode<synchronous>, transform_indices = @transform_2, window_bounds = array<i64: 64, 1>}, {transform_indices = @transform_3, window_bounds = array<i64: 1, 64, 128>}]} {
    %c0 = arith.constant 0 : index
    %c0_0 = arith.constant 0 : index
    %0 = vector.load %arg2[%c0, %c0_0] : memref<64x288xf32, #tpu.memory_space<vmem>>, vector<64x288xf32>
    %c0_1 = arith.constant 0 : index
    %c0_2 = arith.constant 0 : index
    %c0_3 = arith.constant 0 : index
    %1 = vector.load %arg1[%c0_1, %c0_2, %c0_3] : memref<1x288x512xf32, #tpu.memory_space<vmem>>, vector<1x288x512xf32>
    %2 = vector.shape_cast %1 : vector<1x288x512xf32> to vector<288x512xf32>
    %cst = arith.constant dense<0.000000e+00> : vector<64x512xf32>
    %3 = tpu.matmul %0, %2, %cst {dimension_numbers = #tpu.dot_dimension_numbers<[1], [0], [0], [1], [0, 0, 1, 1], [], []>} : vector<64x288xf32>, vector<288x512xf32>, vector<64x512xf32> -> vector<64x512xf32>
    %c0_4 = arith.constant 0 : index
    %c0_5 = arith.constant 0 : index
    %4 = vector.load %arg3[%c0_4, %c0_5] : memref<64x1xf32, #tpu.memory_space<vmem>>, vector<64x1xf32>
    %5 = vector.broadcast %4 : vector<64x1xf32> to vector<64x512xf32>
    %6 = arith.addf %3, %5 : vector<64x512xf32>
    %7 = vector.extract_strided_slice %6 {offsets = [0, 0], sizes = [64, 128], strides = [1, 1]} : vector<64x512xf32> to vector<64x128xf32>
    %8 = vector.extract_strided_slice %6 {offsets = [0, 128], sizes = [64, 128], strides = [1, 1]} : vector<64x512xf32> to vector<64x128xf32>
    %9 = arith.maximumf %7, %8 : vector<64x128xf32>
    %10 = vector.extract_strided_slice %6 {offsets = [0, 256], sizes = [64, 128], strides = [1, 1]} : vector<64x512xf32> to vector<64x128xf32>
    %11 = vector.extract_strided_slice %6 {offsets = [0, 384], sizes = [64, 128], strides = [1, 1]} : vector<64x512xf32> to vector<64x128xf32>
    %12 = arith.maximumf %10, %11 : vector<64x128xf32>
    %13 = arith.maximumf %9, %12 : vector<64x128xf32>
    %cst_6 = arith.constant 0.000000e+00 : f32
    %14 = vector.broadcast %cst_6 : f32 to vector<64x128xf32>
    %15 = arith.maximumf %13, %14 : vector<64x128xf32>
    %c0_7 = arith.constant 0 : index
    %c0_8 = arith.constant 0 : index
    %c0_9 = arith.constant 0 : index
    %16 = vector.load %arg4[%c0_7, %c0_8, %c0_9] : memref<1x64x128xf32, #tpu.memory_space<vmem>>, vector<1x64x128xf32>
    %17 = vector.shape_cast %16 : vector<1x64x128xf32> to vector<64x128xf32>
    %18 = vector.shape_cast %15 : vector<64x128xf32> to vector<1x64x128xf32>
    tpu.vector_store %arg4[%c0_7, %c0_8, %c0_9], %18 {strides = array<i32>} : memref<1x64x128xf32, #tpu.memory_space<vmem>>, vector<1x64x128xf32>,
    return
  }
  func.func @transform_0(%arg0: i32) -> (i32, i32, i32) {
    %c0_i32 = arith.constant 0 : i32
    %c0_i32_0 = arith.constant 0 : i32
    %c0_i32_1 = arith.constant 0 : i32
    return %arg0, %c0_i32, %c0_i32_0 : i32, i32, i32
  }
  func.func @transform_1(%arg0: i32) -> (i32, i32) {
    %c0_i32 = arith.constant 0 : i32
    %c0_i32_0 = arith.constant 0 : i32
    %c0_i32_1 = arith.constant 0 : i32
    return %c0_i32, %c0_i32_0 : i32, i32
  }
  func.func @transform_2(%arg0: i32) -> (i32, i32) {
    %c0_i32 = arith.constant 0 : i32
    %c0_i32_0 = arith.constant 0 : i32
    %c0_i32_1 = arith.constant 0 : i32
    return %c0_i32, %c0_i32_0 : i32, i32
  }
  func.func @transform_3(%arg0: i32) -> (i32, i32, i32) {
    %c0_i32 = arith.constant 0 : i32
    %c0_i32_0 = arith.constant 0 : i32
    %c0_i32_1 = arith.constant 0 : i32
    return %arg0, %c0_i32, %c0_i32_0 : i32, i32, i32
  }
}

module attributes {stable_mosaic.version = 11 : i64} {
  func.func @_fc_fused_kernel(%arg0: i32, %arg1: memref<2x2048xf32, #tpu.memory_space<vmem>>, %arg2: memref<2048x512xf32, #tpu.memory_space<vmem>>, %arg3: memref<1x512xf32, #tpu.memory_space<vmem>>, %arg4: memref<512x10xf32, #tpu.memory_space<vmem>>, %arg5: memref<1x10xf32, #tpu.memory_space<vmem>>, %arg6: memref<2x10xf32, #tpu.memory_space<vmem>>, %arg7: memref<2x512xf32, #tpu.memory_space<vmem>>) attributes {dimension_semantics = [#tpu.dimension_semantics<arbitrary>], iteration_bounds = array<i64: 2>, scalar_prefetch = 0 : i64, scratch_operands = 1 : i64, tpu.core_type = #tpu.core_type<tc>, window_params = [{transform_indices = @transform_0, window_bounds = array<i64: 2, 2048>}, {transform_indices = @transform_1, window_bounds = array<i64: 2048, 512>}, {pipeline_mode = #tpu.pipeline_mode<synchronous>, transform_indices = @transform_2, window_bounds = array<i64: 1, 512>}, {pipeline_mode = #tpu.pipeline_mode<synchronous>, transform_indices = @transform_3, window_bounds = array<i64: 512, 10>}, {pipeline_mode = #tpu.pipeline_mode<synchronous>, transform_indices = @transform_4, window_bounds = array<i64: 1, 10>}, {pipeline_mode = #tpu.pipeline_mode<synchronous>, transform_indices = @transform_5, window_bounds = array<i64: 2, 10>}]} {
    %c0_i32 = arith.constant 0 : i32
    %0 = arith.cmpi eq, %arg0, %c0_i32 : i32
    %1 = arith.extui %0 : i1 to i32
    %c0_i32_0 = arith.constant 0 : i32
    %2 = arith.cmpi ne, %1, %c0_i32_0 : i32
    scf.if %2 {
      %c0_9 = arith.constant 0 : index
      %c0_10 = arith.constant 0 : index
      %12 = vector.load %arg3[%c0_9, %c0_10] : memref<1x512xf32, #tpu.memory_space<vmem>>, vector<1x512xf32>
      %13 = vector.shape_cast %12 : vector<1x512xf32> to vector<1x512xf32>
      %14 = vector.broadcast %13 : vector<1x512xf32> to vector<2x512xf32>
      %c0_11 = arith.constant 0 : index
      %c0_12 = arith.constant 0 : index
      %15 = vector.load %arg7[%c0_11, %c0_12] : memref<2x512xf32, #tpu.memory_space<vmem>>, vector<2x512xf32>
      tpu.vector_store %arg7[%c0_11, %c0_12], %14 {strides = array<i32>} : memref<2x512xf32, #tpu.memory_space<vmem>>, vector<2x512xf32>,
    } else {
    }
    %c0 = arith.constant 0 : index
    %c0_1 = arith.constant 0 : index
    %3 = vector.load %arg7[%c0, %c0_1] : memref<2x512xf32, #tpu.memory_space<vmem>>, vector<2x512xf32>
    %c0_2 = arith.constant 0 : index
    %c0_3 = arith.constant 0 : index
    %4 = vector.load %arg1[%c0_2, %c0_3] : memref<2x2048xf32, #tpu.memory_space<vmem>>, vector<2x2048xf32>
    %c0_4 = arith.constant 0 : index
    %c0_5 = arith.constant 0 : index
    %5 = vector.load %arg2[%c0_4, %c0_5] : memref<2048x512xf32, #tpu.memory_space<vmem>>, vector<2048x512xf32>
    %cst = arith.constant dense<0.000000e+00> : vector<2x512xf32>
    %6 = tpu.matmul %4, %5, %cst {dimension_numbers = #tpu.dot_dimension_numbers<[1], [0], [0], [1], [0, 0, 1, 1], [], []>} : vector<2x2048xf32>, vector<2048x512xf32>, vector<2x512xf32> -> vector<2x512xf32>
    %7 = arith.addf %3, %6 : vector<2x512xf32>
    %c0_6 = arith.constant 0 : index
    %c0_7 = arith.constant 0 : index
    %8 = vector.load %arg7[%c0_6, %c0_7] : memref<2x512xf32, #tpu.memory_space<vmem>>, vector<2x512xf32>
    tpu.vector_store %arg7[%c0_6, %c0_7], %7 {strides = array<i32>} : memref<2x512xf32, #tpu.memory_space<vmem>>, vector<2x512xf32>,
    %c1_i32 = arith.constant 1 : i32
    %9 = arith.cmpi eq, %arg0, %c1_i32 : i32
    %10 = arith.extui %9 : i1 to i32
    %c0_i32_8 = arith.constant 0 : i32
    %11 = arith.cmpi ne, %10, %c0_i32_8 : i32
    scf.if %11 {
      %c0_9 = arith.constant 0 : index
      %c0_10 = arith.constant 0 : index
      %12 = vector.load %arg7[%c0_9, %c0_10] : memref<2x512xf32, #tpu.memory_space<vmem>>, vector<2x512xf32>
      %cst_11 = arith.constant 0.000000e+00 : f32
      %13 = vector.broadcast %cst_11 : f32 to vector<2x512xf32>
      %14 = arith.maximumf %12, %13 : vector<2x512xf32>
      %c0_12 = arith.constant 0 : index
      %c0_13 = arith.constant 0 : index
      %15 = vector.load %arg4[%c0_12, %c0_13] : memref<512x10xf32, #tpu.memory_space<vmem>>, vector<512x10xf32>
      %cst_14 = arith.constant dense<0.000000e+00> : vector<2x10xf32>
      %16 = tpu.matmul %14, %15, %cst_14 {dimension_numbers = #tpu.dot_dimension_numbers<[1], [0], [0], [1], [0, 0, 1, 1], [], []>} : vector<2x512xf32>, vector<512x10xf32>, vector<2x10xf32> -> vector<2x10xf32>
      %c0_15 = arith.constant 0 : index
      %c0_16 = arith.constant 0 : index
      %17 = vector.load %arg5[%c0_15, %c0_16] : memref<1x10xf32, #tpu.memory_space<vmem>>, vector<1x10xf32>
      %18 = vector.broadcast %17 : vector<1x10xf32> to vector<2x10xf32>
      %19 = arith.addf %16, %18 : vector<2x10xf32>
      %c0_17 = arith.constant 0 : index
      %c0_18 = arith.constant 0 : index
      %20 = vector.load %arg6[%c0_17, %c0_18] : memref<2x10xf32, #tpu.memory_space<vmem>>, vector<2x10xf32>
      tpu.vector_store %arg6[%c0_17, %c0_18], %19 {strides = array<i32>} : memref<2x10xf32, #tpu.memory_space<vmem>>, vector<2x10xf32>,
    } else {
    }
    return
  }
  func.func @transform_0(%arg0: i32) -> (i32, i32) {
    %c0_i32 = arith.constant 0 : i32
    %c0_i32_0 = arith.constant 0 : i32
    return %c0_i32, %arg0 : i32, i32
  }
  func.func @transform_1(%arg0: i32) -> (i32, i32) {
    %c0_i32 = arith.constant 0 : i32
    %c0_i32_0 = arith.constant 0 : i32
    return %arg0, %c0_i32 : i32, i32
  }
  func.func @transform_2(%arg0: i32) -> (i32, i32) {
    %c0_i32 = arith.constant 0 : i32
    %c0_i32_0 = arith.constant 0 : i32
    %c0_i32_1 = arith.constant 0 : i32
    return %c0_i32, %c0_i32_0 : i32, i32
  }
  func.func @transform_3(%arg0: i32) -> (i32, i32) {
    %c0_i32 = arith.constant 0 : i32
    %c0_i32_0 = arith.constant 0 : i32
    %c0_i32_1 = arith.constant 0 : i32
    return %c0_i32, %c0_i32_0 : i32, i32
  }
  func.func @transform_4(%arg0: i32) -> (i32, i32) {
    %c0_i32 = arith.constant 0 : i32
    %c0_i32_0 = arith.constant 0 : i32
    %c0_i32_1 = arith.constant 0 : i32
    return %c0_i32, %c0_i32_0 : i32, i32
  }
  func.func @transform_5(%arg0: i32) -> (i32, i32) {
    %c0_i32 = arith.constant 0 : i32
    %c0_i32_0 = arith.constant 0 : i32
    %c0_i32_1 = arith.constant 0 : i32
    return %c0_i32, %c0_i32_0 : i32, i32
  }
}

</mosaic_0001>

<llo_original>
// kernel: cnn_forward.3
$region0: #{cnn_forward.3}
  #allocation0 [shape = 'u32[]', space=smem, size = 0x4, offset = 0x4, fixed_abs, tag = 'smem constant byte address 0x4 - core index']
  #allocation1 [shape = 'u32[144,128]{1,0:T(1,128)}', space=vmem, size = 0x12000, scoped, tag = 'internal scratch']
  %s0 = inlined_call_operand.vmem [shape: f32[1,27,2048], index: 0, kind: input, shape index: {}]
  %s1 = inlined_call_operand.vmem [shape: f32[32,27], index: 1, kind: input, shape index: {}]
  %s2 = inlined_call_operand.vmem [shape: f32[32,1], index: 2, kind: input, shape index: {}]
  %s3 = inlined_call_operand.vmem [shape: f32[1,32,512], index: 3, kind: output, shape index: {}]
  %s4 = sld [smem:[#allocation0]]
  $region22: #{cnn_forward.3} parent=0
    _
  %s6 = ssub.s32 1, %s4
  %s7 = scalar_select 0, %s6, %s4
  // Predicated region
  $region2: #{cnn_forward.3} parent=0 // pred_check
    _
  $region3: #{cnn_forward.3} parent=0 // pred_check_branch
    %9 = sbr.rel (0) target = $region5
  $region4: #{cnn_forward.3} parent=0 // pred_region
    _
  $region5: #{cnn_forward.3} parent=0 // pred_fallthru
    _
  // Predicated region
  $region6: #{cnn_forward.3} parent=0 // pred_check
    _
  $region7: #{cnn_forward.3} parent=0 // pred_check_branch
    %11 = sbr.rel (0) target = $region9
  $region8: #{cnn_forward.3} parent=0 // pred_region
    _
  $region9: #{cnn_forward.3} parent=0 // pred_fallthru
    _
  // Predicated region
  $region10: #{cnn_forward.3} parent=0 // pred_check
    _
  $region11: #{cnn_forward.3} parent=0 // pred_check_branch
    %13 = sbr.rel (0) target = $region13
  $region12: #{cnn_forward.3} parent=0 // pred_region
    _
  $region13: #{cnn_forward.3} parent=0 // pred_fallthru
    _
  %v14 = vld [vmem:[%s1] sm:$0xff]
  %v15 = vld [vmem:[%s1 + $0x8] sm:$0xff]
  %v16 = vld [vmem:[%s1 + $0x10] sm:$0xff]
  %v17 = vld [vmem:[%s1 + $0x18] sm:$0xff]
  %v18 = vld [vmem:[%s0] sm:$0xff]
  %v19 = vld [vmem:[%s0 + $0x8] sm:$0xff]
  %v20 = vld [vmem:[%s0 + $0x10] sm:$0xff]
  %v21 = vld [vmem:[%s0 + $0x18] sm:$0xff]
  %v22 = vld [vmem:[%s0 + $0x20] sm:$0xff]
  %v23 = vld [vmem:[%s0 + $0x28] sm:$0xff]
  %v24 = vld [vmem:[%s0 + $0x30] sm:$0xff]
  %v25 = vld [vmem:[%s0 + $0x38] sm:$0xff]
  %v26 = vld [vmem:[%s0 + $0x40] sm:$0xff]
  %v27 = vld [vmem:[%s0 + $0x48] sm:$0xff]
  %v28 = vld [vmem:[%s0 + $0x50] sm:$0xff]
  %v29 = vld [vmem:[%s0 + $0x58] sm:$0xff]
  %v30 = vld [vmem:[%s0 + $0x60] sm:$0xff]
  %v31 = vld [vmem:[%s0 + $0x68] sm:$0xff]
  %v32 = vld [vmem:[%s0 + $0x70] sm:$0xff]
  %v33 = vld [vmem:[%s0 + $0x78] sm:$0xff]
  %v34 = vld [vmem:[%s0 + $0x80] sm:$0xff]
  %v35 = vld [vmem:[%s0 + $0x88] sm:$0xff]
  %v36 = vld [vmem:[%s0 + $0x90] sm:$0xff]
  %v37 = vld [vmem:[%s0 + $0x98] sm:$0xff]
  %v38 = vld [vmem:[%s0 + $0xa0] sm:$0xff]
  %v39 = vld [vmem:[%s0 + $0xa8] sm:$0xff]
  %v40 = vld [vmem:[%s0 + $0xb0] sm:$0xff]
  %v41 = vld [vmem:[%s0 + $0xb8] sm:$0xff]
  %v42 = vld [vmem:[%s0 + $0xc0] sm:$0xff]
  %v43 = vld [vmem:[%s0 + $0xc8] sm:$0xff]
  %v44 = vld [vmem:[%s0 + $0xd0] sm:$0xff]
  %v45 = vld [vmem:[%s0 + $0xd8] sm:$0xff]
  %v46 = vld [vmem:[%s0 + $0xe0] sm:$0xff]
  %v47 = vld [vmem:[%s0 + $0xe8] sm:$0xff]
  %v48 = vld [vmem:[%s0 + $0xf0] sm:$0xff]
  %v49 = vld [vmem:[%s0 + $0xf8] sm:$0xff]
  %v50 = vld [vmem:[%s0 + $0x100] sm:$0xff]
  %v51 = vld [vmem:[%s0 + $0x108] sm:$0xff]
  %v52 = vld [vmem:[%s0 + $0x110] sm:$0xff]
  %v53 = vld [vmem:[%s0 + $0x118] sm:$0xff]
  %v54 = vld [vmem:[%s0 + $0x120] sm:$0xff]
  %v55 = vld [vmem:[%s0 + $0x128] sm:$0xff]
  %v56 = vld [vmem:[%s0 + $0x130] sm:$0xff]
  %v57 = vld [vmem:[%s0 + $0x138] sm:$0xff]
  %v58 = vld [vmem:[%s0 + $0x140] sm:$0xff]
  %v59 = vld [vmem:[%s0 + $0x148] sm:$0xff]
  %v60 = vld [vmem:[%s0 + $0x150] sm:$0xff]
  %v61 = vld [vmem:[%s0 + $0x158] sm:$0xff]
  %v62 = vld [vmem:[%s0 + $0x160] sm:$0xff]
  %v63 = vld [vmem:[%s0 + $0x168] sm:$0xff]
  %v64 = vld [vmem:[%s0 + $0x170] sm:$0xff]
  %v65 = vld [vmem:[%s0 + $0x178] sm:$0xff]
  %v66 = vld [vmem:[%s0 + $0x180] sm:$0x7]
  %v67 = vld [vmem:[%s0 + $0x188] sm:$0x7]
  %v68 = vld [vmem:[%s0 + $0x190] sm:$0x7]
  %v69 = vld [vmem:[%s0 + $0x198] sm:$0x7]
  %v70 = vld [vmem:[%s0 + $0x1a0] sm:$0x7]
  %v71 = vld [vmem:[%s0 + $0x1a8] sm:$0x7]
  %v72 = vld [vmem:[%s0 + $0x1b0] sm:$0x7]
  %v73 = vld [vmem:[%s0 + $0x1b8] sm:$0x7]
  %v74 = vld [vmem:[%s0 + $0x1c0] sm:$0x7]
  %v75 = vld [vmem:[%s0 + $0x1c8] sm:$0x7]
  %v76 = vld [vmem:[%s0 + $0x1d0] sm:$0x7]
  %v77 = vld [vmem:[%s0 + $0x1d8] sm:$0x7]
  %v78 = vld [vmem:[%s0 + $0x1e0] sm:$0x7]
  %v79 = vld [vmem:[%s0 + $0x1e8] sm:$0x7]
  %v80 = vld [vmem:[%s0 + $0x1f0] sm:$0x7]
  %v81 = vld [vmem:[%s0 + $0x1f8] sm:$0x7]
  %v82 = vld [vmem:[%s2] sm:$0xff]
  %v83 = vld [vmem:[%s2 + $0x8] sm:$0xff]
  %v84 = vld [vmem:[%s2 + $0x10] sm:$0xff]
  %v85 = vld [vmem:[%s2 + $0x18] sm:$0xff]
  %87 = vset.pattern.permute.xlu0 0
  %88 = vperm.xlu0 %87, %v82
  %v89 = vpop.permute.xlu0 %88
  %92 = vset.pattern.permute.xlu0 0
  %93 = vperm.xlu0 %92, %v83
  %v94 = vpop.permute.xlu0 %93
  %97 = vset.pattern.permute.xlu0 0
  %98 = vperm.xlu0 %97, %v84
  %v99 = vpop.permute.xlu0 %98
  %102 = vset.pattern.permute.xlu0 0
  %103 = vperm.xlu0 %102, %v85
  %v104 = vpop.permute.xlu0 %103
  %vm106 = vcmask 220160
  %v108 = vsel %vm106, %v14, 0
  %v111 = vsel %vm106, %v15, 0
  %v114 = vsel %vm106, %v16, 0
  %v117 = vsel %vm106, %v17, 0
  %vm119 = vcmask 1042432
  %v121 = vsel %vm119, %v66, 0
  %v124 = vsel %vm119, %v67, 0
  %v127 = vsel %vm119, %v68, 0
  %v130 = vsel %vm119, %v69, 0
  %v133 = vsel %vm119, %v70, 0
  %v136 = vsel %vm119, %v71, 0
  %v139 = vsel %vm119, %v72, 0
  %v142 = vsel %vm119, %v73, 0
  %v145 = vsel %vm119, %v74, 0
  %v148 = vsel %vm119, %v75, 0
  %v151 = vsel %vm119, %v76, 0
  %v154 = vsel %vm119, %v77, 0
  %v157 = vsel %vm119, %v78, 0
  %v160 = vsel %vm119, %v79, 0
  %v163 = vsel %vm119, %v80, 0
  %v166 = vsel %vm119, %v81, 0
  %168 = vmatprep.subr.mxu0 %v19
  %169 = vmatpush1.msra.mxu0 %v18
  %170 = vmatprep.subr.mxu0 %v35
  %171 = vmatpush1.msra.mxu0 %v34
  %172 = vmatprep.subr.mxu0 %v51
  %173 = vmatpush1.msra.mxu0 %v50
  %174 = vmatprep.subr.mxu0 %v124
  %175 = vmatpush1.msra.mxu0 %v121
  %176 = vmatprep.subr.mxu0 0.0
  %177 = vmatpush1.msra.mxu0 0.0
  %178 = vmatprep.subr.mxu0 0.0
  %179 = vmatpush1.msra.mxu0 0.0
  %180 = vmatprep.subr.mxu0 0.0
  %181 = vmatpush1.msra.mxu0 0.0
  %182 = vmatprep.subr.mxu0 0.0
  %183 = vmatpush1.msra.mxu0 0.0
  %184 = vmatprep.subr.mxu0 0.0
  %185 = vmatpush1.msra.mxu0 0.0
  %186 = vmatprep.subr.mxu0 0.0
  %187 = vmatpush1.msra.mxu0 0.0
  %188 = vmatprep.subr.mxu0 0.0
  %189 = vmatpush1.msra.mxu0 0.0
  %190 = vmatprep.subr.mxu0 0.0
  %191 = vmatpush1.msra.mxu0 0.0
  %192 = vmatprep.subr.mxu0 0.0
  %193 = vmatpush1.msra.mxu0 0.0
  %194 = vmatprep.subr.mxu0 0.0
  %195 = vmatpush1.msra.mxu0 0.0
  %196 = vmatprep.subr.mxu0 0.0
  %197 = vmatpush1.msra.mxu0 0.0
  %198 = vmatprep.subr.mxu0 0.0
  %199 = vmatpush1.msra.mxu0 0.0
  %200 = vmatprep.subr.mxu0 0.0
  %201 = vmatpush1.msra.mxu0 0.0
  %202 = vmatprep.subr.mxu0 0.0
  %203 = vmatpush1.msra.mxu0 0.0
  %204 = vmatprep.subr.mxu0 0.0
  %205 = vmatpush1.msra.mxu0 0.0
  %206 = vmatprep.subr.mxu0 0.0
  %207 = vmatpush1.msra.mxu0 0.0
  %208 = vmatprep.subr.mxu0 0.0
  %209 = vmatpush1.msra.mxu0 0.0
  %210 = vmatprep.subr.mxu0 0.0
  %211 = vmatpush1.msra.mxu0 0.0
  %212 = vmatprep.subr.mxu0 0.0
  %213 = vmatpush1.msra.mxu0 0.0
  %214 = vmatprep.subr.mxu0 0.0
  %215 = vmatpush1.msra.mxu0 0.0
  %216 = vmatprep.subr.mxu0 0.0
  %217 = vmatpush1.msra.mxu0 0.0
  %218 = vmatprep.subr.mxu0 0.0
  %219 = vmatpush1.msra.mxu0 0.0
  %220 = vmatprep.subr.mxu0 0.0
  %221 = vmatpush1.msra.mxu0 0.0
  %222 = vmatprep.subr.mxu0 0.0
  %223 = vmatpush1.msra.mxu0 0.0
  %224 = vmatprep.subr.mxu0 0.0
  %225 = vmatpush1.msra.mxu0 0.0
  %226 = vmatprep.subr.mxu0 0.0
  %227 = vmatpush1.msra.mxu0 0.0
  %228 = vmatprep.subr.mxu0 0.0
  %229 = vmatpush1.msra.mxu0 0.0
  %230 = vmatprep.subr.mxu0 0.0
  %231 = vmatpush1.msra.mxu0 0.0
  %232 = vmatprep.mubr.f32.mxu0 0.0
  %233 = vmatmul.mubr.f32.gmra.mrb[0].mxu0 %v108
  %v234 = vpop.f32.mrb[0].mxu0
  %v235 = vadd.f32 %v89, %v234
  %v236 = vpop.f32.mrb[0].mxu0
  %v237 = vadd.f32 %v89, %v236
  %238 = vmatprep.mubr.f32.mxu0 0.0
  %239 = vmatmul.mubr.f32.gmra.mrb[0].mxu0 %v111
  %v240 = vpop.f32.mrb[0].mxu0
  %v241 = vadd.f32 %v94, %v240
  %v242 = vpop.f32.mrb[0].mxu0
  %v243 = vadd.f32 %v94, %v242
  %244 = vmatprep.mubr.f32.mxu0 0.0
  %245 = vmatmul.mubr.f32.gmra.mrb[0].mxu0 %v114
  %v246 = vpop.f32.mrb[0].mxu0
  %v247 = vadd.f32 %v99, %v246
  %v248 = vpop.f32.mrb[0].mxu0
  %v249 = vadd.f32 %v99, %v248
  %250 = vmatprep.mubr.f32.mxu0 0.0
  %251 = vmatmul.mubr.f32.gmra.mrb[0].mxu0 %v117
  %v252 = vpop.f32.mrb[0].mxu0
  %v253 = vadd.f32 %v104, %v252
  %v254 = vpop.f32.mrb[0].mxu0
  %v255 = vadd.f32 %v104, %v254
  %256 = vdwg.mxu0
  %257 = vmatprep.subr.mxu0 %v21
  %258 = vmatpush1.msra.mxu0 %v20
  %259 = vmatprep.subr.mxu0 %v37
  %260 = vmatpush1.msra.mxu0 %v36
  %261 = vmatprep.subr.mxu0 %v53
  %262 = vmatpush1.msra.mxu0 %v52
  %263 = vmatprep.subr.mxu0 %v130
  %264 = vmatpush1.msra.mxu0 %v127
  %265 = vmatprep.subr.mxu0 0.0
  %266 = vmatpush1.msra.mxu0 0.0
  %267 = vmatprep.subr.mxu0 0.0
  %268 = vmatpush1.msra.mxu0 0.0
  %269 = vmatprep.subr.mxu0 0.0
  %270 = vmatpush1.msra.mxu0 0.0
  %271 = vmatprep.subr.mxu0 0.0
  %272 = vmatpush1.msra.mxu0 0.0
  %273 = vmatprep.subr.mxu0 0.0
  %274 = vmatpush1.msra.mxu0 0.0
  %275 = vmatprep.subr.mxu0 0.0
  %276 = vmatpush1.msra.mxu0 0.0
  %277 = vmatprep.subr.mxu0 0.0
  %278 = vmatpush1.msra.mxu0 0.0
  %279 = vmatprep.subr.mxu0 0.0
  %280 = vmatpush1.msra.mxu0 0.0
  %281 = vmatprep.subr.mxu0 0.0
  %282 = vmatpush1.msra.mxu0 0.0
  %283 = vmatprep.subr.mxu0 0.0
  %284 = vmatpush1.msra.mxu0 0.0
  %285 = vmatprep.subr.mxu0 0.0
  %286 = vmatpush1.msra.mxu0 0.0
  %287 = vmatprep.subr.mxu0 0.0
  %288 = vmatpush1.msra.mxu0 0.0
  %289 = vmatprep.subr.mxu0 0.0
  %290 = vmatpush1.msra.mxu0 0.0
  %291 = vmatprep.subr.mxu0 0.0
  %292 = vmatpush1.msra.mxu0 0.0
  %293 = vmatprep.subr.mxu0 0.0
  %294 = vmatpush1.msra.mxu0 0.0
  %295 = vmatprep.subr.mxu0 0.0
  %296 = vmatpush1.msra.mxu0 0.0
  %297 = vmatprep.subr.mxu0 0.0
  %298 = vmatpush1.msra.mxu0 0.0
  %299 = vmatprep.subr.mxu0 0.0
  %300 = vmatpush1.msra.mxu0 0.0
  %301 = vmatprep.subr.mxu0 0.0
  %302 = vmatpush1.msra.mxu0 0.0
  %303 = vmatprep.subr.mxu0 0.0
  %304 = vmatpush1.msra.mxu0 0.0
  %305 = vmatprep.subr.mxu0 0.0
  %306 = vmatpush1.msra.mxu0 0.0
  %307 = vmatprep.subr.mxu0 0.0
  %308 = vmatpush1.msra.mxu0 0.0
  %309 = vmatprep.subr.mxu0 0.0
  %310 = vmatpush1.msra.mxu0 0.0
  %311 = vmatprep.subr.mxu0 0.0
  %312 = vmatpush1.msra.mxu0 0.0
  %313 = vmatprep.subr.mxu0 0.0
  %314 = vmatpush1.msra.mxu0 0.0
  %315 = vmatprep.subr.mxu0 0.0
  %316 = vmatpush1.msra.mxu0 0.0
  %317 = vmatprep.subr.mxu0 0.0
  %318 = vmatpush1.msra.mxu0 0.0
  %319 = vmatprep.subr.mxu0 0.0
  %320 = vmatpush1.msra.mxu0 0.0
  %321 = vmatprep.mubr.f32.mxu0 0.0
  %322 = vmatmul.mubr.f32.gmra.mrb[0].mxu0 %v108
  %v323 = vpop.f32.mrb[0].mxu0
  %v324 = vadd.f32 %v89, %v323
  %v325 = vpop.f32.mrb[0].mxu0
  %v326 = vadd.f32 %v89, %v325
  %327 = vmatprep.mubr.f32.mxu0 0.0
  %328 = vmatmul.mubr.f32.gmra.mrb[0].mxu0 %v111
  %v329 = vpop.f32.mrb[0].mxu0
  %v330 = vadd.f32 %v94, %v329
  %v331 = vpop.f32.mrb[0].mxu0
  %v332 = vadd.f32 %v94, %v331
  %333 = vmatprep.mubr.f32.mxu0 0.0
  %334 = vmatmul.mubr.f32.gmra.mrb[0].mxu0 %v114
  %v335 = vpop.f32.mrb[0].mxu0
  %v336 = vadd.f32 %v99, %v335
  %v337 = vpop.f32.mrb[0].mxu0
  %v338 = vadd.f32 %v99, %v337
  %339 = vmatprep.mubr.f32.mxu0 0.0
  %340 = vmatmul.mubr.f32.gmra.mrb[0].mxu0 %v117
  %v341 = vpop.f32.mrb[0].mxu0
  %v342 = vadd.f32 %v104, %v341
  %v343 = vpop.f32.mrb[0].mxu0
  %v344 = vadd.f32 %v104, %v343
  %345 = vdwg.mxu0
  %346 = vmatprep.subr.mxu0 %v23
  %347 = vmatpush1.msra.mxu0 %v22
  %348 = vmatprep.subr.mxu0 %v39
  %349 = vmatpush1.msra.mxu0 %v38
  %350 = vmatprep.subr.mxu0 %v55
  %351 = vmatpush1.msra.mxu0 %v54
  %352 = vmatprep.subr.mxu0 %v136
  %353 = vmatpush1.msra.mxu0 %v133
  %354 = vmatprep.subr.mxu0 0.0
  %355 = vmatpush1.msra.mxu0 0.0
  %356 = vmatprep.subr.mxu0 0.0
  %357 = vmatpush1.msra.mxu0 0.0
  %358 = vmatprep.subr.mxu0 0.0
  %359 = vmatpush1.msra.mxu0 0.0
  %360 = vmatprep.subr.mxu0 0.0
  %361 = vmatpush1.msra.mxu0 0.0
  %362 = vmatprep.subr.mxu0 0.0
  %363 = vmatpush1.msra.mxu0 0.0
  %364 = vmatprep.subr.mxu0 0.0
  %365 = vmatpush1.msra.mxu0 0.0
  %366 = vmatprep.subr.mxu0 0.0
  %367 = vmatpush1.msra.mxu0 0.0
  %368 = vmatprep.subr.mxu0 0.0
  %369 = vmatpush1.msra.mxu0 0.0
  %370 = vmatprep.subr.mxu0 0.0
  %371 = vmatpush1.msra.mxu0 0.0
  %372 = vmatprep.subr.mxu0 0.0
  %373 = vmatpush1.msra.mxu0 0.0
  %374 = vmatprep.subr.mxu0 0.0
  %375 = vmatpush1.msra.mxu0 0.0
  %376 = vmatprep.subr.mxu0 0.0
  %377 = vmatpush1.msra.mxu0 0.0
  %378 = vmatprep.subr.mxu0 0.0
  %379 = vmatpush1.msra.mxu0 0.0
  %380 = vmatprep.subr.mxu0 0.0
  %381 = vmatpush1.msra.mxu0 0.0
  %382 = vmatprep.subr.mxu0 0.0
  %383 = vmatpush1.msra.mxu0 0.0
  %384 = vmatprep.subr.mxu0 0.0
  %385 = vmatpush1.msra.mxu0 0.0
  %386 = vmatprep.subr.mxu0 0.0
  %387 = vmatpush1.msra.mxu0 0.0
  %388 = vmatprep.subr.mxu0 0.0
  %389 = vmatpush1.msra.mxu0 0.0
  %390 = vmatprep.subr.mxu0 0.0
  %391 = vmatpush1.msra.mxu0 0.0
  %392 = vmatprep.subr.mxu0 0.0
  %393 = vmatpush1.msra.mxu0 0.0
  %394 = vmatprep.subr.mxu0 0.0
  %395 = vmatpush1.msra.mxu0 0.0
  %396 = vmatprep.subr.mxu0 0.0
  %397 = vmatpush1.msra.mxu0 0.0
  %398 = vmatprep.subr.mxu0 0.0
  %399 = vmatpush1.msra.mxu0 0.0
  %400 = vmatprep.subr.mxu0 0.0
  %401 = vmatpush1.msra.mxu0 0.0
  %402 = vmatprep.subr.mxu0 0.0
  %403 = vmatpush1.msra.mxu0 0.0
  %404 = vmatprep.subr.mxu0 0.0
  %405 = vmatpush1.msra.mxu0 0.0
  %406 = vmatprep.subr.mxu0 0.0
  %407 = vmatpush1.msra.mxu0 0.0
  %408 = vmatprep.subr.mxu0 0.0
  %409 = vmatpush1.msra.mxu0 0.0
  %410 = vmatprep.mubr.f32.mxu0 0.0
  %411 = vmatmul.mubr.f32.gmra.mrb[0].mxu0 %v108
  %v412 = vpop.f32.mrb[0].mxu0
  %v413 = vadd.f32 %v89, %v412
  %v414 = vpop.f32.mrb[0].mxu0
  %v415 = vadd.f32 %v89, %v414
  %416 = vmatprep.mubr.f32.mxu0 0.0
  %417 = vmatmul.mubr.f32.gmra.mrb[0].mxu0 %v111
  %v418 = vpop.f32.mrb[0].mxu0
  %v419 = vadd.f32 %v94, %v418
  %v420 = vpop.f32.mrb[0].mxu0
  %v421 = vadd.f32 %v94, %v420
  %422 = vmatprep.mubr.f32.mxu0 0.0
  %423 = vmatmul.mubr.f32.gmra.mrb[0].mxu0 %v114
  %v424 = vpop.f32.mrb[0].mxu0
  %v425 = vadd.f32 %v99, %v424
  %v426 = vpop.f32.mrb[0].mxu0
  %v427 = vadd.f32 %v99, %v426
  %428 = vmatprep.mubr.f32.mxu0 0.0
  %429 = vmatmul.mubr.f32.gmra.mrb[0].mxu0 %v117
  %v430 = vpop.f32.mrb[0].mxu0
  %v431 = vadd.f32 %v104, %v430
  %v432 = vpop.f32.mrb[0].mxu0
  %v433 = vadd.f32 %v104, %v432
  %434 = vdwg.mxu0
  %435 = vmatprep.subr.mxu0 %v25
  %436 = vmatpush1.msra.mxu0 %v24
  %437 = vmatprep.subr.mxu0 %v41
  %438 = vmatpush1.msra.mxu0 %v40
  %439 = vmatprep.subr.mxu0 %v57
  %440 = vmatpush1.msra.mxu0 %v56
  %441 = vmatprep.subr.mxu0 %v142
  %442 = vmatpush1.msra.mxu0 %v139
  %443 = vmatprep.subr.mxu0 0.0
  %444 = vmatpush1.msra.mxu0 0.0
  %445 = vmatprep.subr.mxu0 0.0
  %446 = vmatpush1.msra.mxu0 0.0
  %447 = vmatprep.subr.mxu0 0.0
  %448 = vmatpush1.msra.mxu0 0.0
  %449 = vmatprep.subr.mxu0 0.0
  %450 = vmatpush1.msra.mxu0 0.0
  %451 = vmatprep.subr.mxu0 0.0
  %452 = vmatpush1.msra.mxu0 0.0
  %453 = vmatprep.subr.mxu0 0.0
  %454 = vmatpush1.msra.mxu0 0.0
  %455 = vmatprep.subr.mxu0 0.0
  %456 = vmatpush1.msra.mxu0 0.0
  %457 = vmatprep.subr.mxu0 0.0
  %458 = vmatpush1.msra.mxu0 0.0
  %459 = vmatprep.subr.mxu0 0.0
  %460 = vmatpush1.msra.mxu0 0.0
  %461 = vmatprep.subr.mxu0 0.0
  %462 = vmatpush1.msra.mxu0 0.0
  %463 = vmatprep.subr.mxu0 0.0
  %464 = vmatpush1.msra.mxu0 0.0
  %465 = vmatprep.subr.mxu0 0.0
  %466 = vmatpush1.msra.mxu0 0.0
  %467 = vmatprep.subr.mxu0 0.0
  %468 = vmatpush1.msra.mxu0 0.0
  %469 = vmatprep.subr.mxu0 0.0
  %470 = vmatpush1.msra.mxu0 0.0
  %471 = vmatprep.subr.mxu0 0.0
  %472 = vmatpush1.msra.mxu0 0.0
  %473 = vmatprep.subr.mxu0 0.0
  %474 = vmatpush1.msra.mxu0 0.0
  %475 = vmatprep.subr.mxu0 0.0
  %476 = vmatpush1.msra.mxu0 0.0
  %477 = vmatprep.subr.mxu0 0.0
  %478 = vmatpush1.msra.mxu0 0.0
  %479 = vmatprep.subr.mxu0 0.0
  %480 = vmatpush1.msra.mxu0 0.0
  %481 = vmatprep.subr.mxu0 0.0
  %482 = vmatpush1.msra.mxu0 0.0
  %483 = vmatprep.subr.mxu0 0.0
  %484 = vmatpush1.msra.mxu0 0.0
  %485 = vmatprep.subr.mxu0 0.0
  %486 = vmatpush1.msra.mxu0 0.0
  %487 = vmatprep.subr.mxu0 0.0
  %488 = vmatpush1.msra.mxu0 0.0
  %489 = vmatprep.subr.mxu0 0.0
  %490 = vmatpush1.msra.mxu0 0.0
  %491 = vmatprep.subr.mxu0 0.0
  %492 = vmatpush1.msra.mxu0 0.0
  %493 = vmatprep.subr.mxu0 0.0
  %494 = vmatpush1.msra.mxu0 0.0
  %495 = vmatprep.subr.mxu0 0.0
  %496 = vmatpush1.msra.mxu0 0.0
  %497 = vmatprep.subr.mxu0 0.0
  %498 = vmatpush1.msra.mxu0 0.0
  %499 = vmatprep.mubr.f32.mxu0 0.0
  %500 = vmatmul.mubr.f32.gmra.mrb[0].mxu0 %v108
  %v501 = vpop.f32.mrb[0].mxu0
  %v502 = vadd.f32 %v89, %v501
  %v503 = vpop.f32.mrb[0].mxu0
  %v504 = vadd.f32 %v89, %v503
  %505 = vmatprep.mubr.f32.mxu0 0.0
  %506 = vmatmul.mubr.f32.gmra.mrb[0].mxu0 %v111
  %v507 = vpop.f32.mrb[0].mxu0
  %v508 = vadd.f32 %v94, %v507
  %v509 = vpop.f32.mrb[0].mxu0
  %v510 = vadd.f32 %v94, %v509
  %511 = vmatprep.mubr.f32.mxu0 0.0
  %512 = vmatmul.mubr.f32.gmra.mrb[0].mxu0 %v114
  %v513 = vpop.f32.mrb[0].mxu0
  %v514 = vadd.f32 %v99, %v513
  %v515 = vpop.f32.mrb[0].mxu0
  %v516 = vadd.f32 %v99, %v515
  %517 = vmatprep.mubr.f32.mxu0 0.0
  %518 = vmatmul.mubr.f32.gmra.mrb[0].mxu0 %v117
  %v519 = vpop.f32.mrb[0].mxu0
  %v520 = vadd.f32 %v104, %v519
  %v521 = vpop.f32.mrb[0].mxu0
  %v522 = vadd.f32 %v104, %v521
  %523 = vdwg.mxu0
  %524 = vmatprep.subr.mxu0 %v27
  %525 = vmatpush1.msra.mxu0 %v26
  %526 = vmatprep.subr.mxu0 %v43
  %527 = vmatpush1.msra.mxu0 %v42
  %528 = vmatprep.subr.mxu0 %v59
  %529 = vmatpush1.msra.mxu0 %v58
  %530 = vmatprep.subr.mxu0 %v148
  %531 = vmatpush1.msra.mxu0 %v145
  %532 = vmatprep.subr.mxu0 0.0
  %533 = vmatpush1.msra.mxu0 0.0
  %534 = vmatprep.subr.mxu0 0.0
  %535 = vmatpush1.msra.mxu0 0.0
  %536 = vmatprep.subr.mxu0 0.0
  %537 = vmatpush1.msra.mxu0 0.0
  %538 = vmatprep.subr.mxu0 0.0
  %539 = vmatpush1.msra.mxu0 0.0
  %540 = vmatprep.subr.mxu0 0.0
  %541 = vmatpush1.msra.mxu0 0.0
  %542 = vmatprep.subr.mxu0 0.0
  %543 = vmatpush1.msra.mxu0 0.0
  %544 = vmatprep.subr.mxu0 0.0
  %545 = vmatpush1.msra.mxu0 0.0
  %546 = vmatprep.subr.mxu0 0.0
  %547 = vmatpush1.msra.mxu0 0.0
  %548 = vmatprep.subr.mxu0 0.0
  %549 = vmatpush1.msra.mxu0 0.0
  %550 = vmatprep.subr.mxu0 0.0
  %551 = vmatpush1.msra.mxu0 0.0
  %552 = vmatprep.subr.mxu0 0.0
  %553 = vmatpush1.msra.mxu0 0.0
  %554 = vmatprep.subr.mxu0 0.0
  %555 = vmatpush1.msra.mxu0 0.0
  %556 = vmatprep.subr.mxu0 0.0
  %557 = vmatpush1.msra.mxu0 0.0
  %558 = vmatprep.subr.mxu0 0.0
  %559 = vmatpush1.msra.mxu0 0.0
  %560 = vmatprep.subr.mxu0 0.0
  %561 = vmatpush1.msra.mxu0 0.0
  %562 = vmatprep.subr.mxu0 0.0
  %563 = vmatpush1.msra.mxu0 0.0
  %564 = vmatprep.subr.mxu0 0.0
  %565 = vmatpush1.msra.mxu0 0.0
  %566 = vmatprep.subr.mxu0 0.0
  %567 = vmatpush1.msra.mxu0 0.0
  %568 = vmatprep.subr.mxu0 0.0
  %569 = vmatpush1.msra.mxu0 0.0
  %570 = vmatprep.subr.mxu0 0.0
  %571 = vmatpush1.msra.mxu0 0.0
  %572 = vmatprep.subr.mxu0 0.0
  %573 = vmatpush1.msra.mxu0 0.0
  %574 = vmatprep.subr.mxu0 0.0
  %575 = vmatpush1.msra.mxu0 0.0
  %576 = vmatprep.subr.mxu0 0.0
  %577 = vmatpush1.msra.mxu0 0.0
  %578 = vmatprep.subr.mxu0 0.0
  %579 = vmatpush1.msra.mxu0 0.0
  %580 = vmatprep.subr.mxu0 0.0
  %581 = vmatpush1.msra.mxu0 0.0
  %582 = vmatprep.subr.mxu0 0.0
  %583 = vmatpush1.msra.mxu0 0.0
  %584 = vmatprep.subr.mxu0 0.0
  %585 = vmatpush1.msra.mxu0 0.0
  %586 = vmatprep.subr.mxu0 0.0
  %587 = vmatpush1.msra.mxu0 0.0
  %588 = vmatprep.mubr.f32.mxu0 0.0
  %589 = vmatmul.mubr.f32.gmra.mrb[0].mxu0 %v108
  %v590 = vpop.f32.mrb[0].mxu0
  %v591 = vadd.f32 %v89, %v590
  %v592 = vpop.f32.mrb[0].mxu0
  %v593 = vadd.f32 %v89, %v592
  %594 = vmatprep.mubr.f32.mxu0 0.0
  %595 = vmatmul.mubr.f32.gmra.mrb[0].mxu0 %v111
  %v596 = vpop.f32.mrb[0].mxu0
  %v597 = vadd.f32 %v94, %v596
  %v598 = vpop.f32.mrb[0].mxu0
  %v599 = vadd.f32 %v94, %v598
  %600 = vmatprep.mubr.f32.mxu0 0.0
  %601 = vmatmul.mubr.f32.gmra.mrb[0].mxu0 %v114
  %v602 = vpop.f32.mrb[0].mxu0
  %v603 = vadd.f32 %v99, %v602
  %v604 = vpop.f32.mrb[0].mxu0
  %v605 = vadd.f32 %v99, %v604
  %606 = vmatprep.mubr.f32.mxu0 0.0
  %607 = vmatmul.mubr.f32.gmra.mrb[0].mxu0 %v117
  %v608 = vpop.f32.mrb[0].mxu0
  %v609 = vadd.f32 %v104, %v608
  %v610 = vpop.f32.mrb[0].mxu0
  %v611 = vadd.f32 %v104, %v610
  %612 = vdwg.mxu0
  %613 = vmatprep.subr.mxu0 %v29
  %614 = vmatpush1.msra.mxu0 %v28
  %615 = vmatprep.subr.mxu0 %v45
  %616 = vmatpush1.msra.mxu0 %v44
  %617 = vmatprep.subr.mxu0 %v61
  %618 = vmatpush1.msra.mxu0 %v60
  %619 = vmatprep.subr.mxu0 %v154
  %620 = vmatpush1.msra.mxu0 %v151
  %621 = vmatprep.subr.mxu0 0.0
  %622 = vmatpush1.msra.mxu0 0.0
  %623 = vmatprep.subr.mxu0 0.0
  %624 = vmatpush1.msra.mxu0 0.0
  %625 = vmatprep.subr.mxu0 0.0
  %626 = vmatpush1.msra.mxu0 0.0
  %627 = vmatprep.subr.mxu0 0.0
  %628 = vmatpush1.msra.mxu0 0.0
  %629 = vmatprep.subr.mxu0 0.0
  %630 = vmatpush1.msra.mxu0 0.0
  %631 = vmatprep.subr.mxu0 0.0
  %632 = vmatpush1.msra.mxu0 0.0
  %633 = vmatprep.subr.mxu0 0.0
  %634 = vmatpush1.msra.mxu0 0.0
  %635 = vmatprep.subr.mxu0 0.0
  %636 = vmatpush1.msra.mxu0 0.0
  %637 = vmatprep.subr.mxu0 0.0
  %638 = vmatpush1.msra.mxu0 0.0
  %639 = vmatprep.subr.mxu0 0.0
  %640 = vmatpush1.msra.mxu0 0.0
  %641 = vmatprep.subr.mxu0 0.0
  %642 = vmatpush1.msra.mxu0 0.0
  %643 = vmatprep.subr.mxu0 0.0
  %644 = vmatpush1.msra.mxu0 0.0
  %645 = vmatprep.subr.mxu0 0.0
  %646 = vmatpush1.msra.mxu0 0.0
  %647 = vmatprep.subr.mxu0 0.0
  %648 = vmatpush1.msra.mxu0 0.0
  %649 = vmatprep.subr.mxu0 0.0
  %650 = vmatpush1.msra.mxu0 0.0
  %651 = vmatprep.subr.mxu0 0.0
  %652 = vmatpush1.msra.mxu0 0.0
  %653 = vmatprep.subr.mxu0 0.0
  %654 = vmatpush1.msra.mxu0 0.0
  %655 = vmatprep.subr.mxu0 0.0
  %656 = vmatpush1.msra.mxu0 0.0
  %657 = vmatprep.subr.mxu0 0.0
  %658 = vmatpush1.msra.mxu0 0.0
  %659 = vmatprep.subr.mxu0 0.0
  %660 = vmatpush1.msra.mxu0 0.0
  %661 = vmatprep.subr.mxu0 0.0
  %662 = vmatpush1.msra.mxu0 0.0
  %663 = vmatprep.subr.mxu0 0.0
  %664 = vmatpush1.msra.mxu0 0.0
  %665 = vmatprep.subr.mxu0 0.0
  %666 = vmatpush1.msra.mxu0 0.0
  %667 = vmatprep.subr.mxu0 0.0
  %668 = vmatpush1.msra.mxu0 0.0
  %669 = vmatprep.subr.mxu0 0.0
  %670 = vmatpush1.msra.mxu0 0.0
  %671 = vmatprep.subr.mxu0 0.0
  %672 = vmatpush1.msra.mxu0 0.0
  %673 = vmatprep.subr.mxu0 0.0
  %674 = vmatpush1.msra.mxu0 0.0
  %675 = vmatprep.subr.mxu0 0.0
  %676 = vmatpush1.msra.mxu0 0.0
  %677 = vmatprep.mubr.f32.mxu0 0.0
  %678 = vmatmul.mubr.f32.gmra.mrb[0].mxu0 %v108
  %v679 = vpop.f32.mrb[0].mxu0
  %v680 = vadd.f32 %v89, %v679
  %v681 = vpop.f32.mrb[0].mxu0
  %v682 = vadd.f32 %v89, %v681
  %683 = vmatprep.mubr.f32.mxu0 0.0
  %684 = vmatmul.mubr.f32.gmra.mrb[0].mxu0 %v111
  %v685 = vpop.f32.mrb[0].mxu0
  %v686 = vadd.f32 %v94, %v685
  %v687 = vpop.f32.mrb[0].mxu0
  %v688 = vadd.f32 %v94, %v687
  %689 = vmatprep.mubr.f32.mxu0 0.0
  %690 = vmatmul.mubr.f32.gmra.mrb[0].mxu0 %v114
  %v691 = vpop.f32.mrb[0].mxu0
  %v692 = vadd.f32 %v99, %v691
  %v693 = vpop.f32.mrb[0].mxu0
  %v694 = vadd.f32 %v99, %v693
  %695 = vmatprep.mubr.f32.mxu0 0.0
  %696 = vmatmul.mubr.f32.gmra.mrb[0].mxu0 %v117
  %v697 = vpop.f32.mrb[0].mxu0
  %v698 = vadd.f32 %v104, %v697
  %v699 = vpop.f32.mrb[0].mxu0
  %v700 = vadd.f32 %v104, %v699
  %701 = vdwg.mxu0
  %702 = vmatprep.subr.mxu0 %v31
  %703 = vmatpush1.msra.mxu0 %v30
  %704 = vmatprep.subr.mxu0 %v47
  %705 = vmatpush1.msra.mxu0 %v46
  %706 = vmatprep.subr.mxu0 %v63
  %707 = vmatpush1.msra.mxu0 %v62
  %708 = vmatprep.subr.mxu0 %v160
  %709 = vmatpush1.msra.mxu0 %v157
  %710 = vmatprep.subr.mxu0 0.0
  %711 = vmatpush1.msra.mxu0 0.0
  %712 = vmatprep.subr.mxu0 0.0
  %713 = vmatpush1.msra.mxu0 0.0
  %714 = vmatprep.subr.mxu0 0.0
  %715 = vmatpush1.msra.mxu0 0.0
  %716 = vmatprep.subr.mxu0 0.0
  %717 = vmatpush1.msra.mxu0 0.0
  %718 = vmatprep.subr.mxu0 0.0
  %719 = vmatpush1.msra.mxu0 0.0
  %720 = vmatprep.subr.mxu0 0.0
  %721 = vmatpush1.msra.mxu0 0.0
  %722 = vmatprep.subr.mxu0 0.0
  %723 = vmatpush1.msra.mxu0 0.0
  %724 = vmatprep.subr.mxu0 0.0
  %725 = vmatpush1.msra.mxu0 0.0
  %726 = vmatprep.subr.mxu0 0.0
  %727 = vmatpush1.msra.mxu0 0.0
  %728 = vmatprep.subr.mxu0 0.0
  %729 = vmatpush1.msra.mxu0 0.0
  %730 = vmatprep.subr.mxu0 0.0
  %731 = vmatpush1.msra.mxu0 0.0
  %732 = vmatprep.subr.mxu0 0.0
  %733 = vmatpush1.msra.mxu0 0.0
  %734 = vmatprep.subr.mxu0 0.0
  %735 = vmatpush1.msra.mxu0 0.0
  %736 = vmatprep.subr.mxu0 0.0
  %737 = vmatpush1.msra.mxu0 0.0
  %738 = vmatprep.subr.mxu0 0.0
  %739 = vmatpush1.msra.mxu0 0.0
  %740 = vmatprep.subr.mxu0 0.0
  %741 = vmatpush1.msra.mxu0 0.0
  %742 = vmatprep.subr.mxu0 0.0
  %743 = vmatpush1.msra.mxu0 0.0
  %744 = vmatprep.subr.mxu0 0.0
  %745 = vmatpush1.msra.mxu0 0.0
  %746 = vmatprep.subr.mxu0 0.0
  %747 = vmatpush1.msra.mxu0 0.0
  %748 = vmatprep.subr.mxu0 0.0
  %749 = vmatpush1.msra.mxu0 0.0
  %750 = vmatprep.subr.mxu0 0.0
  %751 = vmatpush1.msra.mxu0 0.0
  %752 = vmatprep.subr.mxu0 0.0
  %753 = vmatpush1.msra.mxu0 0.0
  %754 = vmatprep.subr.mxu0 0.0
  %755 = vmatpush1.msra.mxu0 0.0
  %756 = vmatprep.subr.mxu0 0.0
  %757 = vmatpush1.msra.mxu0 0.0
  %758 = vmatprep.subr.mxu0 0.0
  %759 = vmatpush1.msra.mxu0 0.0
  %760 = vmatprep.subr.mxu0 0.0
  %761 = vmatpush1.msra.mxu0 0.0
  %762 = vmatprep.subr.mxu0 0.0
  %763 = vmatpush1.msra.mxu0 0.0
  %764 = vmatprep.subr.mxu0 0.0
  %765 = vmatpush1.msra.mxu0 0.0
  %766 = vmatprep.mubr.f32.mxu0 0.0
  %767 = vmatmul.mubr.f32.gmra.mrb[0].mxu0 %v108
  %v768 = vpop.f32.mrb[0].mxu0
  %v769 = vadd.f32 %v89, %v768
  %v770 = vpop.f32.mrb[0].mxu0
  %v771 = vadd.f32 %v89, %v770
  %772 = vmatprep.mubr.f32.mxu0 0.0
  %773 = vmatmul.mubr.f32.gmra.mrb[0].mxu0 %v111
  %v774 = vpop.f32.mrb[0].mxu0
  %v775 = vadd.f32 %v94, %v774
  %v776 = vpop.f32.mrb[0].mxu0
  %v777 = vadd.f32 %v94, %v776
  %778 = vmatprep.mubr.f32.mxu0 0.0
  %779 = vmatmul.mubr.f32.gmra.mrb[0].mxu0 %v114
  %v780 = vpop.f32.mrb[0].mxu0
  %v781 = vadd.f32 %v99, %v780
  %v782 = vpop.f32.mrb[0].mxu0
  %v783 = vadd.f32 %v99, %v782
  %784 = vmatprep.mubr.f32.mxu0 0.0
  %785 = vmatmul.mubr.f32.gmra.mrb[0].mxu0 %v117
  %v786 = vpop.f32.mrb[0].mxu0
  %v787 = vadd.f32 %v104, %v786
  %v788 = vpop.f32.mrb[0].mxu0
  %v789 = vadd.f32 %v104, %v788
  %790 = vdwg.mxu0
  %791 = vmatprep.subr.mxu0 %v33
  %792 = vmatpush1.msra.mxu0 %v32
  %793 = vmatprep.subr.mxu0 %v49
  %794 = vmatpush1.msra.mxu0 %v48
  %795 = vmatprep.subr.mxu0 %v65
  %796 = vmatpush1.msra.mxu0 %v64
  %797 = vmatprep.subr.mxu0 %v166
  %798 = vmatpush1.msra.mxu0 %v163
  %799 = vmatprep.subr.mxu0 0.0
  %800 = vmatpush1.msra.mxu0 0.0
  %801 = vmatprep.subr.mxu0 0.0
  %802 = vmatpush1.msra.mxu0 0.0
  %803 = vmatprep.subr.mxu0 0.0
  %804 = vmatpush1.msra.mxu0 0.0
  %805 = vmatprep.subr.mxu0 0.0
  %806 = vmatpush1.msra.mxu0 0.0
  %807 = vmatprep.subr.mxu0 0.0
  %808 = vmatpush1.msra.mxu0 0.0
  %809 = vmatprep.subr.mxu0 0.0
  %810 = vmatpush1.msra.mxu0 0.0
  %811 = vmatprep.subr.mxu0 0.0
  %812 = vmatpush1.msra.mxu0 0.0
  %813 = vmatprep.subr.mxu0 0.0
  %814 = vmatpush1.msra.mxu0 0.0
  %815 = vmatprep.subr.mxu0 0.0
  %816 = vmatpush1.msra.mxu0 0.0
  %817 = vmatprep.subr.mxu0 0.0
  %818 = vmatpush1.msra.mxu0 0.0
  %819 = vmatprep.subr.mxu0 0.0
  %820 = vmatpush1.msra.mxu0 0.0
  %821 = vmatprep.subr.mxu0 0.0
  %822 = vmatpush1.msra.mxu0 0.0
  %823 = vmatprep.subr.mxu0 0.0
  %824 = vmatpush1.msra.mxu0 0.0
  %825 = vmatprep.subr.mxu0 0.0
  %826 = vmatpush1.msra.mxu0 0.0
  %827 = vmatprep.subr.mxu0 0.0
  %828 = vmatpush1.msra.mxu0 0.0
  %829 = vmatprep.subr.mxu0 0.0
  %830 = vmatpush1.msra.mxu0 0.0
  %831 = vmatprep.subr.mxu0 0.0
  %832 = vmatpush1.msra.mxu0 0.0
  %833 = vmatprep.subr.mxu0 0.0
  %834 = vmatpush1.msra.mxu0 0.0
  %835 = vmatprep.subr.mxu0 0.0
  %836 = vmatpush1.msra.mxu0 0.0
  %837 = vmatprep.subr.mxu0 0.0
  %838 = vmatpush1.msra.mxu0 0.0
  %839 = vmatprep.subr.mxu0 0.0
  %840 = vmatpush1.msra.mxu0 0.0
  %841 = vmatprep.subr.mxu0 0.0
  %842 = vmatpush1.msra.mxu0 0.0
  %843 = vmatprep.subr.mxu0 0.0
  %844 = vmatpush1.msra.mxu0 0.0
  %845 = vmatprep.subr.mxu0 0.0
  %846 = vmatpush1.msra.mxu0 0.0
  %847 = vmatprep.subr.mxu0 0.0
  %848 = vmatpush1.msra.mxu0 0.0
  %849 = vmatprep.subr.mxu0 0.0
  %850 = vmatpush1.msra.mxu0 0.0
  %851 = vmatprep.subr.mxu0 0.0
  %852 = vmatpush1.msra.mxu0 0.0
  %853 = vmatprep.subr.mxu0 0.0
  %854 = vmatpush1.msra.mxu0 0.0
  %855 = vmatprep.mubr.f32.mxu0 0.0
  %856 = vmatmul.mubr.f32.gmra.mrb[0].mxu0 %v108
  %v857 = vpop.f32.mrb[0].mxu0
  %v858 = vadd.f32 %v89, %v857
  %v859 = vpop.f32.mrb[0].mxu0
  %v860 = vadd.f32 %v89, %v859
  %861 = vmatprep.mubr.f32.mxu0 0.0
  %862 = vmatmul.mubr.f32.gmra.mrb[0].mxu0 %v111
  %v863 = vpop.f32.mrb[0].mxu0
  %v864 = vadd.f32 %v94, %v863
  %v865 = vpop.f32.mrb[0].mxu0
  %v866 = vadd.f32 %v94, %v865
  %867 = vmatprep.mubr.f32.mxu0 0.0
  %868 = vmatmul.mubr.f32.gmra.mrb[0].mxu0 %v114
  %v869 = vpop.f32.mrb[0].mxu0
  %v870 = vadd.f32 %v99, %v869
  %v871 = vpop.f32.mrb[0].mxu0
  %v872 = vadd.f32 %v99, %v871
  %873 = vmatprep.mubr.f32.mxu0 0.0
  %874 = vmatmul.mubr.f32.gmra.mrb[0].mxu0 %v117
  %v875 = vpop.f32.mrb[0].mxu0
  %v876 = vadd.f32 %v104, %v875
  %v877 = vpop.f32.mrb[0].mxu0
  %v878 = vadd.f32 %v104, %v877
  %879 = vdwg.mxu0
  %v880 = vmax.f32 %v235, %v413
  %v881 = vmax.f32 %v237, %v415
  %v882 = vmax.f32 %v324, %v502
  %v883 = vmax.f32 %v326, %v504
  %v884 = vmax.f32 %v241, %v419
  %v885 = vmax.f32 %v243, %v421
  %v886 = vmax.f32 %v330, %v508
  %v887 = vmax.f32 %v332, %v510
  %v888 = vmax.f32 %v247, %v425
  %v889 = vmax.f32 %v249, %v427
  %v890 = vmax.f32 %v336, %v514
  %v891 = vmax.f32 %v338, %v516
  %v892 = vmax.f32 %v253, %v431
  %v893 = vmax.f32 %v255, %v433
  %v894 = vmax.f32 %v342, %v520
  %v895 = vmax.f32 %v344, %v522
  %v896 = vmax.f32 %v591, %v769
  %v897 = vmax.f32 %v593, %v771
  %v898 = vmax.f32 %v680, %v858
  %v899 = vmax.f32 %v682, %v860
  %v900 = vmax.f32 %v597, %v775
  %v901 = vmax.f32 %v599, %v777
  %v902 = vmax.f32 %v686, %v864
  %v903 = vmax.f32 %v688, %v866
  %v904 = vmax.f32 %v603, %v781
  %v905 = vmax.f32 %v605, %v783
  %v906 = vmax.f32 %v692, %v870
  %v907 = vmax.f32 %v694, %v872
  %v908 = vmax.f32 %v609, %v787
  %v909 = vmax.f32 %v611, %v789
  %v910 = vmax.f32 %v698, %v876
  %v911 = vmax.f32 %v700, %v878
  %v912 = vmax.f32 %v880, %v896
  %v913 = vmax.f32 %v881, %v897
  %v914 = vmax.f32 %v882, %v898
  %v915 = vmax.f32 %v883, %v899
  %v916 = vmax.f32 %v884, %v900
  %v917 = vmax.f32 %v885, %v901
  %v918 = vmax.f32 %v886, %v902
  %v919 = vmax.f32 %v887, %v903
  %v920 = vmax.f32 %v888, %v904
  %v921 = vmax.f32 %v889, %v905
  %v922 = vmax.f32 %v890, %v906
  %v923 = vmax.f32 %v891, %v907
  %v924 = vmax.f32 %v892, %v908
  %v925 = vmax.f32 %v893, %v909
  %v926 = vmax.f32 %v894, %v910
  %v927 = vmax.f32 %v895, %v911
  %v928 = vmax.f32 %v912, 0.0
  %v929 = vmax.f32 %v913, 0.0
  %v930 = vmax.f32 %v914, 0.0
  %v931 = vmax.f32 %v915, 0.0
  %v932 = vmax.f32 %v916, 0.0
  %v933 = vmax.f32 %v917, 0.0
  %v934 = vmax.f32 %v918, 0.0
  %v935 = vmax.f32 %v919, 0.0
  %v936 = vmax.f32 %v920, 0.0
  %v937 = vmax.f32 %v921, 0.0
  %v938 = vmax.f32 %v922, 0.0
  %v939 = vmax.f32 %v923, 0.0
  %v940 = vmax.f32 %v924, 0.0
  %v941 = vmax.f32 %v925, 0.0
  %v942 = vmax.f32 %v926, 0.0
  %v943 = vmax.f32 %v927, 0.0
  %944 = vst [vmem:[%s3] sm:$0xff] %v928
  %945 = vst [vmem:[%s3 + $0x8] sm:$0xff] %v929
  %946 = vst [vmem:[%s3 + $0x10] sm:$0xff] %v930
  %947 = vst [vmem:[%s3 + $0x18] sm:$0xff] %v931
  %948 = vst [vmem:[%s3 + $0x20] sm:$0xff] %v932
  %949 = vst [vmem:[%s3 + $0x28] sm:$0xff] %v933
  %950 = vst [vmem:[%s3 + $0x30] sm:$0xff] %v934
  %951 = vst [vmem:[%s3 + $0x38] sm:$0xff] %v935
  %952 = vst [vmem:[%s3 + $0x40] sm:$0xff] %v936
  %953 = vst [vmem:[%s3 + $0x48] sm:$0xff] %v937
  %954 = vst [vmem:[%s3 + $0x50] sm:$0xff] %v938
  %955 = vst [vmem:[%s3 + $0x58] sm:$0xff] %v939
  %956 = vst [vmem:[%s3 + $0x60] sm:$0xff] %v940
  %957 = vst [vmem:[%s3 + $0x68] sm:$0xff] %v941
  %958 = vst [vmem:[%s3 + $0x70] sm:$0xff] %v942
  %959 = vst [vmem:[%s3 + $0x78] sm:$0xff] %v943
  // Predicated region
  $region14: #{cnn_forward.3} parent=0 // pred_check
    _
  $region15: #{cnn_forward.3} parent=0 // pred_check_branch
    %961 = sbr.rel (0) target = $region17
  $region16: #{cnn_forward.3} parent=0 // pred_region
    _
  $region17: #{cnn_forward.3} parent=0 // pred_fallthru
    _
  // Predicated region
  $region18: #{cnn_forward.3} parent=0 // pred_check
    _
  $region19: #{cnn_forward.3} parent=0 // pred_check_branch
    %963 = sbr.rel (0) target = $region21
  $region20: #{cnn_forward.3} parent=0 // pred_region
    _
  $region21: #{cnn_forward.3} parent=0 // pred_fallthru
    _

// kernel: cnn_forward.4
$region0: #{cnn_forward.4}
  #allocation0 [shape = 'u32[]', space=smem, size = 0x4, offset = 0x4, fixed_abs, tag = 'smem constant byte address 0x4 - core index']
  #allocation1 [shape = 'u32[144,128]{1,0:T(1,128)}', space=vmem, size = 0x12000, scoped, tag = 'internal scratch']
  %s0 = inlined_call_operand.vmem [shape: f32[1,288,512], index: 0, kind: input, shape index: {}]
  %s1 = inlined_call_operand.vmem [shape: f32[64,288], index: 1, kind: input, shape index: {}]
  %s2 = inlined_call_operand.vmem [shape: f32[64,1], index: 2, kind: input, shape index: {}]
  %s3 = inlined_call_operand.vmem [shape: f32[1,64,128], index: 3, kind: output, shape index: {}]
  %s4 = sld [smem:[#allocation0]]
  $region22: #{cnn_forward.4} parent=0
    _
  %s6 = ssub.s32 1, %s4
  %s7 = scalar_select 0, %s6, %s4
  // Predicated region
  $region2: #{cnn_forward.4} parent=0 // pred_check
    _
  $region3: #{cnn_forward.4} parent=0 // pred_check_branch
    %9 = sbr.rel (0) target = $region5
  $region4: #{cnn_forward.4} parent=0 // pred_region
    _
  $region5: #{cnn_forward.4} parent=0 // pred_fallthru
    _
  // Predicated region
  $region6: #{cnn_forward.4} parent=0 // pred_check
    _
  $region7: #{cnn_forward.4} parent=0 // pred_check_branch
    %11 = sbr.rel (0) target = $region9
  $region8: #{cnn_forward.4} parent=0 // pred_region
    _
  $region9: #{cnn_forward.4} parent=0 // pred_fallthru
    _
  // Predicated region
  $region10: #{cnn_forward.4} parent=0 // pred_check
    _
  $region11: #{cnn_forward.4} parent=0 // pred_check_branch
    %13 = sbr.rel (0) target = $region13
  $region12: #{cnn_forward.4} parent=0 // pred_region
    _
  $region13: #{cnn_forward.4} parent=0 // pred_fallthru
    _
  %v14 = vld [vmem:[%s1] sm:$0xff]
  %v15 = vld [vmem:[%s1 + $0x8] sm:$0xff]
  %v16 = vld [vmem:[%s1 + $0x10] sm:$0xff]
  %v17 = vld [vmem:[%s1 + $0x18] sm:$0xff]
  %v18 = vld [vmem:[%s1 + $0x20] sm:$0xff]
  %v19 = vld [vmem:[%s1 + $0x28] sm:$0xff]
  %v20 = vld [vmem:[%s1 + $0x30] sm:$0xff]
  %v21 = vld [vmem:[%s1 + $0x38] sm:$0xff]
  %v22 = vld [vmem:[%s1 + $0x40] sm:$0xff]
  %v23 = vld [vmem:[%s1 + $0x48] sm:$0xff]
  %v24 = vld [vmem:[%s1 + $0x50] sm:$0xff]
  %v25 = vld [vmem:[%s1 + $0x58] sm:$0xff]
  %v26 = vld [vmem:[%s1 + $0x60] sm:$0xff]
  %v27 = vld [vmem:[%s1 + $0x68] sm:$0xff]
  %v28 = vld [vmem:[%s1 + $0x70] sm:$0xff]
  %v29 = vld [vmem:[%s1 + $0x78] sm:$0xff]
  %v30 = vld [vmem:[%s1 + $0x80] sm:$0xff]
  %v31 = vld [vmem:[%s1 + $0x88] sm:$0xff]
  %v32 = vld [vmem:[%s1 + $0x90] sm:$0xff]
  %v33 = vld [vmem:[%s1 + $0x98] sm:$0xff]
  %v34 = vld [vmem:[%s1 + $0xa0] sm:$0xff]
  %v35 = vld [vmem:[%s1 + $0xa8] sm:$0xff]
  %v36 = vld [vmem:[%s1 + $0xb0] sm:$0xff]
  %v37 = vld [vmem:[%s1 + $0xb8] sm:$0xff]
  %v38 = vld [vmem:[%s0] sm:$0xff]
  %v39 = vld [vmem:[%s0 + $0x8] sm:$0xff]
  %v40 = vld [vmem:[%s0 + $0x10] sm:$0xff]
  %v41 = vld [vmem:[%s0 + $0x18] sm:$0xff]
  %v42 = vld [vmem:[%s0 + $0x20] sm:$0xff]
  %v43 = vld [vmem:[%s0 + $0x28] sm:$0xff]
  %v44 = vld [vmem:[%s0 + $0x30] sm:$0xff]
  %v45 = vld [vmem:[%s0 + $0x38] sm:$0xff]
  %v46 = vld [vmem:[%s0 + $0x40] sm:$0xff]
  %v47 = vld [vmem:[%s0 + $0x48] sm:$0xff]
  %v48 = vld [vmem:[%s0 + $0x50] sm:$0xff]
  %v49 = vld [vmem:[%s0 + $0x58] sm:$0xff]
  %v50 = vld [vmem:[%s0 + $0x60] sm:$0xff]
  %v51 = vld [vmem:[%s0 + $0x68] sm:$0xff]
  %v52 = vld [vmem:[%s0 + $0x70] sm:$0xff]
  %v53 = vld [vmem:[%s0 + $0x78] sm:$0xff]
  %v54 = vld [vmem:[%s0 + $0x80] sm:$0xff]
  %v55 = vld [vmem:[%s0 + $0x88] sm:$0xff]
  %v56 = vld [vmem:[%s0 + $0x90] sm:$0xff]
  %v57 = vld [vmem:[%s0 + $0x98] sm:$0xff]
  %v58 = vld [vmem:[%s0 + $0xa0] sm:$0xff]
  %v59 = vld [vmem:[%s0 + $0xa8] sm:$0xff]
  %v60 = vld [vmem:[%s0 + $0xb0] sm:$0xff]
  %v61 = vld [vmem:[%s0 + $0xb8] sm:$0xff]
  %v62 = vld [vmem:[%s0 + $0xc0] sm:$0xff]
  %v63 = vld [vmem:[%s0 + $0xc8] sm:$0xff]
  %v64 = vld [vmem:[%s0 + $0xd0] sm:$0xff]
  %v65 = vld [vmem:[%s0 + $0xd8] sm:$0xff]
  %v66 = vld [vmem:[%s0 + $0xe0] sm:$0xff]
  %v67 = vld [vmem:[%s0 + $0xe8] sm:$0xff]
  %v68 = vld [vmem:[%s0 + $0xf0] sm:$0xff]
  %v69 = vld [vmem:[%s0 + $0xf8] sm:$0xff]
  %v70 = vld [vmem:[%s0 + $0x100] sm:$0xff]
  %v71 = vld [vmem:[%s0 + $0x108] sm:$0xff]
  %v72 = vld [vmem:[%s0 + $0x110] sm:$0xff]
  %v73 = vld [vmem:[%s0 + $0x118] sm:$0xff]
  %v74 = vld [vmem:[%s0 + $0x120] sm:$0xff]
  %v75 = vld [vmem:[%s0 + $0x128] sm:$0xff]
  %v76 = vld [vmem:[%s0 + $0x130] sm:$0xff]
  %v77 = vld [vmem:[%s0 + $0x138] sm:$0xff]
  %v78 = vld [vmem:[%s0 + $0x140] sm:$0xff]
  %v79 = vld [vmem:[%s0 + $0x148] sm:$0xff]
  %v80 = vld [vmem:[%s0 + $0x150] sm:$0xff]
  %v81 = vld [vmem:[%s0 + $0x158] sm:$0xff]
  %v82 = vld [vmem:[%s0 + $0x160] sm:$0xff]
  %v83 = vld [vmem:[%s0 + $0x168] sm:$0xff]
  %v84 = vld [vmem:[%s0 + $0x170] sm:$0xff]
  %v85 = vld [vmem:[%s0 + $0x178] sm:$0xff]
  %v86 = vld [vmem:[%s0 + $0x180] sm:$0xff]
  %v87 = vld [vmem:[%s0 + $0x188] sm:$0xff]
  %v88 = vld [vmem:[%s0 + $0x190] sm:$0xff]
  %v89 = vld [vmem:[%s0 + $0x198] sm:$0xff]
  %v90 = vld [vmem:[%s0 + $0x1a0] sm:$0xff]
  %v91 = vld [vmem:[%s0 + $0x1a8] sm:$0xff]
  %v92 = vld [vmem:[%s0 + $0x1b0] sm:$0xff]
  %v93 = vld [vmem:[%s0 + $0x1b8] sm:$0xff]
  %v94 = vld [vmem:[%s0 + $0x1c0] sm:$0xff]
  %v95 = vld [vmem:[%s0 + $0x1c8] sm:$0xff]
  %v96 = vld [vmem:[%s0 + $0x1d0] sm:$0xff]
  %v97 = vld [vmem:[%s0 + $0x1d8] sm:$0xff]
  %v98 = vld [vmem:[%s0 + $0x1e0] sm:$0xff]
  %v99 = vld [vmem:[%s0 + $0x1e8] sm:$0xff]
  %v100 = vld [vmem:[%s0 + $0x1f0] sm:$0xff]
  %v101 = vld [vmem:[%s0 + $0x1f8] sm:$0xff]
  %v102 = vld [vmem:[%s0 + $0x200] sm:$0xff]
  %v103 = vld [vmem:[%s0 + $0x208] sm:$0xff]
  %v104 = vld [vmem:[%s0 + $0x210] sm:$0xff]
  %v105 = vld [vmem:[%s0 + $0x218] sm:$0xff]
  %v106 = vld [vmem:[%s0 + $0x220] sm:$0xff]
  %v107 = vld [vmem:[%s0 + $0x228] sm:$0xff]
  %v108 = vld [vmem:[%s0 + $0x230] sm:$0xff]
  %v109 = vld [vmem:[%s0 + $0x238] sm:$0xff]
  %v110 = vld [vmem:[%s0 + $0x240] sm:$0xff]
  %v111 = vld [vmem:[%s0 + $0x248] sm:$0xff]
  %v112 = vld [vmem:[%s0 + $0x250] sm:$0xff]
  %v113 = vld [vmem:[%s0 + $0x258] sm:$0xff]
  %v114 = vld [vmem:[%s0 + $0x260] sm:$0xff]
  %v115 = vld [vmem:[%s0 + $0x268] sm:$0xff]
  %v116 = vld [vmem:[%s0 + $0x270] sm:$0xff]
  %v117 = vld [vmem:[%s0 + $0x278] sm:$0xff]
  %v118 = vld [vmem:[%s0 + $0x280] sm:$0xff]
  %v119 = vld [vmem:[%s0 + $0x288] sm:$0xff]
  %v120 = vld [vmem:[%s0 + $0x290] sm:$0xff]
  %v121 = vld [vmem:[%s0 + $0x298] sm:$0xff]
  %v122 = vld [vmem:[%s0 + $0x2a0] sm:$0xff]
  %v123 = vld [vmem:[%s0 + $0x2a8] sm:$0xff]
  %v124 = vld [vmem:[%s0 + $0x2b0] sm:$0xff]
  %v125 = vld [vmem:[%s0 + $0x2b8] sm:$0xff]
  %v126 = vld [vmem:[%s0 + $0x2c0] sm:$0xff]
  %v127 = vld [vmem:[%s0 + $0x2c8] sm:$0xff]
  %v128 = vld [vmem:[%s0 + $0x2d0] sm:$0xff]
  %v129 = vld [vmem:[%s0 + $0x2d8] sm:$0xff]
  %v130 = vld [vmem:[%s0 + $0x2e0] sm:$0xff]
  %v131 = vld [vmem:[%s0 + $0x2e8] sm:$0xff]
  %v132 = vld [vmem:[%s0 + $0x2f0] sm:$0xff]
  %v133 = vld [vmem:[%s0 + $0x2f8] sm:$0xff]
  %v134 = vld [vmem:[%s0 + $0x300] sm:$0xff]
  %v135 = vld [vmem:[%s0 + $0x308] sm:$0xff]
  %v136 = vld [vmem:[%s0 + $0x310] sm:$0xff]
  %v137 = vld [vmem:[%s0 + $0x318] sm:$0xff]
  %v138 = vld [vmem:[%s0 + $0x320] sm:$0xff]
  %v139 = vld [vmem:[%s0 + $0x328] sm:$0xff]
  %v140 = vld [vmem:[%s0 + $0x330] sm:$0xff]
  %v141 = vld [vmem:[%s0 + $0x338] sm:$0xff]
  %v142 = vld [vmem:[%s0 + $0x340] sm:$0xff]
  %v143 = vld [vmem:[%s0 + $0x348] sm:$0xff]
  %v144 = vld [vmem:[%s0 + $0x350] sm:$0xff]
  %v145 = vld [vmem:[%s0 + $0x358] sm:$0xff]
  %v146 = vld [vmem:[%s0 + $0x360] sm:$0xff]
  %v147 = vld [vmem:[%s0 + $0x368] sm:$0xff]
  %v148 = vld [vmem:[%s0 + $0x370] sm:$0xff]
  %v149 = vld [vmem:[%s0 + $0x378] sm:$0xff]
  %v150 = vld [vmem:[%s0 + $0x380] sm:$0xff]
  %v151 = vld [vmem:[%s0 + $0x388] sm:$0xff]
  %v152 = vld [vmem:[%s0 + $0x390] sm:$0xff]
  %v153 = vld [vmem:[%s0 + $0x398] sm:$0xff]
  %v154 = vld [vmem:[%s0 + $0x3a0] sm:$0xff]
  %v155 = vld [vmem:[%s0 + $0x3a8] sm:$0xff]
  %v156 = vld [vmem:[%s0 + $0x3b0] sm:$0xff]
  %v157 = vld [vmem:[%s0 + $0x3b8] sm:$0xff]
  %v158 = vld [vmem:[%s0 + $0x3c0] sm:$0xff]
  %v159 = vld [vmem:[%s0 + $0x3c8] sm:$0xff]
  %v160 = vld [vmem:[%s0 + $0x3d0] sm:$0xff]
  %v161 = vld [vmem:[%s0 + $0x3d8] sm:$0xff]
  %v162 = vld [vmem:[%s0 + $0x3e0] sm:$0xff]
  %v163 = vld [vmem:[%s0 + $0x3e8] sm:$0xff]
  %v164 = vld [vmem:[%s0 + $0x3f0] sm:$0xff]
  %v165 = vld [vmem:[%s0 + $0x3f8] sm:$0xff]
  %v166 = vld [vmem:[%s0 + $0x400] sm:$0xff]
  %v167 = vld [vmem:[%s0 + $0x408] sm:$0xff]
  %v168 = vld [vmem:[%s0 + $0x410] sm:$0xff]
  %v169 = vld [vmem:[%s0 + $0x418] sm:$0xff]
  %v170 = vld [vmem:[%s0 + $0x420] sm:$0xff]
  %v171 = vld [vmem:[%s0 + $0x428] sm:$0xff]
  %v172 = vld [vmem:[%s0 + $0x430] sm:$0xff]
  %v173 = vld [vmem:[%s0 + $0x438] sm:$0xff]
  %v174 = vld [vmem:[%s0 + $0x440] sm:$0xff]
  %v175 = vld [vmem:[%s0 + $0x448] sm:$0xff]
  %v176 = vld [vmem:[%s0 + $0x450] sm:$0xff]
  %v177 = vld [vmem:[%s0 + $0x458] sm:$0xff]
  %v178 = vld [vmem:[%s0 + $0x460] sm:$0xff]
  %v179 = vld [vmem:[%s0 + $0x468] sm:$0xff]
  %v180 = vld [vmem:[%s0 + $0x470] sm:$0xff]
  %v181 = vld [vmem:[%s0 + $0x478] sm:$0xff]
  %v182 = vld [vmem:[%s2] sm:$0xff]
  %v183 = vld [vmem:[%s2 + $0x8] sm:$0xff]
  %v184 = vld [vmem:[%s2 + $0x10] sm:$0xff]
  %v185 = vld [vmem:[%s2 + $0x18] sm:$0xff]
  %v186 = vld [vmem:[%s2 + $0x20] sm:$0xff]
  %v187 = vld [vmem:[%s2 + $0x28] sm:$0xff]
  %v188 = vld [vmem:[%s2 + $0x30] sm:$0xff]
  %v189 = vld [vmem:[%s2 + $0x38] sm:$0xff]
  %191 = vset.pattern.permute.xlu0 0
  %192 = vperm.xlu0 %191, %v182
  %v193 = vpop.permute.xlu0 %192
  %196 = vset.pattern.permute.xlu0 0
  %197 = vperm.xlu0 %196, %v183
  %v198 = vpop.permute.xlu0 %197
  %201 = vset.pattern.permute.xlu0 0
  %202 = vperm.xlu0 %201, %v184
  %v203 = vpop.permute.xlu0 %202
  %206 = vset.pattern.permute.xlu0 0
  %207 = vperm.xlu0 %206, %v185
  %v208 = vpop.permute.xlu0 %207
  %211 = vset.pattern.permute.xlu0 0
  %212 = vperm.xlu0 %211, %v186
  %v213 = vpop.permute.xlu0 %212
  %216 = vset.pattern.permute.xlu0 0
  %217 = vperm.xlu0 %216, %v187
  %v218 = vpop.permute.xlu0 %217
  %221 = vset.pattern.permute.xlu0 0
  %222 = vperm.xlu0 %221, %v188
  %v223 = vpop.permute.xlu0 %222
  %226 = vset.pattern.permute.xlu0 0
  %227 = vperm.xlu0 %226, %v189
  %v228 = vpop.permute.xlu0 %227
  %vm230 = vcmask 261120
  %v232 = vsel %vm230, %v16, 0
  %v235 = vsel %vm230, %v19, 0
  %v238 = vsel %vm230, %v22, 0
  %v241 = vsel %vm230, %v25, 0
  %v244 = vsel %vm230, %v28, 0
  %v247 = vsel %vm230, %v31, 0
  %v250 = vsel %vm230, %v34, 0
  %v253 = vsel %vm230, %v37, 0
  %255 = vmatprep.subr.mxu0 %v39
  %256 = vmatpush1.msra.mxu0 %v38
  %257 = vmatprep.subr.mxu0 %v43
  %258 = vmatpush1.msra.mxu0 %v42
  %259 = vmatprep.subr.mxu0 %v47
  %260 = vmatpush1.msra.mxu0 %v46
  %261 = vmatprep.subr.mxu0 %v51
  %262 = vmatpush1.msra.mxu0 %v50
  %263 = vmatprep.subr.mxu0 %v55
  %264 = vmatpush1.msra.mxu0 %v54
  %265 = vmatprep.subr.mxu0 %v59
  %266 = vmatpush1.msra.mxu0 %v58
  %267 = vmatprep.subr.mxu0 %v63
  %268 = vmatpush1.msra.mxu0 %v62
  %269 = vmatprep.subr.mxu0 %v67
  %270 = vmatpush1.msra.mxu0 %v66
  %271 = vmatprep.subr.mxu0 %v71
  %272 = vmatpush1.msra.mxu0 %v70
  %273 = vmatprep.subr.mxu0 %v75
  %274 = vmatpush1.msra.mxu0 %v74
  %275 = vmatprep.subr.mxu0 %v79
  %276 = vmatpush1.msra.mxu0 %v78
  %277 = vmatprep.subr.mxu0 %v83
  %278 = vmatpush1.msra.mxu0 %v82
  %279 = vmatprep.subr.mxu0 %v87
  %280 = vmatpush1.msra.mxu0 %v86
  %281 = vmatprep.subr.mxu0 %v91
  %282 = vmatpush1.msra.mxu0 %v90
  %283 = vmatprep.subr.mxu0 %v95
  %284 = vmatpush1.msra.mxu0 %v94
  %285 = vmatprep.subr.mxu0 %v99
  %286 = vmatpush1.msra.mxu0 %v98
  %287 = vmatprep.subr.mxu0 %v103
  %288 = vmatpush1.msra.mxu0 %v102
  %289 = vmatprep.subr.mxu0 %v107
  %290 = vmatpush1.msra.mxu0 %v106
  %291 = vmatprep.subr.mxu0 %v111
  %292 = vmatpush1.msra.mxu0 %v110
  %293 = vmatprep.subr.mxu0 %v115
  %294 = vmatpush1.msra.mxu0 %v114
  %295 = vmatprep.subr.mxu0 %v119
  %296 = vmatpush1.msra.mxu0 %v118
  %297 = vmatprep.subr.mxu0 %v123
  %298 = vmatpush1.msra.mxu0 %v122
  %299 = vmatprep.subr.mxu0 %v127
  %300 = vmatpush1.msra.mxu0 %v126
  %301 = vmatprep.subr.mxu0 %v131
  %302 = vmatpush1.msra.mxu0 %v130
  %303 = vmatprep.subr.mxu0 %v135
  %304 = vmatpush1.msra.mxu0 %v134
  %305 = vmatprep.subr.mxu0 %v139
  %306 = vmatpush1.msra.mxu0 %v138
  %307 = vmatprep.subr.mxu0 %v143
  %308 = vmatpush1.msra.mxu0 %v142
  %309 = vmatprep.subr.mxu0 %v147
  %310 = vmatpush1.msra.mxu0 %v146
  %311 = vmatprep.subr.mxu0 %v151
  %312 = vmatpush1.msra.mxu0 %v150
  %313 = vmatprep.subr.mxu0 %v155
  %314 = vmatpush1.msra.mxu0 %v154
  %315 = vmatprep.subr.mxu0 %v159
  %316 = vmatpush1.msra.mxu0 %v158
  %317 = vmatprep.subr.mxu0 %v163
  %318 = vmatpush1.msra.mxu0 %v162
  %319 = vmatprep.mubr.f32.mxu0 %v15
  %320 = vmatmul.mubr.f32.gmra.mrb[0].mxu0 %v14
  %v321 = vpop.f32.mrb[0].mxu0
  %v322 = vadd.f32 %v193, %v321
  %v323 = vpop.f32.mrb[0].mxu0
  %v324 = vadd.f32 %v193, %v323
  %325 = vmatprep.mubr.f32.mxu0 %v18
  %326 = vmatmul.mubr.f32.gmra.mrb[0].mxu0 %v17
  %v327 = vpop.f32.mrb[0].mxu0
  %v328 = vadd.f32 %v198, %v327
  %v329 = vpop.f32.mrb[0].mxu0
  %v330 = vadd.f32 %v198, %v329
  %331 = vmatprep.mubr.f32.mxu0 %v21
  %332 = vmatmul.mubr.f32.gmra.mrb[0].mxu0 %v20
  %v333 = vpop.f32.mrb[0].mxu0
  %v334 = vadd.f32 %v203, %v333
  %v335 = vpop.f32.mrb[0].mxu0
  %v336 = vadd.f32 %v203, %v335
  %337 = vmatprep.mubr.f32.mxu0 %v24
  %338 = vmatmul.mubr.f32.gmra.mrb[0].mxu0 %v23
  %v339 = vpop.f32.mrb[0].mxu0
  %v340 = vadd.f32 %v208, %v339
  %v341 = vpop.f32.mrb[0].mxu0
  %v342 = vadd.f32 %v208, %v341
  %343 = vmatprep.mubr.f32.mxu0 %v27
  %344 = vmatmul.mubr.f32.gmra.mrb[0].mxu0 %v26
  %v345 = vpop.f32.mrb[0].mxu0
  %v346 = vadd.f32 %v213, %v345
  %v347 = vpop.f32.mrb[0].mxu0
  %v348 = vadd.f32 %v213, %v347
  %349 = vmatprep.mubr.f32.mxu0 %v30
  %350 = vmatmul.mubr.f32.gmra.mrb[0].mxu0 %v29
  %v351 = vpop.f32.mrb[0].mxu0
  %v352 = vadd.f32 %v218, %v351
  %v353 = vpop.f32.mrb[0].mxu0
  %v354 = vadd.f32 %v218, %v353
  %355 = vmatprep.mubr.f32.mxu0 %v33
  %356 = vmatmul.mubr.f32.gmra.mrb[0].mxu0 %v32
  %v357 = vpop.f32.mrb[0].mxu0
  %v358 = vadd.f32 %v223, %v357
  %v359 = vpop.f32.mrb[0].mxu0
  %v360 = vadd.f32 %v223, %v359
  %361 = vmatprep.mubr.f32.mxu0 %v36
  %362 = vmatmul.mubr.f32.gmra.mrb[0].mxu0 %v35
  %v363 = vpop.f32.mrb[0].mxu0
  %v364 = vadd.f32 %v228, %v363
  %v365 = vpop.f32.mrb[0].mxu0
  %v366 = vadd.f32 %v228, %v365
  %367 = vdwg.mxu0
  %368 = vmatprep.subr.mxu0 %v167
  %369 = vmatpush1.msra.mxu0 %v166
  %370 = vmatprep.subr.mxu0 %v171
  %371 = vmatpush1.msra.mxu0 %v170
  %372 = vmatprep.subr.mxu0 %v175
  %373 = vmatpush1.msra.mxu0 %v174
  %374 = vmatprep.subr.mxu0 %v179
  %375 = vmatpush1.msra.mxu0 %v178
  %376 = vmatprep.subr.mxu0 0.0
  %377 = vmatpush1.msra.mxu0 0.0
  %378 = vmatprep.subr.mxu0 0.0
  %379 = vmatpush1.msra.mxu0 0.0
  %380 = vmatprep.subr.mxu0 0.0
  %381 = vmatpush1.msra.mxu0 0.0
  %382 = vmatprep.subr.mxu0 0.0
  %383 = vmatpush1.msra.mxu0 0.0
  %384 = vmatprep.subr.mxu0 0.0
  %385 = vmatpush1.msra.mxu0 0.0
  %386 = vmatprep.subr.mxu0 0.0
  %387 = vmatpush1.msra.mxu0 0.0
  %388 = vmatprep.subr.mxu0 0.0
  %389 = vmatpush1.msra.mxu0 0.0
  %390 = vmatprep.subr.mxu0 0.0
  %391 = vmatpush1.msra.mxu0 0.0
  %392 = vmatprep.subr.mxu0 0.0
  %393 = vmatpush1.msra.mxu0 0.0
  %394 = vmatprep.subr.mxu0 0.0
  %395 = vmatpush1.msra.mxu0 0.0
  %396 = vmatprep.subr.mxu0 0.0
  %397 = vmatpush1.msra.mxu0 0.0
  %398 = vmatprep.subr.mxu0 0.0
  %399 = vmatpush1.msra.mxu0 0.0
  %400 = vmatprep.subr.mxu0 0.0
  %401 = vmatpush1.msra.mxu0 0.0
  %402 = vmatprep.subr.mxu0 0.0
  %403 = vmatpush1.msra.mxu0 0.0
  %404 = vmatprep.subr.mxu0 0.0
  %405 = vmatpush1.msra.mxu0 0.0
  %406 = vmatprep.subr.mxu0 0.0
  %407 = vmatpush1.msra.mxu0 0.0
  %408 = vmatprep.subr.mxu0 0.0
  %409 = vmatpush1.msra.mxu0 0.0
  %410 = vmatprep.subr.mxu0 0.0
  %411 = vmatpush1.msra.mxu0 0.0
  %412 = vmatprep.subr.mxu0 0.0
  %413 = vmatpush1.msra.mxu0 0.0
  %414 = vmatprep.subr.mxu0 0.0
  %415 = vmatpush1.msra.mxu0 0.0
  %416 = vmatprep.subr.mxu0 0.0
  %417 = vmatpush1.msra.mxu0 0.0
  %418 = vmatprep.subr.mxu0 0.0
  %419 = vmatpush1.msra.mxu0 0.0
  %420 = vmatprep.subr.mxu0 0.0
  %421 = vmatpush1.msra.mxu0 0.0
  %422 = vmatprep.subr.mxu0 0.0
  %423 = vmatpush1.msra.mxu0 0.0
  %424 = vmatprep.subr.mxu0 0.0
  %425 = vmatpush1.msra.mxu0 0.0
  %426 = vmatprep.subr.mxu0 0.0
  %427 = vmatpush1.msra.mxu0 0.0
  %428 = vmatprep.subr.mxu0 0.0
  %429 = vmatpush1.msra.mxu0 0.0
  %430 = vmatprep.subr.mxu0 0.0
  %431 = vmatpush1.msra.mxu0 0.0
  %432 = vmatprep.mubr.f32.mxu0 0.0
  %433 = vmatmul.mubr.f32.gmra.mrb[0].mxu0 %v232
  %v434 = vpop.f32.mrb[0].mxu0
  %v435 = vadd.f32 %v322, %v434
  %v436 = vpop.f32.mrb[0].mxu0
  %v437 = vadd.f32 %v324, %v436
  %438 = vmatprep.mubr.f32.mxu0 0.0
  %439 = vmatmul.mubr.f32.gmra.mrb[0].mxu0 %v235
  %v440 = vpop.f32.mrb[0].mxu0
  %v441 = vadd.f32 %v328, %v440
  %v442 = vpop.f32.mrb[0].mxu0
  %v443 = vadd.f32 %v330, %v442
  %444 = vmatprep.mubr.f32.mxu0 0.0
  %445 = vmatmul.mubr.f32.gmra.mrb[0].mxu0 %v238
  %v446 = vpop.f32.mrb[0].mxu0
  %v447 = vadd.f32 %v334, %v446
  %v448 = vpop.f32.mrb[0].mxu0
  %v449 = vadd.f32 %v336, %v448
  %450 = vmatprep.mubr.f32.mxu0 0.0
  %451 = vmatmul.mubr.f32.gmra.mrb[0].mxu0 %v241
  %v452 = vpop.f32.mrb[0].mxu0
  %v453 = vadd.f32 %v340, %v452
  %v454 = vpop.f32.mrb[0].mxu0
  %v455 = vadd.f32 %v342, %v454
  %456 = vmatprep.mubr.f32.mxu0 0.0
  %457 = vmatmul.mubr.f32.gmra.mrb[0].mxu0 %v244
  %v458 = vpop.f32.mrb[0].mxu0
  %v459 = vadd.f32 %v346, %v458
  %v460 = vpop.f32.mrb[0].mxu0
  %v461 = vadd.f32 %v348, %v460
  %462 = vmatprep.mubr.f32.mxu0 0.0
  %463 = vmatmul.mubr.f32.gmra.mrb[0].mxu0 %v247
  %v464 = vpop.f32.mrb[0].mxu0
  %v465 = vadd.f32 %v352, %v464
  %v466 = vpop.f32.mrb[0].mxu0
  %v467 = vadd.f32 %v354, %v466
  %468 = vmatprep.mubr.f32.mxu0 0.0
  %469 = vmatmul.mubr.f32.gmra.mrb[0].mxu0 %v250
  %v470 = vpop.f32.mrb[0].mxu0
  %v471 = vadd.f32 %v358, %v470
  %v472 = vpop.f32.mrb[0].mxu0
  %v473 = vadd.f32 %v360, %v472
  %474 = vmatprep.mubr.f32.mxu0 0.0
  %475 = vmatmul.mubr.f32.gmra.mrb[0].mxu0 %v253
  %v476 = vpop.f32.mrb[0].mxu0
  %v477 = vadd.f32 %v364, %v476
  %v478 = vpop.f32.mrb[0].mxu0
  %v479 = vadd.f32 %v366, %v478
  %480 = vdwg.mxu0
  %481 = vmatprep.subr.mxu0 %v41
  %482 = vmatpush1.msra.mxu0 %v40
  %483 = vmatprep.subr.mxu0 %v45
  %484 = vmatpush1.msra.mxu0 %v44
  %485 = vmatprep.subr.mxu0 %v49
  %486 = vmatpush1.msra.mxu0 %v48
  %487 = vmatprep.subr.mxu0 %v53
  %488 = vmatpush1.msra.mxu0 %v52
  %489 = vmatprep.subr.mxu0 %v57
  %490 = vmatpush1.msra.mxu0 %v56
  %491 = vmatprep.subr.mxu0 %v61
  %492 = vmatpush1.msra.mxu0 %v60
  %493 = vmatprep.subr.mxu0 %v65
  %494 = vmatpush1.msra.mxu0 %v64
  %495 = vmatprep.subr.mxu0 %v69
  %496 = vmatpush1.msra.mxu0 %v68
  %497 = vmatprep.subr.mxu0 %v73
  %498 = vmatpush1.msra.mxu0 %v72
  %499 = vmatprep.subr.mxu0 %v77
  %500 = vmatpush1.msra.mxu0 %v76
  %501 = vmatprep.subr.mxu0 %v81
  %502 = vmatpush1.msra.mxu0 %v80
  %503 = vmatprep.subr.mxu0 %v85
  %504 = vmatpush1.msra.mxu0 %v84
  %505 = vmatprep.subr.mxu0 %v89
  %506 = vmatpush1.msra.mxu0 %v88
  %507 = vmatprep.subr.mxu0 %v93
  %508 = vmatpush1.msra.mxu0 %v92
  %509 = vmatprep.subr.mxu0 %v97
  %510 = vmatpush1.msra.mxu0 %v96
  %511 = vmatprep.subr.mxu0 %v101
  %512 = vmatpush1.msra.mxu0 %v100
  %513 = vmatprep.subr.mxu0 %v105
  %514 = vmatpush1.msra.mxu0 %v104
  %515 = vmatprep.subr.mxu0 %v109
  %516 = vmatpush1.msra.mxu0 %v108
  %517 = vmatprep.subr.mxu0 %v113
  %518 = vmatpush1.msra.mxu0 %v112
  %519 = vmatprep.subr.mxu0 %v117
  %520 = vmatpush1.msra.mxu0 %v116
  %521 = vmatprep.subr.mxu0 %v121
  %522 = vmatpush1.msra.mxu0 %v120
  %523 = vmatprep.subr.mxu0 %v125
  %524 = vmatpush1.msra.mxu0 %v124
  %525 = vmatprep.subr.mxu0 %v129
  %526 = vmatpush1.msra.mxu0 %v128
  %527 = vmatprep.subr.mxu0 %v133
  %528 = vmatpush1.msra.mxu0 %v132
  %529 = vmatprep.subr.mxu0 %v137
  %530 = vmatpush1.msra.mxu0 %v136
  %531 = vmatprep.subr.mxu0 %v141
  %532 = vmatpush1.msra.mxu0 %v140
  %533 = vmatprep.subr.mxu0 %v145
  %534 = vmatpush1.msra.mxu0 %v144
  %535 = vmatprep.subr.mxu0 %v149
  %536 = vmatpush1.msra.mxu0 %v148
  %537 = vmatprep.subr.mxu0 %v153
  %538 = vmatpush1.msra.mxu0 %v152
  %539 = vmatprep.subr.mxu0 %v157
  %540 = vmatpush1.msra.mxu0 %v156
  %541 = vmatprep.subr.mxu0 %v161
  %542 = vmatpush1.msra.mxu0 %v160
  %543 = vmatprep.subr.mxu0 %v165
  %544 = vmatpush1.msra.mxu0 %v164
  %545 = vmatprep.mubr.f32.mxu0 %v15
  %546 = vmatmul.mubr.f32.gmra.mrb[0].mxu0 %v14
  %v547 = vpop.f32.mrb[0].mxu0
  %v548 = vadd.f32 %v193, %v547
  %v549 = vpop.f32.mrb[0].mxu0
  %v550 = vadd.f32 %v193, %v549
  %551 = vmatprep.mubr.f32.mxu0 %v18
  %552 = vmatmul.mubr.f32.gmra.mrb[0].mxu0 %v17
  %v553 = vpop.f32.mrb[0].mxu0
  %v554 = vadd.f32 %v198, %v553
  %v555 = vpop.f32.mrb[0].mxu0
  %v556 = vadd.f32 %v198, %v555
  %557 = vmatprep.mubr.f32.mxu0 %v21
  %558 = vmatmul.mubr.f32.gmra.mrb[0].mxu0 %v20
  %v559 = vpop.f32.mrb[0].mxu0
  %v560 = vadd.f32 %v203, %v559
  %v561 = vpop.f32.mrb[0].mxu0
  %v562 = vadd.f32 %v203, %v561
  %563 = vmatprep.mubr.f32.mxu0 %v24
  %564 = vmatmul.mubr.f32.gmra.mrb[0].mxu0 %v23
  %v565 = vpop.f32.mrb[0].mxu0
  %v566 = vadd.f32 %v208, %v565
  %v567 = vpop.f32.mrb[0].mxu0
  %v568 = vadd.f32 %v208, %v567
  %569 = vmatprep.mubr.f32.mxu0 %v27
  %570 = vmatmul.mubr.f32.gmra.mrb[0].mxu0 %v26
  %v571 = vpop.f32.mrb[0].mxu0
  %v572 = vadd.f32 %v213, %v571
  %v573 = vpop.f32.mrb[0].mxu0
  %v574 = vadd.f32 %v213, %v573
  %575 = vmatprep.mubr.f32.mxu0 %v30
  %576 = vmatmul.mubr.f32.gmra.mrb[0].mxu0 %v29
  %v577 = vpop.f32.mrb[0].mxu0
  %v578 = vadd.f32 %v218, %v577
  %v579 = vpop.f32.mrb[0].mxu0
  %v580 = vadd.f32 %v218, %v579
  %581 = vmatprep.mubr.f32.mxu0 %v33
  %582 = vmatmul.mubr.f32.gmra.mrb[0].mxu0 %v32
  %v583 = vpop.f32.mrb[0].mxu0
  %v584 = vadd.f32 %v223, %v583
  %v585 = vpop.f32.mrb[0].mxu0
  %v586 = vadd.f32 %v223, %v585
  %587 = vmatprep.mubr.f32.mxu0 %v36
  %588 = vmatmul.mubr.f32.gmra.mrb[0].mxu0 %v35
  %v589 = vpop.f32.mrb[0].mxu0
  %v590 = vadd.f32 %v228, %v589
  %v591 = vpop.f32.mrb[0].mxu0
  %v592 = vadd.f32 %v228, %v591
  %593 = vdwg.mxu0
  %594 = vmatprep.subr.mxu0 %v169
  %595 = vmatpush1.msra.mxu0 %v168
  %596 = vmatprep.subr.mxu0 %v173
  %597 = vmatpush1.msra.mxu0 %v172
  %598 = vmatprep.subr.mxu0 %v177
  %599 = vmatpush1.msra.mxu0 %v176
  %600 = vmatprep.subr.mxu0 %v181
  %601 = vmatpush1.msra.mxu0 %v180
  %602 = vmatprep.subr.mxu0 0.0
  %603 = vmatpush1.msra.mxu0 0.0
  %604 = vmatprep.subr.mxu0 0.0
  %605 = vmatpush1.msra.mxu0 0.0
  %606 = vmatprep.subr.mxu0 0.0
  %607 = vmatpush1.msra.mxu0 0.0
  %608 = vmatprep.subr.mxu0 0.0
  %609 = vmatpush1.msra.mxu0 0.0
  %610 = vmatprep.subr.mxu0 0.0
  %611 = vmatpush1.msra.mxu0 0.0
  %612 = vmatprep.subr.mxu0 0.0
  %613 = vmatpush1.msra.mxu0 0.0
  %614 = vmatprep.subr.mxu0 0.0
  %615 = vmatpush1.msra.mxu0 0.0
  %616 = vmatprep.subr.mxu0 0.0
  %617 = vmatpush1.msra.mxu0 0.0
  %618 = vmatprep.subr.mxu0 0.0
  %619 = vmatpush1.msra.mxu0 0.0
  %620 = vmatprep.subr.mxu0 0.0
  %621 = vmatpush1.msra.mxu0 0.0
  %622 = vmatprep.subr.mxu0 0.0
  %623 = vmatpush1.msra.mxu0 0.0
  %624 = vmatprep.subr.mxu0 0.0
  %625 = vmatpush1.msra.mxu0 0.0
  %626 = vmatprep.subr.mxu0 0.0
  %627 = vmatpush1.msra.mxu0 0.0
  %628 = vmatprep.subr.mxu0 0.0
  %629 = vmatpush1.msra.mxu0 0.0
  %630 = vmatprep.subr.mxu0 0.0
  %631 = vmatpush1.msra.mxu0 0.0
  %632 = vmatprep.subr.mxu0 0.0
  %633 = vmatpush1.msra.mxu0 0.0
  %634 = vmatprep.subr.mxu0 0.0
  %635 = vmatpush1.msra.mxu0 0.0
  %636 = vmatprep.subr.mxu0 0.0
  %637 = vmatpush1.msra.mxu0 0.0
  %638 = vmatprep.subr.mxu0 0.0
  %639 = vmatpush1.msra.mxu0 0.0
  %640 = vmatprep.subr.mxu0 0.0
  %641 = vmatpush1.msra.mxu0 0.0
  %642 = vmatprep.subr.mxu0 0.0
  %643 = vmatpush1.msra.mxu0 0.0
  %644 = vmatprep.subr.mxu0 0.0
  %645 = vmatpush1.msra.mxu0 0.0
  %646 = vmatprep.subr.mxu0 0.0
  %647 = vmatpush1.msra.mxu0 0.0
  %648 = vmatprep.subr.mxu0 0.0
  %649 = vmatpush1.msra.mxu0 0.0
  %650 = vmatprep.subr.mxu0 0.0
  %651 = vmatpush1.msra.mxu0 0.0
  %652 = vmatprep.subr.mxu0 0.0
  %653 = vmatpush1.msra.mxu0 0.0
  %654 = vmatprep.subr.mxu0 0.0
  %655 = vmatpush1.msra.mxu0 0.0
  %656 = vmatprep.subr.mxu0 0.0
  %657 = vmatpush1.msra.mxu0 0.0
  %658 = vmatprep.mubr.f32.mxu0 0.0
  %659 = vmatmul.mubr.f32.gmra.mrb[0].mxu0 %v232
  %v660 = vpop.f32.mrb[0].mxu0
  %v661 = vadd.f32 %v548, %v660
  %v662 = vpop.f32.mrb[0].mxu0
  %v663 = vadd.f32 %v550, %v662
  %664 = vmatprep.mubr.f32.mxu0 0.0
  %665 = vmatmul.mubr.f32.gmra.mrb[0].mxu0 %v235
  %v666 = vpop.f32.mrb[0].mxu0
  %v667 = vadd.f32 %v554, %v666
  %v668 = vpop.f32.mrb[0].mxu0
  %v669 = vadd.f32 %v556, %v668
  %670 = vmatprep.mubr.f32.mxu0 0.0
  %671 = vmatmul.mubr.f32.gmra.mrb[0].mxu0 %v238
  %v672 = vpop.f32.mrb[0].mxu0
  %v673 = vadd.f32 %v560, %v672
  %v674 = vpop.f32.mrb[0].mxu0
  %v675 = vadd.f32 %v562, %v674
  %676 = vmatprep.mubr.f32.mxu0 0.0
  %677 = vmatmul.mubr.f32.gmra.mrb[0].mxu0 %v241
  %v678 = vpop.f32.mrb[0].mxu0
  %v679 = vadd.f32 %v566, %v678
  %v680 = vpop.f32.mrb[0].mxu0
  %v681 = vadd.f32 %v568, %v680
  %682 = vmatprep.mubr.f32.mxu0 0.0
  %683 = vmatmul.mubr.f32.gmra.mrb[0].mxu0 %v244
  %v684 = vpop.f32.mrb[0].mxu0
  %v685 = vadd.f32 %v572, %v684
  %v686 = vpop.f32.mrb[0].mxu0
  %v687 = vadd.f32 %v574, %v686
  %688 = vmatprep.mubr.f32.mxu0 0.0
  %689 = vmatmul.mubr.f32.gmra.mrb[0].mxu0 %v247
  %v690 = vpop.f32.mrb[0].mxu0
  %v691 = vadd.f32 %v578, %v690
  %v692 = vpop.f32.mrb[0].mxu0
  %v693 = vadd.f32 %v580, %v692
  %694 = vmatprep.mubr.f32.mxu0 0.0
  %695 = vmatmul.mubr.f32.gmra.mrb[0].mxu0 %v250
  %v696 = vpop.f32.mrb[0].mxu0
  %v697 = vadd.f32 %v584, %v696
  %v698 = vpop.f32.mrb[0].mxu0
  %v699 = vadd.f32 %v586, %v698
  %700 = vmatprep.mubr.f32.mxu0 0.0
  %701 = vmatmul.mubr.f32.gmra.mrb[0].mxu0 %v253
  %v702 = vpop.f32.mrb[0].mxu0
  %v703 = vadd.f32 %v590, %v702
  %v704 = vpop.f32.mrb[0].mxu0
  %v705 = vadd.f32 %v592, %v704
  %706 = vdwg.mxu0
  %v707 = vmax.f32 %v435, %v437
  %v708 = vmax.f32 %v441, %v443
  %v709 = vmax.f32 %v447, %v449
  %v710 = vmax.f32 %v453, %v455
  %v711 = vmax.f32 %v459, %v461
  %v712 = vmax.f32 %v465, %v467
  %v713 = vmax.f32 %v471, %v473
  %v714 = vmax.f32 %v477, %v479
  %v715 = vmax.f32 %v661, %v663
  %v716 = vmax.f32 %v667, %v669
  %v717 = vmax.f32 %v673, %v675
  %v718 = vmax.f32 %v679, %v681
  %v719 = vmax.f32 %v685, %v687
  %v720 = vmax.f32 %v691, %v693
  %v721 = vmax.f32 %v697, %v699
  %v722 = vmax.f32 %v703, %v705
  %v723 = vmax.f32 %v707, %v715
  %v724 = vmax.f32 %v708, %v716
  %v725 = vmax.f32 %v709, %v717
  %v726 = vmax.f32 %v710, %v718
  %v727 = vmax.f32 %v711, %v719
  %v728 = vmax.f32 %v712, %v720
  %v729 = vmax.f32 %v713, %v721
  %v730 = vmax.f32 %v714, %v722
  %v731 = vmax.f32 %v723, 0.0
  %v732 = vmax.f32 %v724, 0.0
  %v733 = vmax.f32 %v725, 0.0
  %v734 = vmax.f32 %v726, 0.0
  %v735 = vmax.f32 %v727, 0.0
  %v736 = vmax.f32 %v728, 0.0
  %v737 = vmax.f32 %v729, 0.0
  %v738 = vmax.f32 %v730, 0.0
  %739 = vst [vmem:[%s3] sm:$0xff] %v731
  %740 = vst [vmem:[%s3 + $0x8] sm:$0xff] %v732
  %741 = vst [vmem:[%s3 + $0x10] sm:$0xff] %v733
  %742 = vst [vmem:[%s3 + $0x18] sm:$0xff] %v734
  %743 = vst [vmem:[%s3 + $0x20] sm:$0xff] %v735
  %744 = vst [vmem:[%s3 + $0x28] sm:$0xff] %v736
  %745 = vst [vmem:[%s3 + $0x30] sm:$0xff] %v737
  %746 = vst [vmem:[%s3 + $0x38] sm:$0xff] %v738
  // Predicated region
  $region14: #{cnn_forward.4} parent=0 // pred_check
    _
  $region15: #{cnn_forward.4} parent=0 // pred_check_branch
    %748 = sbr.rel (0) target = $region17
  $region16: #{cnn_forward.4} parent=0 // pred_region
    _
  $region17: #{cnn_forward.4} parent=0 // pred_fallthru
    _
  // Predicated region
  $region18: #{cnn_forward.4} parent=0 // pred_check
    _
  $region19: #{cnn_forward.4} parent=0 // pred_check_branch
    %750 = sbr.rel (0) target = $region21
  $region20: #{cnn_forward.4} parent=0 // pred_region
    _
  $region21: #{cnn_forward.4} parent=0 // pred_fallthru
    _

// kernel: cnn_forward.5
$region0: #{cnn_forward.5}
  #allocation0 [shape = 'u32[]', space=smem, size = 0x4, offset = 0x4, fixed_abs, tag = 'smem constant byte address 0x4 - core index']
  #allocation1 [shape = 'u32[144,128]{1,0:T(1,128)}', space=vmem, size = 0x12000, scoped, tag = 'internal scratch']
  #allocation2 [shape = 'f32[2,512]{1,0:T(2,128)}', space=vmem, size = 0x1000, scoped, tag = 'scratch operand']
  %s0 = inlined_call_operand.vmem [shape: f32[2,4096], index: 0, kind: input, shape index: {}]
  %s1 = inlined_call_operand.vmem [shape: f32[4096,512], index: 1, kind: input, shape index: {}]
  %s2 = inlined_call_operand.vmem [shape: f32[1,512], index: 2, kind: input, shape index: {}]
  %s3 = inlined_call_operand.vmem [shape: f32[512,10], index: 3, kind: input, shape index: {}]
  %s4 = inlined_call_operand.vmem [shape: f32[1,10], index: 4, kind: input, shape index: {}]
  %s5 = inlined_call_operand.hbm [shape: f32[2,10], index: 5, kind: output, shape index: {}]
  %s6 = sld [smem:[#allocation0]]
  $region61: #{cnn_forward.5} parent=0
    _
  %s8 = ssub.s32 1, %s6
  %s9 = scalar_select 0, %s8, %s6
  $region1: #{cnn_forward.5} parent=0
    #allocation3 [shape = 'u8[1024]{0}', space=vmem, size = 0x400, scoped, tag = 'output window, operand 0, single buffered']
    #allocation4 [shape = 's32[2]{0}', space=sflag, size = 0x8, scoped, tag = 'scoped memory for cnn_forward.5']
    %10 = vsyncpa [#allocation4], 0
    loop: start=0, step=1, limit=4
    $region2: #{cnn_forward.5} parent=1 // loop_pre_header
      _
    $region3: #{cnn_forward.5} parent=1 // loop_header
      %s12 = sphi 0, %s16
      %p13 = scmp.ge.s32.totalorder %s12, 4
      %s22 = sphi 0, %s24
      %s25 = sphi 0, %s22
      %s26 = sphi 0, %s25
      %s42 = sphi 0, %s26
      %s48 = sphi 0, %s50
      %s51 = sphi 0, %s48
      %s52 = sphi 0, %s51
      %s68 = sphi 0, %s52
      %s72 = sphi 0, %s72
      %s74 = sphi 0, %s72
      %s75 = sphi 0, %s74
      %s89 = sphi 0, %s75
      %s93 = sphi 0, %s93
      %s95 = sphi 0, %s93
      %s96 = sphi 0, %s95
      %s110 = sphi 0, %s96
      %s114 = sphi 0, %s114
      %s116 = sphi 0, %s114
      %s117 = sphi 0, %s116
      %s131 = sphi 0, %s117
      %s135 = sphi 0, %s135
      %s137 = sphi 0, %s135
      %s138 = sphi 0, %s137
      %s152 = sphi 0, %s138
    $region4: #{cnn_forward.5} parent=1 // loop_header_branch
      %15 = sbr.rel (%p13) target = $region8
    $region5: #{cnn_forward.5} parent=1 // loop_body
      %s17 = ssub.s32 %s12, 1
      %s18 = ssub.s32 %s12, 2
      %s19 = sadd.s32 %s12, 1
      %s20 = ssub.s32 %s12, %s19
      %p21 = scmp.eq.s32.totalorder %s20, 0
      %s23 = sadd.s32 %s22, 1
      %s24 = scalar_select %p21, %s22, %s23
      %p27 = pneg %p21
      %p28 = scmp.eq.s32.totalorder %s12, 1
      %p29 = por %p27, %p28
      %p30 = scmp.ne.s32.totalorder %s22, %s25
      %p31 = scmp.eq.s32.totalorder %s12, 0
      %p32 = por %p30, %p31
      %p33 = scmp.ne.s32.totalorder %s22, %s25
      %p34 = scmp.eq.s32.totalorder %s17, 1
      %p35 = por %p33, %p34
      %p36 = scmp.ne.s32.totalorder %s25, %s26
      %p37 = scmp.eq.s32.totalorder %s17, 0
      %p38 = por %p36, %p37
      %p39 = scmp.ne.s32.totalorder %s25, %s26
      %p40 = scmp.eq.s32.totalorder %s18, 1
      %p41 = por %p39, %p40
      %p43 = scmp.ne.s32.totalorder %s26, %s42
      %p44 = scmp.eq.s32.totalorder %s18, 0
      %p45 = por %p43, %p44
      %s46 = ssub.s32 %s12, %s19
      %p47 = scmp.eq.s32.totalorder %s46, 0
      %s49 = sadd.s32 %s48, 1
      %s50 = scalar_select %p47, %s48, %s49
      %p53 = pneg %p47
      %p54 = scmp.eq.s32.totalorder %s12, 1
      %p55 = por %p53, %p54
      %p56 = scmp.ne.s32.totalorder %s48, %s51
      %p57 = scmp.eq.s32.totalorder %s12, 0
      %p58 = por %p56, %p57
      %p59 = scmp.ne.s32.totalorder %s48, %s51
      %p60 = scmp.eq.s32.totalorder %s17, 1
      %p61 = por %p59, %p60
      %p62 = scmp.ne.s32.totalorder %s51, %s52
      %p63 = scmp.eq.s32.totalorder %s17, 0
      %p64 = por %p62, %p63
      %p65 = scmp.ne.s32.totalorder %s51, %s52
      %p66 = scmp.eq.s32.totalorder %s18, 1
      %p67 = por %p65, %p66
      %p69 = scmp.ne.s32.totalorder %s52, %s68
      %p70 = scmp.eq.s32.totalorder %s18, 0
      %p71 = por %p69, %p70
      %s73 = sadd.s32 %s72, 1
      %p76 = scmp.eq.s32.totalorder %s12, 1
      %p77 = scmp.ne.s32.totalorder %s72, %s74
      %p78 = scmp.eq.s32.totalorder %s12, 0
      %p79 = por %p77, %p78
      %p80 = scmp.ne.s32.totalorder %s72, %s74
      %p81 = scmp.eq.s32.totalorder %s17, 1
      %p82 = por %p80, %p81
      %p83 = scmp.ne.s32.totalorder %s74, %s75
      %p84 = scmp.eq.s32.totalorder %s17, 0
      %p85 = por %p83, %p84
      %p86 = scmp.ne.s32.totalorder %s74, %s75
      %p87 = scmp.eq.s32.totalorder %s18, 1
      %p88 = por %p86, %p87
      %p90 = scmp.ne.s32.totalorder %s75, %s89
      %p91 = scmp.eq.s32.totalorder %s18, 0
      %p92 = por %p90, %p91
      %s94 = sadd.s32 %s93, 1
      %p97 = scmp.eq.s32.totalorder %s12, 1
      %p98 = scmp.ne.s32.totalorder %s93, %s95
      %p99 = scmp.eq.s32.totalorder %s12, 0
      %p100 = por %p98, %p99
      %p101 = scmp.ne.s32.totalorder %s93, %s95
      %p102 = scmp.eq.s32.totalorder %s17, 1
      %p103 = por %p101, %p102
      %p104 = scmp.ne.s32.totalorder %s95, %s96
      %p105 = scmp.eq.s32.totalorder %s17, 0
      %p106 = por %p104, %p105
      %p107 = scmp.ne.s32.totalorder %s95, %s96
      %p108 = scmp.eq.s32.totalorder %s18, 1
      %p109 = por %p107, %p108
      %p111 = scmp.ne.s32.totalorder %s96, %s110
      %p112 = scmp.eq.s32.totalorder %s18, 0
      %p113 = por %p111, %p112
      %s115 = sadd.s32 %s114, 1
      %p118 = scmp.eq.s32.totalorder %s12, 1
      %p119 = scmp.ne.s32.totalorder %s114, %s116
      %p120 = scmp.eq.s32.totalorder %s12, 0
      %p121 = por %p119, %p120
      %p122 = scmp.ne.s32.totalorder %s114, %s116
      %p123 = scmp.eq.s32.totalorder %s17, 1
      %p124 = por %p122, %p123
      %p125 = scmp.ne.s32.totalorder %s116, %s117
      %p126 = scmp.eq.s32.totalorder %s17, 0
      %p127 = por %p125, %p126
      %p128 = scmp.ne.s32.totalorder %s116, %s117
      %p129 = scmp.eq.s32.totalorder %s18, 1
      %p130 = por %p128, %p129
      %p132 = scmp.ne.s32.totalorder %s117, %s131
      %p133 = scmp.eq.s32.totalorder %s18, 0
      %p134 = por %p132, %p133
      %s136 = sadd.s32 %s135, 1
      %p139 = scmp.eq.s32.totalorder %s12, 1
      %p140 = scmp.ne.s32.totalorder %s135, %s137
      %p141 = scmp.eq.s32.totalorder %s12, 0
      %p142 = por %p140, %p141
      %p143 = scmp.ne.s32.totalorder %s135, %s137
      %p144 = scmp.eq.s32.totalorder %s17, 1
      %p145 = por %p143, %p144
      %p146 = scmp.ne.s32.totalorder %s137, %s138
      %p147 = scmp.eq.s32.totalorder %s17, 0
      %p148 = por %p146, %p147
      %p149 = scmp.ne.s32.totalorder %s137, %s138
      %p150 = scmp.eq.s32.totalorder %s18, 1
      %p151 = por %p149, %p150
      %p153 = scmp.ne.s32.totalorder %s138, %s152
      %p154 = scmp.eq.s32.totalorder %s18, 0
      %p155 = por %p153, %p154
      %p156 = scmp.le.s32.totalorder 1, %s12
      %p157 = scmp.lt.s32.totalorder %s12, 3
      %p158 = pnand %p156, %p157
      %p159 = pneg %p158
      // Predicated region
      $region9: #{cnn_forward.5} parent=5 // pred_check
        _
      $region10: #{cnn_forward.5} parent=5 // pred_check_branch
        %161 = sbr.rel (%p158) target = $region12
      $region11: #{cnn_forward.5} parent=5 // pred_region
        %s162 = ssub.s32 %s12, 1
        // Predicated region
        $region13: #{cnn_forward.5} parent=11 // pred_check
          %p163 = pneg %p85
        $region14: #{cnn_forward.5} parent=11 // pred_check_branch
          %165 = sbr.rel (%p163) target = $region16
        $region15: #{cnn_forward.5} parent=11 // pred_region
          _
        $region16: #{cnn_forward.5} parent=11 // pred_fallthru
          _
        // Predicated region
        $region17: #{cnn_forward.5} parent=11 // pred_check
          %p166 = pneg %p106
        $region18: #{cnn_forward.5} parent=11 // pred_check_branch
          %168 = sbr.rel (%p166) target = $region20
        $region19: #{cnn_forward.5} parent=11 // pred_region
          _
        $region20: #{cnn_forward.5} parent=11 // pred_fallthru
          _
        // Predicated region
        $region21: #{cnn_forward.5} parent=11 // pred_check
          %p169 = pneg %p127
        $region22: #{cnn_forward.5} parent=11 // pred_check_branch
          %171 = sbr.rel (%p169) target = $region24
        $region23: #{cnn_forward.5} parent=11 // pred_region
          _
        $region24: #{cnn_forward.5} parent=11 // pred_fallthru
          _
      $region12: #{cnn_forward.5} parent=5 // pred_fallthru
        _
      %p172 = scmp.lt.s32.totalorder %s12, 2
      // Predicated region
      $region25: #{cnn_forward.5} parent=5 // pred_check
        %p173 = pneg %p172
      $region26: #{cnn_forward.5} parent=5 // pred_check_branch
        %175 = sbr.rel (%p173) target = $region28
      $region27: #{cnn_forward.5} parent=5 // pred_region
        // Predicated region
        $region29: #{cnn_forward.5} parent=27 // pred_check
          %p176 = pneg %p32
        $region30: #{cnn_forward.5} parent=27 // pred_check_branch
          %178 = sbr.rel (%p176) target = $region32
        $region31: #{cnn_forward.5} parent=27 // pred_region
          %s179 = smul.u32 16, %s12
          %p180 = scmp.lt.s32.totalorder %s179, 31
          %s181 = scalar_select %p180, %s179, 31
          %s182 = smul.addr %s181, 2
          %s183 = scalar_lea.vmem %s0, %s182
          %s184 = smul.u32 16, %s12
        $region32: #{cnn_forward.5} parent=27 // pred_fallthru
          _
        // Predicated region
        $region33: #{cnn_forward.5} parent=27 // pred_check
          %p185 = pneg %p58
        $region34: #{cnn_forward.5} parent=27 // pred_check_branch
          %187 = sbr.rel (%p185) target = $region36
        $region35: #{cnn_forward.5} parent=27 // pred_region
          %s188 = smul.u32 256, %s12
          %p189 = scmp.lt.s32.totalorder %s188, 511
          %s190 = scalar_select %p189, %s188, 511
          %s191 = smul.addr %s190, 4
          %s192 = smul.addr %s191, 8
          %s193 = scalar_lea.vmem %s1, %s192
          %s194 = smul.u32 256, %s12
        $region36: #{cnn_forward.5} parent=27 // pred_fallthru
          _
      $region28: #{cnn_forward.5} parent=5 // pred_fallthru
        _
      %p195 = scmp.le.s32.totalorder 1, %s12
      %p196 = scmp.lt.s32.totalorder %s12, 3
      %p197 = pnand %p195, %p196
      %p198 = pneg %p197
      // Predicated region
      $region37: #{cnn_forward.5} parent=5 // pred_check
        _
      $region38: #{cnn_forward.5} parent=5 // pred_check_branch
        %200 = sbr.rel (%p197) target = $region40
      $region39: #{cnn_forward.5} parent=5 // pred_region
        %s201 = ssub.s32 %s12, 1
        %s202 = smul.u32 16, %s17
        %p203 = scmp.lt.s32.totalorder %s202, 31
        %s204 = scalar_select %p203, %s202, 31
        %s205 = smul.addr %s204, 2
        %s206 = scalar_lea.vmem %s0, %s205
        %p207 = pneg %p38
        %p208 = pneg %p35
        %s209 = smul.u32 256, %s17
        %p210 = scmp.lt.s32.totalorder %s209, 511
        %s211 = scalar_select %p210, %s209, 511
        %s212 = smul.addr %s211, 4
        %s213 = smul.addr %s212, 8
        %s214 = scalar_lea.vmem %s1, %s213
        %p215 = pneg %p64
        %p216 = pneg %p61
        %p217 = pneg %p85
        %p218 = pneg %p82
        %p219 = pneg %p106
        %p220 = pneg %p103
        %p221 = pneg %p127
        %p222 = pneg %p124
        %p223 = pneg %p148
        %p224 = pneg %p145
        %s225 = smul.u32 16, %s17
        %p226 = scmp.lt.s32.totalorder %s225, 31
        %s227 = scalar_select %p226, %s225, 31
        %s228 = smul.addr %s227, 2
        %s229 = scalar_lea.vmem %s0, %s228
        %s230 = smul.u32 16, %s17
        %s231 = smul.u32 256, %s17
        %p232 = scmp.lt.s32.totalorder %s231, 511
        %s233 = scalar_select %p232, %s231, 511
        %s234 = smul.addr %s233, 4
        %s235 = smul.addr %s234, 8
        %s236 = scalar_lea.vmem %s1, %s235
        %s237 = smul.u32 256, %s17
        %p238 = scmp.eq.s32.totalorder %s17, 0
        // Predicated region
        $region41: #{cnn_forward.5} parent=39 // pred_check
          %p239 = pneg %p238
        $region42: #{cnn_forward.5} parent=39 // pred_check_branch
          %241 = sbr.rel (%p239) target = $region44
        $region43: #{cnn_forward.5} parent=39 // pred_region
          %v242 = vld [vmem:[%s2] sm:$0xf]
          %v244 = vlaneseq
          %v245 = vshrl.u32 %v244, 7
          %v246 = vsub.s32 0, %v245
          %v247 = vrot.slane %v242, %v246
          %v248 = vlaneseq
          %v249 = vshrl.u32 %v248, 7
          %v250 = vsub.s32 1, %v249
          %v251 = vrot.slane %v242, %v250
          %v252 = vlaneseq
          %v253 = vshrl.u32 %v252, 7
          %v254 = vsub.s32 2, %v253
          %v255 = vrot.slane %v242, %v254
          %v256 = vlaneseq
          %v257 = vshrl.u32 %v256, 7
          %v258 = vsub.s32 3, %v257
          %v259 = vrot.slane %v242, %v258
          %v260 = vcombine.low %v247, %v251
          %v261 = vcombine.low %v255, %v259
          %v263 = vunpack.c.l.s4 1983009808
          %v264 = vunpack.c.0.s8 %v263
          %v265 = vlaneseq
          %v266 = vshrl.u32 %v265, 7
          %v267 = vsub.s32 %v264, %v266
          %v268 = vrot.slane %v260, %v267
          %v270 = vunpack.c.l.s4 1983009808
          %v271 = vunpack.c.0.s8 %v270
          %v272 = vlaneseq
          %v273 = vshrl.u32 %v272, 7
          %v274 = vsub.s32 %v271, %v273
          %v275 = vrot.slane %v261, %v274
          %v276 = vcombine.low %v268, %v275
          %278 = vst [vmem:[#allocation2] sm:$0xff] %v276
        $region44: #{cnn_forward.5} parent=39 // pred_fallthru
          _
        %v279 = vld [vmem:[#allocation2] sm:$0xff]
        %v280 = vld [vmem:[%s229] sm:$0xff]
        %v281 = vld [vmem:[%s229 + $0x8] sm:$0xff]
        %v282 = vld [vmem:[%s229 + $0x10] sm:$0xff]
        %v283 = vld [vmem:[%s229 + $0x18] sm:$0xff]
        %v284 = vld [vmem:[%s236] sm:$0xff]
        %v285 = vld [vmem:[%s236 + $0x8] sm:$0xff]
        %v286 = vld [vmem:[%s236 + $0x10] sm:$0xff]
        %v287 = vld [vmem:[%s236 + $0x18] sm:$0xff]
        %v288 = vld [vmem:[%s236 + $0x20] sm:$0xff]
        %v289 = vld [vmem:[%s236 + $0x28] sm:$0xff]
        %v290 = vld [vmem:[%s236 + $0x30] sm:$0xff]
        %v291 = vld [vmem:[%s236 + $0x38] sm:$0xff]
        %v292 = vld [vmem:[%s236 + $0x40] sm:$0xff]
        %v293 = vld [vmem:[%s236 + $0x48] sm:$0xff]
        %v294 = vld [vmem:[%s236 + $0x50] sm:$0xff]
        %v295 = vld [vmem:[%s236 + $0x58] sm:$0xff]
        %v296 = vld [vmem:[%s236 + $0x60] sm:$0xff]
        %v297 = vld [vmem:[%s236 + $0x68] sm:$0xff]
        %v298 = vld [vmem:[%s236 + $0x70] sm:$0xff]
        %v299 = vld [vmem:[%s236 + $0x78] sm:$0xff]
        %v300 = vld [vmem:[%s236 + $0x80] sm:$0xff]
        %v301 = vld [vmem:[%s236 + $0x88] sm:$0xff]
        %v302 = vld [vmem:[%s236 + $0x90] sm:$0xff]
        %v303 = vld [vmem:[%s236 + $0x98] sm:$0xff]
        %v304 = vld [vmem:[%s236 + $0xa0] sm:$0xff]
        %v305 = vld [vmem:[%s236 + $0xa8] sm:$0xff]
        %v306 = vld [vmem:[%s236 + $0xb0] sm:$0xff]
        %v307 = vld [vmem:[%s236 + $0xb8] sm:$0xff]
        %v308 = vld [vmem:[%s236 + $0xc0] sm:$0xff]
        %v309 = vld [vmem:[%s236 + $0xc8] sm:$0xff]
        %v310 = vld [vmem:[%s236 + $0xd0] sm:$0xff]
        %v311 = vld [vmem:[%s236 + $0xd8] sm:$0xff]
        %v312 = vld [vmem:[%s236 + $0xe0] sm:$0xff]
        %v313 = vld [vmem:[%s236 + $0xe8] sm:$0xff]
        %v314 = vld [vmem:[%s236 + $0xf0] sm:$0xff]
        %v315 = vld [vmem:[%s236 + $0xf8] sm:$0xff]
        %v316 = vld [vmem:[%s236 + $0x100] sm:$0xff]
        %v317 = vld [vmem:[%s236 + $0x108] sm:$0xff]
        %v318 = vld [vmem:[%s236 + $0x110] sm:$0xff]
        %v319 = vld [vmem:[%s236 + $0x118] sm:$0xff]
        %v320 = vld [vmem:[%s236 + $0x120] sm:$0xff]
        %v321 = vld [vmem:[%s236 + $0x128] sm:$0xff]
        %v322 = vld [vmem:[%s236 + $0x130] sm:$0xff]
        %v323 = vld [vmem:[%s236 + $0x138] sm:$0xff]
        %v324 = vld [vmem:[%s236 + $0x140] sm:$0xff]
        %v325 = vld [vmem:[%s236 + $0x148] sm:$0xff]
        %v326 = vld [vmem:[%s236 + $0x150] sm:$0xff]
        %v327 = vld [vmem:[%s236 + $0x158] sm:$0xff]
        %v328 = vld [vmem:[%s236 + $0x160] sm:$0xff]
        %v329 = vld [vmem:[%s236 + $0x168] sm:$0xff]
        %v330 = vld [vmem:[%s236 + $0x170] sm:$0xff]
        %v331 = vld [vmem:[%s236 + $0x178] sm:$0xff]
        %v332 = vld [vmem:[%s236 + $0x180] sm:$0xff]
        %v333 = vld [vmem:[%s236 + $0x188] sm:$0xff]
        %v334 = vld [vmem:[%s236 + $0x190] sm:$0xff]
        %v335 = vld [vmem:[%s236 + $0x198] sm:$0xff]
        %v336 = vld [vmem:[%s236 + $0x1a0] sm:$0xff]
        %v337 = vld [vmem:[%s236 + $0x1a8] sm:$0xff]
        %v338 = vld [vmem:[%s236 + $0x1b0] sm:$0xff]
        %v339 = vld [vmem:[%s236 + $0x1b8] sm:$0xff]
        %v340 = vld [vmem:[%s236 + $0x1c0] sm:$0xff]
        %v341 = vld [vmem:[%s236 + $0x1c8] sm:$0xff]
        %v342 = vld [vmem:[%s236 + $0x1d0] sm:$0xff]
        %v343 = vld [vmem:[%s236 + $0x1d8] sm:$0xff]
        %v344 = vld [vmem:[%s236 + $0x1e0] sm:$0xff]
        %v345 = vld [vmem:[%s236 + $0x1e8] sm:$0xff]
        %v346 = vld [vmem:[%s236 + $0x1f0] sm:$0xff]
        %v347 = vld [vmem:[%s236 + $0x1f8] sm:$0xff]
        %v348 = vld [vmem:[%s236 + $0x200] sm:$0xff]
        %v349 = vld [vmem:[%s236 + $0x208] sm:$0xff]
        %v350 = vld [vmem:[%s236 + $0x210] sm:$0xff]
        %v351 = vld [vmem:[%s236 + $0x218] sm:$0xff]
        %v352 = vld [vmem:[%s236 + $0x220] sm:$0xff]
        %v353 = vld [vmem:[%s236 + $0x228] sm:$0xff]
        %v354 = vld [vmem:[%s236 + $0x230] sm:$0xff]
        %v355 = vld [vmem:[%s236 + $0x238] sm:$0xff]
        %v356 = vld [vmem:[%s236 + $0x240] sm:$0xff]
        %v357 = vld [vmem:[%s236 + $0x248] sm:$0xff]
        %v358 = vld [vmem:[%s236 + $0x250] sm:$0xff]
        %v359 = vld [vmem:[%s236 + $0x258] sm:$0xff]
        %v360 = vld [vmem:[%s236 + $0x260] sm:$0xff]
        %v361 = vld [vmem:[%s236 + $0x268] sm:$0xff]
        %v362 = vld [vmem:[%s236 + $0x270] sm:$0xff]
        %v363 = vld [vmem:[%s236 + $0x278] sm:$0xff]
        %v364 = vld [vmem:[%s236 + $0x280] sm:$0xff]
        %v365 = vld [vmem:[%s236 + $0x288] sm:$0xff]
        %v366 = vld [vmem:[%s236 + $0x290] sm:$0xff]
        %v367 = vld [vmem:[%s236 + $0x298] sm:$0xff]
        %v368 = vld [vmem:[%s236 + $0x2a0] sm:$0xff]
        %v369 = vld [vmem:[%s236 + $0x2a8] sm:$0xff]
        %v370 = vld [vmem:[%s236 + $0x2b0] sm:$0xff]
        %v371 = vld [vmem:[%s236 + $0x2b8] sm:$0xff]
        %v372 = vld [vmem:[%s236 + $0x2c0] sm:$0xff]
        %v373 = vld [vmem:[%s236 + $0x2c8] sm:$0xff]
        %v374 = vld [vmem:[%s236 + $0x2d0] sm:$0xff]
        %v375 = vld [vmem:[%s236 + $0x2d8] sm:$0xff]
        %v376 = vld [vmem:[%s236 + $0x2e0] sm:$0xff]
        %v377 = vld [vmem:[%s236 + $0x2e8] sm:$0xff]
        %v378 = vld [vmem:[%s236 + $0x2f0] sm:$0xff]
        %v379 = vld [vmem:[%s236 + $0x2f8] sm:$0xff]
        %v380 = vld [vmem:[%s236 + $0x300] sm:$0xff]
        %v381 = vld [vmem:[%s236 + $0x308] sm:$0xff]
        %v382 = vld [vmem:[%s236 + $0x310] sm:$0xff]
        %v383 = vld [vmem:[%s236 + $0x318] sm:$0xff]
        %v384 = vld [vmem:[%s236 + $0x320] sm:$0xff]
        %v385 = vld [vmem:[%s236 + $0x328] sm:$0xff]
        %v386 = vld [vmem:[%s236 + $0x330] sm:$0xff]
        %v387 = vld [vmem:[%s236 + $0x338] sm:$0xff]
        %v388 = vld [vmem:[%s236 + $0x340] sm:$0xff]
        %v389 = vld [vmem:[%s236 + $0x348] sm:$0xff]
        %v390 = vld [vmem:[%s236 + $0x350] sm:$0xff]
        %v391 = vld [vmem:[%s236 + $0x358] sm:$0xff]
        %v392 = vld [vmem:[%s236 + $0x360] sm:$0xff]
        %v393 = vld [vmem:[%s236 + $0x368] sm:$0xff]
        %v394 = vld [vmem:[%s236 + $0x370] sm:$0xff]
        %v395 = vld [vmem:[%s236 + $0x378] sm:$0xff]
        %v396 = vld [vmem:[%s236 + $0x380] sm:$0xff]
        %v397 = vld [vmem:[%s236 + $0x388] sm:$0xff]
        %v398 = vld [vmem:[%s236 + $0x390] sm:$0xff]
        %v399 = vld [vmem:[%s236 + $0x398] sm:$0xff]
        %v400 = vld [vmem:[%s236 + $0x3a0] sm:$0xff]
        %v401 = vld [vmem:[%s236 + $0x3a8] sm:$0xff]
        %v402 = vld [vmem:[%s236 + $0x3b0] sm:$0xff]
        %v403 = vld [vmem:[%s236 + $0x3b8] sm:$0xff]
        %v404 = vld [vmem:[%s236 + $0x3c0] sm:$0xff]
        %v405 = vld [vmem:[%s236 + $0x3c8] sm:$0xff]
        %v406 = vld [vmem:[%s236 + $0x3d0] sm:$0xff]
        %v407 = vld [vmem:[%s236 + $0x3d8] sm:$0xff]
        %v408 = vld [vmem:[%s236 + $0x3e0] sm:$0xff]
        %v409 = vld [vmem:[%s236 + $0x3e8] sm:$0xff]
        %v410 = vld [vmem:[%s236 + $0x3f0] sm:$0xff]
        %v411 = vld [vmem:[%s236 + $0x3f8] sm:$0xff]
        %v412 = vld [vmem:[%s236 + $0x400] sm:$0xff]
        %v413 = vld [vmem:[%s236 + $0x408] sm:$0xff]
        %v414 = vld [vmem:[%s236 + $0x410] sm:$0xff]
        %v415 = vld [vmem:[%s236 + $0x418] sm:$0xff]
        %v416 = vld [vmem:[%s236 + $0x420] sm:$0xff]
        %v417 = vld [vmem:[%s236 + $0x428] sm:$0xff]
        %v418 = vld [vmem:[%s236 + $0x430] sm:$0xff]
        %v419 = vld [vmem:[%s236 + $0x438] sm:$0xff]
        %v420 = vld [vmem:[%s236 + $0x440] sm:$0xff]
        %v421 = vld [vmem:[%s236 + $0x448] sm:$0xff]
        %v422 = vld [vmem:[%s236 + $0x450] sm:$0xff]
        %v423 = vld [vmem:[%s236 + $0x458] sm:$0xff]
        %v424 = vld [vmem:[%s236 + $0x460] sm:$0xff]
        %v425 = vld [vmem:[%s236 + $0x468] sm:$0xff]
        %v426 = vld [vmem:[%s236 + $0x470] sm:$0xff]
        %v427 = vld [vmem:[%s236 + $0x478] sm:$0xff]
        %v428 = vld [vmem:[%s236 + $0x480] sm:$0xff]
        %v429 = vld [vmem:[%s236 + $0x488] sm:$0xff]
        %v430 = vld [vmem:[%s236 + $0x490] sm:$0xff]
        %v431 = vld [vmem:[%s236 + $0x498] sm:$0xff]
        %v432 = vld [vmem:[%s236 + $0x4a0] sm:$0xff]
        %v433 = vld [vmem:[%s236 + $0x4a8] sm:$0xff]
        %v434 = vld [vmem:[%s236 + $0x4b0] sm:$0xff]
        %v435 = vld [vmem:[%s236 + $0x4b8] sm:$0xff]
        %v436 = vld [vmem:[%s236 + $0x4c0] sm:$0xff]
        %v437 = vld [vmem:[%s236 + $0x4c8] sm:$0xff]
        %v438 = vld [vmem:[%s236 + $0x4d0] sm:$0xff]
        %v439 = vld [vmem:[%s236 + $0x4d8] sm:$0xff]
        %v440 = vld [vmem:[%s236 + $0x4e0] sm:$0xff]
        %v441 = vld [vmem:[%s236 + $0x4e8] sm:$0xff]
        %v442 = vld [vmem:[%s236 + $0x4f0] sm:$0xff]
        %v443 = vld [vmem:[%s236 + $0x4f8] sm:$0xff]
        %v444 = vld [vmem:[%s236 + $0x500] sm:$0xff]
        %v445 = vld [vmem:[%s236 + $0x508] sm:$0xff]
        %v446 = vld [vmem:[%s236 + $0x510] sm:$0xff]
        %v447 = vld [vmem:[%s236 + $0x518] sm:$0xff]
        %v448 = vld [vmem:[%s236 + $0x520] sm:$0xff]
        %v449 = vld [vmem:[%s236 + $0x528] sm:$0xff]
        %v450 = vld [vmem:[%s236 + $0x530] sm:$0xff]
        %v451 = vld [vmem:[%s236 + $0x538] sm:$0xff]
        %v452 = vld [vmem:[%s236 + $0x540] sm:$0xff]
        %v453 = vld [vmem:[%s236 + $0x548] sm:$0xff]
        %v454 = vld [vmem:[%s236 + $0x550] sm:$0xff]
        %v455 = vld [vmem:[%s236 + $0x558] sm:$0xff]
        %v456 = vld [vmem:[%s236 + $0x560] sm:$0xff]
        %v457 = vld [vmem:[%s236 + $0x568] sm:$0xff]
        %v458 = vld [vmem:[%s236 + $0x570] sm:$0xff]
        %v459 = vld [vmem:[%s236 + $0x578] sm:$0xff]
        %v460 = vld [vmem:[%s236 + $0x580] sm:$0xff]
        %v461 = vld [vmem:[%s236 + $0x588] sm:$0xff]
        %v462 = vld [vmem:[%s236 + $0x590] sm:$0xff]
        %v463 = vld [vmem:[%s236 + $0x598] sm:$0xff]
        %v464 = vld [vmem:[%s236 + $0x5a0] sm:$0xff]
        %v465 = vld [vmem:[%s236 + $0x5a8] sm:$0xff]
        %v466 = vld [vmem:[%s236 + $0x5b0] sm:$0xff]
        %v467 = vld [vmem:[%s236 + $0x5b8] sm:$0xff]
        %v468 = vld [vmem:[%s236 + $0x5c0] sm:$0xff]
        %v469 = vld [vmem:[%s236 + $0x5c8] sm:$0xff]
        %v470 = vld [vmem:[%s236 + $0x5d0] sm:$0xff]
        %v471 = vld [vmem:[%s236 + $0x5d8] sm:$0xff]
        %v472 = vld [vmem:[%s236 + $0x5e0] sm:$0xff]
        %v473 = vld [vmem:[%s236 + $0x5e8] sm:$0xff]
        %v474 = vld [vmem:[%s236 + $0x5f0] sm:$0xff]
        %v475 = vld [vmem:[%s236 + $0x5f8] sm:$0xff]
        %v476 = vld [vmem:[%s236 + $0x600] sm:$0xff]
        %v477 = vld [vmem:[%s236 + $0x608] sm:$0xff]
        %v478 = vld [vmem:[%s236 + $0x610] sm:$0xff]
        %v479 = vld [vmem:[%s236 + $0x618] sm:$0xff]
        %v480 = vld [vmem:[%s236 + $0x620] sm:$0xff]
        %v481 = vld [vmem:[%s236 + $0x628] sm:$0xff]
        %v482 = vld [vmem:[%s236 + $0x630] sm:$0xff]
        %v483 = vld [vmem:[%s236 + $0x638] sm:$0xff]
        %v484 = vld [vmem:[%s236 + $0x640] sm:$0xff]
        %v485 = vld [vmem:[%s236 + $0x648] sm:$0xff]
        %v486 = vld [vmem:[%s236 + $0x650] sm:$0xff]
        %v487 = vld [vmem:[%s236 + $0x658] sm:$0xff]
        %v488 = vld [vmem:[%s236 + $0x660] sm:$0xff]
        %v489 = vld [vmem:[%s236 + $0x668] sm:$0xff]
        %v490 = vld [vmem:[%s236 + $0x670] sm:$0xff]
        %v491 = vld [vmem:[%s236 + $0x678] sm:$0xff]
        %v492 = vld [vmem:[%s236 + $0x680] sm:$0xff]
        %v493 = vld [vmem:[%s236 + $0x688] sm:$0xff]
        %v494 = vld [vmem:[%s236 + $0x690] sm:$0xff]
        %v495 = vld [vmem:[%s236 + $0x698] sm:$0xff]
        %v496 = vld [vmem:[%s236 + $0x6a0] sm:$0xff]
        %v497 = vld [vmem:[%s236 + $0x6a8] sm:$0xff]
        %v498 = vld [vmem:[%s236 + $0x6b0] sm:$0xff]
        %v499 = vld [vmem:[%s236 + $0x6b8] sm:$0xff]
        %v500 = vld [vmem:[%s236 + $0x6c0] sm:$0xff]
        %v501 = vld [vmem:[%s236 + $0x6c8] sm:$0xff]
        %v502 = vld [vmem:[%s236 + $0x6d0] sm:$0xff]
        %v503 = vld [vmem:[%s236 + $0x6d8] sm:$0xff]
        %v504 = vld [vmem:[%s236 + $0x6e0] sm:$0xff]
        %v505 = vld [vmem:[%s236 + $0x6e8] sm:$0xff]
        %v506 = vld [vmem:[%s236 + $0x6f0] sm:$0xff]
        %v507 = vld [vmem:[%s236 + $0x6f8] sm:$0xff]
        %v508 = vld [vmem:[%s236 + $0x700] sm:$0xff]
        %v509 = vld [vmem:[%s236 + $0x708] sm:$0xff]
        %v510 = vld [vmem:[%s236 + $0x710] sm:$0xff]
        %v511 = vld [vmem:[%s236 + $0x718] sm:$0xff]
        %v512 = vld [vmem:[%s236 + $0x720] sm:$0xff]
        %v513 = vld [vmem:[%s236 + $0x728] sm:$0xff]
        %v514 = vld [vmem:[%s236 + $0x730] sm:$0xff]
        %v515 = vld [vmem:[%s236 + $0x738] sm:$0xff]
        %v516 = vld [vmem:[%s236 + $0x740] sm:$0xff]
        %v517 = vld [vmem:[%s236 + $0x748] sm:$0xff]
        %v518 = vld [vmem:[%s236 + $0x750] sm:$0xff]
        %v519 = vld [vmem:[%s236 + $0x758] sm:$0xff]
        %v520 = vld [vmem:[%s236 + $0x760] sm:$0xff]
        %v521 = vld [vmem:[%s236 + $0x768] sm:$0xff]
        %v522 = vld [vmem:[%s236 + $0x770] sm:$0xff]
        %v523 = vld [vmem:[%s236 + $0x778] sm:$0xff]
        %v524 = vld [vmem:[%s236 + $0x780] sm:$0xff]
        %v525 = vld [vmem:[%s236 + $0x788] sm:$0xff]
        %v526 = vld [vmem:[%s236 + $0x790] sm:$0xff]
        %v527 = vld [vmem:[%s236 + $0x798] sm:$0xff]
        %v528 = vld [vmem:[%s236 + $0x7a0] sm:$0xff]
        %v529 = vld [vmem:[%s236 + $0x7a8] sm:$0xff]
        %v530 = vld [vmem:[%s236 + $0x7b0] sm:$0xff]
        %v531 = vld [vmem:[%s236 + $0x7b8] sm:$0xff]
        %v532 = vld [vmem:[%s236 + $0x7c0] sm:$0xff]
        %v533 = vld [vmem:[%s236 + $0x7c8] sm:$0xff]
        %v534 = vld [vmem:[%s236 + $0x7d0] sm:$0xff]
        %v535 = vld [vmem:[%s236 + $0x7d8] sm:$0xff]
        %v536 = vld [vmem:[%s236 + $0x7e0] sm:$0xff]
        %v537 = vld [vmem:[%s236 + $0x7e8] sm:$0xff]
        %v538 = vld [vmem:[%s236 + $0x7f0] sm:$0xff]
        %v539 = vld [vmem:[%s236 + $0x7f8] sm:$0xff]
        %v540 = vld [vmem:[%s236 + $0x800] sm:$0xff]
        %v541 = vld [vmem:[%s236 + $0x808] sm:$0xff]
        %v542 = vld [vmem:[%s236 + $0x810] sm:$0xff]
        %v543 = vld [vmem:[%s236 + $0x818] sm:$0xff]
        %v544 = vld [vmem:[%s236 + $0x820] sm:$0xff]
        %v545 = vld [vmem:[%s236 + $0x828] sm:$0xff]
        %v546 = vld [vmem:[%s236 + $0x830] sm:$0xff]
        %v547 = vld [vmem:[%s236 + $0x838] sm:$0xff]
        %v548 = vld [vmem:[%s236 + $0x840] sm:$0xff]
        %v549 = vld [vmem:[%s236 + $0x848] sm:$0xff]
        %v550 = vld [vmem:[%s236 + $0x850] sm:$0xff]
        %v551 = vld [vmem:[%s236 + $0x858] sm:$0xff]
        %v552 = vld [vmem:[%s236 + $0x860] sm:$0xff]
        %v553 = vld [vmem:[%s236 + $0x868] sm:$0xff]
        %v554 = vld [vmem:[%s236 + $0x870] sm:$0xff]
        %v555 = vld [vmem:[%s236 + $0x878] sm:$0xff]
        %v556 = vld [vmem:[%s236 + $0x880] sm:$0xff]
        %v557 = vld [vmem:[%s236 + $0x888] sm:$0xff]
        %v558 = vld [vmem:[%s236 + $0x890] sm:$0xff]
        %v559 = vld [vmem:[%s236 + $0x898] sm:$0xff]
        %v560 = vld [vmem:[%s236 + $0x8a0] sm:$0xff]
        %v561 = vld [vmem:[%s236 + $0x8a8] sm:$0xff]
        %v562 = vld [vmem:[%s236 + $0x8b0] sm:$0xff]
        %v563 = vld [vmem:[%s236 + $0x8b8] sm:$0xff]
        %v564 = vld [vmem:[%s236 + $0x8c0] sm:$0xff]
        %v565 = vld [vmem:[%s236 + $0x8c8] sm:$0xff]
        %v566 = vld [vmem:[%s236 + $0x8d0] sm:$0xff]
        %v567 = vld [vmem:[%s236 + $0x8d8] sm:$0xff]
        %v568 = vld [vmem:[%s236 + $0x8e0] sm:$0xff]
        %v569 = vld [vmem:[%s236 + $0x8e8] sm:$0xff]
        %v570 = vld [vmem:[%s236 + $0x8f0] sm:$0xff]
        %v571 = vld [vmem:[%s236 + $0x8f8] sm:$0xff]
        %v572 = vld [vmem:[%s236 + $0x900] sm:$0xff]
        %v573 = vld [vmem:[%s236 + $0x908] sm:$0xff]
        %v574 = vld [vmem:[%s236 + $0x910] sm:$0xff]
        %v575 = vld [vmem:[%s236 + $0x918] sm:$0xff]
        %v576 = vld [vmem:[%s236 + $0x920] sm:$0xff]
        %v577 = vld [vmem:[%s236 + $0x928] sm:$0xff]
        %v578 = vld [vmem:[%s236 + $0x930] sm:$0xff]
        %v579 = vld [vmem:[%s236 + $0x938] sm:$0xff]
        %v580 = vld [vmem:[%s236 + $0x940] sm:$0xff]
        %v581 = vld [vmem:[%s236 + $0x948] sm:$0xff]
        %v582 = vld [vmem:[%s236 + $0x950] sm:$0xff]
        %v583 = vld [vmem:[%s236 + $0x958] sm:$0xff]
        %v584 = vld [vmem:[%s236 + $0x960] sm:$0xff]
        %v585 = vld [vmem:[%s236 + $0x968] sm:$0xff]
        %v586 = vld [vmem:[%s236 + $0x970] sm:$0xff]
        %v587 = vld [vmem:[%s236 + $0x978] sm:$0xff]
        %v588 = vld [vmem:[%s236 + $0x980] sm:$0xff]
        %v589 = vld [vmem:[%s236 + $0x988] sm:$0xff]
        %v590 = vld [vmem:[%s236 + $0x990] sm:$0xff]
        %v591 = vld [vmem:[%s236 + $0x998] sm:$0xff]
        %v592 = vld [vmem:[%s236 + $0x9a0] sm:$0xff]
        %v593 = vld [vmem:[%s236 + $0x9a8] sm:$0xff]
        %v594 = vld [vmem:[%s236 + $0x9b0] sm:$0xff]
        %v595 = vld [vmem:[%s236 + $0x9b8] sm:$0xff]
        %v596 = vld [vmem:[%s236 + $0x9c0] sm:$0xff]
        %v597 = vld [vmem:[%s236 + $0x9c8] sm:$0xff]
        %v598 = vld [vmem:[%s236 + $0x9d0] sm:$0xff]
        %v599 = vld [vmem:[%s236 + $0x9d8] sm:$0xff]
        %v600 = vld [vmem:[%s236 + $0x9e0] sm:$0xff]
        %v601 = vld [vmem:[%s236 + $0x9e8] sm:$0xff]
        %v602 = vld [vmem:[%s236 + $0x9f0] sm:$0xff]
        %v603 = vld [vmem:[%s236 + $0x9f8] sm:$0xff]
        %v604 = vld [vmem:[%s236 + $0xa00] sm:$0xff]
        %v605 = vld [vmem:[%s236 + $0xa08] sm:$0xff]
        %v606 = vld [vmem:[%s236 + $0xa10] sm:$0xff]
        %v607 = vld [vmem:[%s236 + $0xa18] sm:$0xff]
        %v608 = vld [vmem:[%s236 + $0xa20] sm:$0xff]
        %v609 = vld [vmem:[%s236 + $0xa28] sm:$0xff]
        %v610 = vld [vmem:[%s236 + $0xa30] sm:$0xff]
        %v611 = vld [vmem:[%s236 + $0xa38] sm:$0xff]
        %v612 = vld [vmem:[%s236 + $0xa40] sm:$0xff]
        %v613 = vld [vmem:[%s236 + $0xa48] sm:$0xff]
        %v614 = vld [vmem:[%s236 + $0xa50] sm:$0xff]
        %v615 = vld [vmem:[%s236 + $0xa58] sm:$0xff]
        %v616 = vld [vmem:[%s236 + $0xa60] sm:$0xff]
        %v617 = vld [vmem:[%s236 + $0xa68] sm:$0xff]
        %v618 = vld [vmem:[%s236 + $0xa70] sm:$0xff]
        %v619 = vld [vmem:[%s236 + $0xa78] sm:$0xff]
        %v620 = vld [vmem:[%s236 + $0xa80] sm:$0xff]
        %v621 = vld [vmem:[%s236 + $0xa88] sm:$0xff]
        %v622 = vld [vmem:[%s236 + $0xa90] sm:$0xff]
        %v623 = vld [vmem:[%s236 + $0xa98] sm:$0xff]
        %v624 = vld [vmem:[%s236 + $0xaa0] sm:$0xff]
        %v625 = vld [vmem:[%s236 + $0xaa8] sm:$0xff]
        %v626 = vld [vmem:[%s236 + $0xab0] sm:$0xff]
        %v627 = vld [vmem:[%s236 + $0xab8] sm:$0xff]
        %v628 = vld [vmem:[%s236 + $0xac0] sm:$0xff]
        %v629 = vld [vmem:[%s236 + $0xac8] sm:$0xff]
        %v630 = vld [vmem:[%s236 + $0xad0] sm:$0xff]
        %v631 = vld [vmem:[%s236 + $0xad8] sm:$0xff]
        %v632 = vld [vmem:[%s236 + $0xae0] sm:$0xff]
        %v633 = vld [vmem:[%s236 + $0xae8] sm:$0xff]
        %v634 = vld [vmem:[%s236 + $0xaf0] sm:$0xff]
        %v635 = vld [vmem:[%s236 + $0xaf8] sm:$0xff]
        %v636 = vld [vmem:[%s236 + $0xb00] sm:$0xff]
        %v637 = vld [vmem:[%s236 + $0xb08] sm:$0xff]
        %v638 = vld [vmem:[%s236 + $0xb10] sm:$0xff]
        %v639 = vld [vmem:[%s236 + $0xb18] sm:$0xff]
        %v640 = vld [vmem:[%s236 + $0xb20] sm:$0xff]
        %v641 = vld [vmem:[%s236 + $0xb28] sm:$0xff]
        %v642 = vld [vmem:[%s236 + $0xb30] sm:$0xff]
        %v643 = vld [vmem:[%s236 + $0xb38] sm:$0xff]
        %v644 = vld [vmem:[%s236 + $0xb40] sm:$0xff]
        %v645 = vld [vmem:[%s236 + $0xb48] sm:$0xff]
        %v646 = vld [vmem:[%s236 + $0xb50] sm:$0xff]
        %v647 = vld [vmem:[%s236 + $0xb58] sm:$0xff]
        %v648 = vld [vmem:[%s236 + $0xb60] sm:$0xff]
        %v649 = vld [vmem:[%s236 + $0xb68] sm:$0xff]
        %v650 = vld [vmem:[%s236 + $0xb70] sm:$0xff]
        %v651 = vld [vmem:[%s236 + $0xb78] sm:$0xff]
        %v652 = vld [vmem:[%s236 + $0xb80] sm:$0xff]
        %v653 = vld [vmem:[%s236 + $0xb88] sm:$0xff]
        %v654 = vld [vmem:[%s236 + $0xb90] sm:$0xff]
        %v655 = vld [vmem:[%s236 + $0xb98] sm:$0xff]
        %v656 = vld [vmem:[%s236 + $0xba0] sm:$0xff]
        %v657 = vld [vmem:[%s236 + $0xba8] sm:$0xff]
        %v658 = vld [vmem:[%s236 + $0xbb0] sm:$0xff]
        %v659 = vld [vmem:[%s236 + $0xbb8] sm:$0xff]
        %v660 = vld [vmem:[%s236 + $0xbc0] sm:$0xff]
        %v661 = vld [vmem:[%s236 + $0xbc8] sm:$0xff]
        %v662 = vld [vmem:[%s236 + $0xbd0] sm:$0xff]
        %v663 = vld [vmem:[%s236 + $0xbd8] sm:$0xff]
        %v664 = vld [vmem:[%s236 + $0xbe0] sm:$0xff]
        %v665 = vld [vmem:[%s236 + $0xbe8] sm:$0xff]
        %v666 = vld [vmem:[%s236 + $0xbf0] sm:$0xff]
        %v667 = vld [vmem:[%s236 + $0xbf8] sm:$0xff]
        %v668 = vld [vmem:[%s236 + $0xc00] sm:$0xff]
        %v669 = vld [vmem:[%s236 + $0xc08] sm:$0xff]
        %v670 = vld [vmem:[%s236 + $0xc10] sm:$0xff]
        %v671 = vld [vmem:[%s236 + $0xc18] sm:$0xff]
        %v672 = vld [vmem:[%s236 + $0xc20] sm:$0xff]
        %v673 = vld [vmem:[%s236 + $0xc28] sm:$0xff]
        %v674 = vld [vmem:[%s236 + $0xc30] sm:$0xff]
        %v675 = vld [vmem:[%s236 + $0xc38] sm:$0xff]
        %v676 = vld [vmem:[%s236 + $0xc40] sm:$0xff]
        %v677 = vld [vmem:[%s236 + $0xc48] sm:$0xff]
        %v678 = vld [vmem:[%s236 + $0xc50] sm:$0xff]
        %v679 = vld [vmem:[%s236 + $0xc58] sm:$0xff]
        %v680 = vld [vmem:[%s236 + $0xc60] sm:$0xff]
        %v681 = vld [vmem:[%s236 + $0xc68] sm:$0xff]
        %v682 = vld [vmem:[%s236 + $0xc70] sm:$0xff]
        %v683 = vld [vmem:[%s236 + $0xc78] sm:$0xff]
        %v684 = vld [vmem:[%s236 + $0xc80] sm:$0xff]
        %v685 = vld [vmem:[%s236 + $0xc88] sm:$0xff]
        %v686 = vld [vmem:[%s236 + $0xc90] sm:$0xff]
        %v687 = vld [vmem:[%s236 + $0xc98] sm:$0xff]
        %v688 = vld [vmem:[%s236 + $0xca0] sm:$0xff]
        %v689 = vld [vmem:[%s236 + $0xca8] sm:$0xff]
        %v690 = vld [vmem:[%s236 + $0xcb0] sm:$0xff]
        %v691 = vld [vmem:[%s236 + $0xcb8] sm:$0xff]
        %v692 = vld [vmem:[%s236 + $0xcc0] sm:$0xff]
        %v693 = vld [vmem:[%s236 + $0xcc8] sm:$0xff]
        %v694 = vld [vmem:[%s236 + $0xcd0] sm:$0xff]
        %v695 = vld [vmem:[%s236 + $0xcd8] sm:$0xff]
        %v696 = vld [vmem:[%s236 + $0xce0] sm:$0xff]
        %v697 = vld [vmem:[%s236 + $0xce8] sm:$0xff]
        %v698 = vld [vmem:[%s236 + $0xcf0] sm:$0xff]
        %v699 = vld [vmem:[%s236 + $0xcf8] sm:$0xff]
        %v700 = vld [vmem:[%s236 + $0xd00] sm:$0xff]
        %v701 = vld [vmem:[%s236 + $0xd08] sm:$0xff]
        %v702 = vld [vmem:[%s236 + $0xd10] sm:$0xff]
        %v703 = vld [vmem:[%s236 + $0xd18] sm:$0xff]
        %v704 = vld [vmem:[%s236 + $0xd20] sm:$0xff]
        %v705 = vld [vmem:[%s236 + $0xd28] sm:$0xff]
        %v706 = vld [vmem:[%s236 + $0xd30] sm:$0xff]
        %v707 = vld [vmem:[%s236 + $0xd38] sm:$0xff]
        %v708 = vld [vmem:[%s236 + $0xd40] sm:$0xff]
        %v709 = vld [vmem:[%s236 + $0xd48] sm:$0xff]
        %v710 = vld [vmem:[%s236 + $0xd50] sm:$0xff]
        %v711 = vld [vmem:[%s236 + $0xd58] sm:$0xff]
        %v712 = vld [vmem:[%s236 + $0xd60] sm:$0xff]
        %v713 = vld [vmem:[%s236 + $0xd68] sm:$0xff]
        %v714 = vld [vmem:[%s236 + $0xd70] sm:$0xff]
        %v715 = vld [vmem:[%s236 + $0xd78] sm:$0xff]
        %v716 = vld [vmem:[%s236 + $0xd80] sm:$0xff]
        %v717 = vld [vmem:[%s236 + $0xd88] sm:$0xff]
        %v718 = vld [vmem:[%s236 + $0xd90] sm:$0xff]
        %v719 = vld [vmem:[%s236 + $0xd98] sm:$0xff]
        %v720 = vld [vmem:[%s236 + $0xda0] sm:$0xff]
        %v721 = vld [vmem:[%s236 + $0xda8] sm:$0xff]
        %v722 = vld [vmem:[%s236 + $0xdb0] sm:$0xff]
        %v723 = vld [vmem:[%s236 + $0xdb8] sm:$0xff]
        %v724 = vld [vmem:[%s236 + $0xdc0] sm:$0xff]
        %v725 = vld [vmem:[%s236 + $0xdc8] sm:$0xff]
        %v726 = vld [vmem:[%s236 + $0xdd0] sm:$0xff]
        %v727 = vld [vmem:[%s236 + $0xdd8] sm:$0xff]
        %v728 = vld [vmem:[%s236 + $0xde0] sm:$0xff]
        %v729 = vld [vmem:[%s236 + $0xde8] sm:$0xff]
        %v730 = vld [vmem:[%s236 + $0xdf0] sm:$0xff]
        %v731 = vld [vmem:[%s236 + $0xdf8] sm:$0xff]
        %v732 = vld [vmem:[%s236 + $0xe00] sm:$0xff]
        %v733 = vld [vmem:[%s236 + $0xe08] sm:$0xff]
        %v734 = vld [vmem:[%s236 + $0xe10] sm:$0xff]
        %v735 = vld [vmem:[%s236 + $0xe18] sm:$0xff]
        %v736 = vld [vmem:[%s236 + $0xe20] sm:$0xff]
        %v737 = vld [vmem:[%s236 + $0xe28] sm:$0xff]
        %v738 = vld [vmem:[%s236 + $0xe30] sm:$0xff]
        %v739 = vld [vmem:[%s236 + $0xe38] sm:$0xff]
        %v740 = vld [vmem:[%s236 + $0xe40] sm:$0xff]
        %v741 = vld [vmem:[%s236 + $0xe48] sm:$0xff]
        %v742 = vld [vmem:[%s236 + $0xe50] sm:$0xff]
        %v743 = vld [vmem:[%s236 + $0xe58] sm:$0xff]
        %v744 = vld [vmem:[%s236 + $0xe60] sm:$0xff]
        %v745 = vld [vmem:[%s236 + $0xe68] sm:$0xff]
        %v746 = vld [vmem:[%s236 + $0xe70] sm:$0xff]
        %v747 = vld [vmem:[%s236 + $0xe78] sm:$0xff]
        %v748 = vld [vmem:[%s236 + $0xe80] sm:$0xff]
        %v749 = vld [vmem:[%s236 + $0xe88] sm:$0xff]
        %v750 = vld [vmem:[%s236 + $0xe90] sm:$0xff]
        %v751 = vld [vmem:[%s236 + $0xe98] sm:$0xff]
        %v752 = vld [vmem:[%s236 + $0xea0] sm:$0xff]
        %v753 = vld [vmem:[%s236 + $0xea8] sm:$0xff]
        %v754 = vld [vmem:[%s236 + $0xeb0] sm:$0xff]
        %v755 = vld [vmem:[%s236 + $0xeb8] sm:$0xff]
        %v756 = vld [vmem:[%s236 + $0xec0] sm:$0xff]
        %v757 = vld [vmem:[%s236 + $0xec8] sm:$0xff]
        %v758 = vld [vmem:[%s236 + $0xed0] sm:$0xff]
        %v759 = vld [vmem:[%s236 + $0xed8] sm:$0xff]
        %v760 = vld [vmem:[%s236 + $0xee0] sm:$0xff]
        %v761 = vld [vmem:[%s236 + $0xee8] sm:$0xff]
        %v762 = vld [vmem:[%s236 + $0xef0] sm:$0xff]
        %v763 = vld [vmem:[%s236 + $0xef8] sm:$0xff]
        %v764 = vld [vmem:[%s236 + $0xf00] sm:$0xff]
        %v765 = vld [vmem:[%s236 + $0xf08] sm:$0xff]
        %v766 = vld [vmem:[%s236 + $0xf10] sm:$0xff]
        %v767 = vld [vmem:[%s236 + $0xf18] sm:$0xff]
        %v768 = vld [vmem:[%s236 + $0xf20] sm:$0xff]
        %v769 = vld [vmem:[%s236 + $0xf28] sm:$0xff]
        %v770 = vld [vmem:[%s236 + $0xf30] sm:$0xff]
        %v771 = vld [vmem:[%s236 + $0xf38] sm:$0xff]
        %v772 = vld [vmem:[%s236 + $0xf40] sm:$0xff]
        %v773 = vld [vmem:[%s236 + $0xf48] sm:$0xff]
        %v774 = vld [vmem:[%s236 + $0xf50] sm:$0xff]
        %v775 = vld [vmem:[%s236 + $0xf58] sm:$0xff]
        %v776 = vld [vmem:[%s236 + $0xf60] sm:$0xff]
        %v777 = vld [vmem:[%s236 + $0xf68] sm:$0xff]
        %v778 = vld [vmem:[%s236 + $0xf70] sm:$0xff]
        %v779 = vld [vmem:[%s236 + $0xf78] sm:$0xff]
        %v780 = vld [vmem:[%s236 + $0xf80] sm:$0xff]
        %v781 = vld [vmem:[%s236 + $0xf88] sm:$0xff]
        %v782 = vld [vmem:[%s236 + $0xf90] sm:$0xff]
        %v783 = vld [vmem:[%s236 + $0xf98] sm:$0xff]
        %v784 = vld [vmem:[%s236 + $0xfa0] sm:$0xff]
        %v785 = vld [vmem:[%s236 + $0xfa8] sm:$0xff]
        %v786 = vld [vmem:[%s236 + $0xfb0] sm:$0xff]
        %v787 = vld [vmem:[%s236 + $0xfb8] sm:$0xff]
        %v788 = vld [vmem:[%s236 + $0xfc0] sm:$0xff]
        %v789 = vld [vmem:[%s236 + $0xfc8] sm:$0xff]
        %v790 = vld [vmem:[%s236 + $0xfd0] sm:$0xff]
        %v791 = vld [vmem:[%s236 + $0xfd8] sm:$0xff]
        %v792 = vld [vmem:[%s236 + $0xfe0] sm:$0xff]
        %v793 = vld [vmem:[%s236 + $0xfe8] sm:$0xff]
        %v794 = vld [vmem:[%s236 + $0xff0] sm:$0xff]
        %v795 = vld [vmem:[%s236 + $0xff8] sm:$0xff]
        %v796 = vld [vmem:[%s236 + $0x1000] sm:$0xff]
        %v797 = vld [vmem:[%s236 + $0x1008] sm:$0xff]
        %v798 = vld [vmem:[%s236 + $0x1010] sm:$0xff]
        %v799 = vld [vmem:[%s236 + $0x1018] sm:$0xff]
        %v800 = vld [vmem:[%s236 + $0x1020] sm:$0xff]
        %v801 = vld [vmem:[%s236 + $0x1028] sm:$0xff]
        %v802 = vld [vmem:[%s236 + $0x1030] sm:$0xff]
        %v803 = vld [vmem:[%s236 + $0x1038] sm:$0xff]
        %v804 = vld [vmem:[%s236 + $0x1040] sm:$0xff]
        %v805 = vld [vmem:[%s236 + $0x1048] sm:$0xff]
        %v806 = vld [vmem:[%s236 + $0x1050] sm:$0xff]
        %v807 = vld [vmem:[%s236 + $0x1058] sm:$0xff]
        %v808 = vld [vmem:[%s236 + $0x1060] sm:$0xff]
        %v809 = vld [vmem:[%s236 + $0x1068] sm:$0xff]
        %v810 = vld [vmem:[%s236 + $0x1070] sm:$0xff]
        %v811 = vld [vmem:[%s236 + $0x1078] sm:$0xff]
        %v812 = vld [vmem:[%s236 + $0x1080] sm:$0xff]
        %v813 = vld [vmem:[%s236 + $0x1088] sm:$0xff]
        %v814 = vld [vmem:[%s236 + $0x1090] sm:$0xff]
        %v815 = vld [vmem:[%s236 + $0x1098] sm:$0xff]
        %v816 = vld [vmem:[%s236 + $0x10a0] sm:$0xff]
        %v817 = vld [vmem:[%s236 + $0x10a8] sm:$0xff]
        %v818 = vld [vmem:[%s236 + $0x10b0] sm:$0xff]
        %v819 = vld [vmem:[%s236 + $0x10b8] sm:$0xff]
        %v820 = vld [vmem:[%s236 + $0x10c0] sm:$0xff]
        %v821 = vld [vmem:[%s236 + $0x10c8] sm:$0xff]
        %v822 = vld [vmem:[%s236 + $0x10d0] sm:$0xff]
        %v823 = vld [vmem:[%s236 + $0x10d8] sm:$0xff]
        %v824 = vld [vmem:[%s236 + $0x10e0] sm:$0xff]
        %v825 = vld [vmem:[%s236 + $0x10e8] sm:$0xff]
        %v826 = vld [vmem:[%s236 + $0x10f0] sm:$0xff]
        %v827 = vld [vmem:[%s236 + $0x10f8] sm:$0xff]
        %v828 = vld [vmem:[%s236 + $0x1100] sm:$0xff]
        %v829 = vld [vmem:[%s236 + $0x1108] sm:$0xff]
        %v830 = vld [vmem:[%s236 + $0x1110] sm:$0xff]
        %v831 = vld [vmem:[%s236 + $0x1118] sm:$0xff]
        %v832 = vld [vmem:[%s236 + $0x1120] sm:$0xff]
        %v833 = vld [vmem:[%s236 + $0x1128] sm:$0xff]
        %v834 = vld [vmem:[%s236 + $0x1130] sm:$0xff]
        %v835 = vld [vmem:[%s236 + $0x1138] sm:$0xff]
        %v836 = vld [vmem:[%s236 + $0x1140] sm:$0xff]
        %v837 = vld [vmem:[%s236 + $0x1148] sm:$0xff]
        %v838 = vld [vmem:[%s236 + $0x1150] sm:$0xff]
        %v839 = vld [vmem:[%s236 + $0x1158] sm:$0xff]
        %v840 = vld [vmem:[%s236 + $0x1160] sm:$0xff]
        %v841 = vld [vmem:[%s236 + $0x1168] sm:$0xff]
        %v842 = vld [vmem:[%s236 + $0x1170] sm:$0xff]
        %v843 = vld [vmem:[%s236 + $0x1178] sm:$0xff]
        %v844 = vld [vmem:[%s236 + $0x1180] sm:$0xff]
        %v845 = vld [vmem:[%s236 + $0x1188] sm:$0xff]
        %v846 = vld [vmem:[%s236 + $0x1190] sm:$0xff]
        %v847 = vld [vmem:[%s236 + $0x1198] sm:$0xff]
        %v848 = vld [vmem:[%s236 + $0x11a0] sm:$0xff]
        %v849 = vld [vmem:[%s236 + $0x11a8] sm:$0xff]
        %v850 = vld [vmem:[%s236 + $0x11b0] sm:$0xff]
        %v851 = vld [vmem:[%s236 + $0x11b8] sm:$0xff]
        %v852 = vld [vmem:[%s236 + $0x11c0] sm:$0xff]
        %v853 = vld [vmem:[%s236 + $0x11c8] sm:$0xff]
        %v854 = vld [vmem:[%s236 + $0x11d0] sm:$0xff]
        %v855 = vld [vmem:[%s236 + $0x11d8] sm:$0xff]
        %v856 = vld [vmem:[%s236 + $0x11e0] sm:$0xff]
        %v857 = vld [vmem:[%s236 + $0x11e8] sm:$0xff]
        %v858 = vld [vmem:[%s236 + $0x11f0] sm:$0xff]
        %v859 = vld [vmem:[%s236 + $0x11f8] sm:$0xff]
        %v860 = vld [vmem:[%s236 + $0x1200] sm:$0xff]
        %v861 = vld [vmem:[%s236 + $0x1208] sm:$0xff]
        %v862 = vld [vmem:[%s236 + $0x1210] sm:$0xff]
        %v863 = vld [vmem:[%s236 + $0x1218] sm:$0xff]
        %v864 = vld [vmem:[%s236 + $0x1220] sm:$0xff]
        %v865 = vld [vmem:[%s236 + $0x1228] sm:$0xff]
        %v866 = vld [vmem:[%s236 + $0x1230] sm:$0xff]
        %v867 = vld [vmem:[%s236 + $0x1238] sm:$0xff]
        %v868 = vld [vmem:[%s236 + $0x1240] sm:$0xff]
        %v869 = vld [vmem:[%s236 + $0x1248] sm:$0xff]
        %v870 = vld [vmem:[%s236 + $0x1250] sm:$0xff]
        %v871 = vld [vmem:[%s236 + $0x1258] sm:$0xff]
        %v872 = vld [vmem:[%s236 + $0x1260] sm:$0xff]
        %v873 = vld [vmem:[%s236 + $0x1268] sm:$0xff]
        %v874 = vld [vmem:[%s236 + $0x1270] sm:$0xff]
        %v875 = vld [vmem:[%s236 + $0x1278] sm:$0xff]
        %v876 = vld [vmem:[%s236 + $0x1280] sm:$0xff]
        %v877 = vld [vmem:[%s236 + $0x1288] sm:$0xff]
        %v878 = vld [vmem:[%s236 + $0x1290] sm:$0xff]
        %v879 = vld [vmem:[%s236 + $0x1298] sm:$0xff]
        %v880 = vld [vmem:[%s236 + $0x12a0] sm:$0xff]
        %v881 = vld [vmem:[%s236 + $0x12a8] sm:$0xff]
        %v882 = vld [vmem:[%s236 + $0x12b0] sm:$0xff]
        %v883 = vld [vmem:[%s236 + $0x12b8] sm:$0xff]
        %v884 = vld [vmem:[%s236 + $0x12c0] sm:$0xff]
        %v885 = vld [vmem:[%s236 + $0x12c8] sm:$0xff]
        %v886 = vld [vmem:[%s236 + $0x12d0] sm:$0xff]
        %v887 = vld [vmem:[%s236 + $0x12d8] sm:$0xff]
        %v888 = vld [vmem:[%s236 + $0x12e0] sm:$0xff]
        %v889 = vld [vmem:[%s236 + $0x12e8] sm:$0xff]
        %v890 = vld [vmem:[%s236 + $0x12f0] sm:$0xff]
        %v891 = vld [vmem:[%s236 + $0x12f8] sm:$0xff]
        %v892 = vld [vmem:[%s236 + $0x1300] sm:$0xff]
        %v893 = vld [vmem:[%s236 + $0x1308] sm:$0xff]
        %v894 = vld [vmem:[%s236 + $0x1310] sm:$0xff]
        %v895 = vld [vmem:[%s236 + $0x1318] sm:$0xff]
        %v896 = vld [vmem:[%s236 + $0x1320] sm:$0xff]
        %v897 = vld [vmem:[%s236 + $0x1328] sm:$0xff]
        %v898 = vld [vmem:[%s236 + $0x1330] sm:$0xff]
        %v899 = vld [vmem:[%s236 + $0x1338] sm:$0xff]
        %v900 = vld [vmem:[%s236 + $0x1340] sm:$0xff]
        %v901 = vld [vmem:[%s236 + $0x1348] sm:$0xff]
        %v902 = vld [vmem:[%s236 + $0x1350] sm:$0xff]
        %v903 = vld [vmem:[%s236 + $0x1358] sm:$0xff]
        %v904 = vld [vmem:[%s236 + $0x1360] sm:$0xff]
        %v905 = vld [vmem:[%s236 + $0x1368] sm:$0xff]
        %v906 = vld [vmem:[%s236 + $0x1370] sm:$0xff]
        %v907 = vld [vmem:[%s236 + $0x1378] sm:$0xff]
        %v908 = vld [vmem:[%s236 + $0x1380] sm:$0xff]
        %v909 = vld [vmem:[%s236 + $0x1388] sm:$0xff]
        %v910 = vld [vmem:[%s236 + $0x1390] sm:$0xff]
        %v911 = vld [vmem:[%s236 + $0x1398] sm:$0xff]
        %v912 = vld [vmem:[%s236 + $0x13a0] sm:$0xff]
        %v913 = vld [vmem:[%s236 + $0x13a8] sm:$0xff]
        %v914 = vld [vmem:[%s236 + $0x13b0] sm:$0xff]
        %v915 = vld [vmem:[%s236 + $0x13b8] sm:$0xff]
        %v916 = vld [vmem:[%s236 + $0x13c0] sm:$0xff]
        %v917 = vld [vmem:[%s236 + $0x13c8] sm:$0xff]
        %v918 = vld [vmem:[%s236 + $0x13d0] sm:$0xff]
        %v919 = vld [vmem:[%s236 + $0x13d8] sm:$0xff]
        %v920 = vld [vmem:[%s236 + $0x13e0] sm:$0xff]
        %v921 = vld [vmem:[%s236 + $0x13e8] sm:$0xff]
        %v922 = vld [vmem:[%s236 + $0x13f0] sm:$0xff]
        %v923 = vld [vmem:[%s236 + $0x13f8] sm:$0xff]
        %v924 = vld [vmem:[%s236 + $0x1400] sm:$0xff]
        %v925 = vld [vmem:[%s236 + $0x1408] sm:$0xff]
        %v926 = vld [vmem:[%s236 + $0x1410] sm:$0xff]
        %v927 = vld [vmem:[%s236 + $0x1418] sm:$0xff]
        %v928 = vld [vmem:[%s236 + $0x1420] sm:$0xff]
        %v929 = vld [vmem:[%s236 + $0x1428] sm:$0xff]
        %v930 = vld [vmem:[%s236 + $0x1430] sm:$0xff]
        %v931 = vld [vmem:[%s236 + $0x1438] sm:$0xff]
        %v932 = vld [vmem:[%s236 + $0x1440] sm:$0xff]
        %v933 = vld [vmem:[%s236 + $0x1448] sm:$0xff]
        %v934 = vld [vmem:[%s236 + $0x1450] sm:$0xff]
        %v935 = vld [vmem:[%s236 + $0x1458] sm:$0xff]
        %v936 = vld [vmem:[%s236 + $0x1460] sm:$0xff]
        %v937 = vld [vmem:[%s236 + $0x1468] sm:$0xff]
        %v938 = vld [vmem:[%s236 + $0x1470] sm:$0xff]
        %v939 = vld [vmem:[%s236 + $0x1478] sm:$0xff]
        %v940 = vld [vmem:[%s236 + $0x1480] sm:$0xff]
        %v941 = vld [vmem:[%s236 + $0x1488] sm:$0xff]
        %v942 = vld [vmem:[%s236 + $0x1490] sm:$0xff]
        %v943 = vld [vmem:[%s236 + $0x1498] sm:$0xff]
        %v944 = vld [vmem:[%s236 + $0x14a0] sm:$0xff]
        %v945 = vld [vmem:[%s236 + $0x14a8] sm:$0xff]
        %v946 = vld [vmem:[%s236 + $0x14b0] sm:$0xff]
        %v947 = vld [vmem:[%s236 + $0x14b8] sm:$0xff]
        %v948 = vld [vmem:[%s236 + $0x14c0] sm:$0xff]
        %v949 = vld [vmem:[%s236 + $0x14c8] sm:$0xff]
        %v950 = vld [vmem:[%s236 + $0x14d0] sm:$0xff]
        %v951 = vld [vmem:[%s236 + $0x14d8] sm:$0xff]
        %v952 = vld [vmem:[%s236 + $0x14e0] sm:$0xff]
        %v953 = vld [vmem:[%s236 + $0x14e8] sm:$0xff]
        %v954 = vld [vmem:[%s236 + $0x14f0] sm:$0xff]
        %v955 = vld [vmem:[%s236 + $0x14f8] sm:$0xff]
        %v956 = vld [vmem:[%s236 + $0x1500] sm:$0xff]
        %v957 = vld [vmem:[%s236 + $0x1508] sm:$0xff]
        %v958 = vld [vmem:[%s236 + $0x1510] sm:$0xff]
        %v959 = vld [vmem:[%s236 + $0x1518] sm:$0xff]
        %v960 = vld [vmem:[%s236 + $0x1520] sm:$0xff]
        %v961 = vld [vmem:[%s236 + $0x1528] sm:$0xff]
        %v962 = vld [vmem:[%s236 + $0x1530] sm:$0xff]
        %v963 = vld [vmem:[%s236 + $0x1538] sm:$0xff]
        %v964 = vld [vmem:[%s236 + $0x1540] sm:$0xff]
        %v965 = vld [vmem:[%s236 + $0x1548] sm:$0xff]
        %v966 = vld [vmem:[%s236 + $0x1550] sm:$0xff]
        %v967 = vld [vmem:[%s236 + $0x1558] sm:$0xff]
        %v968 = vld [vmem:[%s236 + $0x1560] sm:$0xff]
        %v969 = vld [vmem:[%s236 + $0x1568] sm:$0xff]
        %v970 = vld [vmem:[%s236 + $0x1570] sm:$0xff]
        %v971 = vld [vmem:[%s236 + $0x1578] sm:$0xff]
        %v972 = vld [vmem:[%s236 + $0x1580] sm:$0xff]
        %v973 = vld [vmem:[%s236 + $0x1588] sm:$0xff]
        %v974 = vld [vmem:[%s236 + $0x1590] sm:$0xff]
        %v975 = vld [vmem:[%s236 + $0x1598] sm:$0xff]
        %v976 = vld [vmem:[%s236 + $0x15a0] sm:$0xff]
        %v977 = vld [vmem:[%s236 + $0x15a8] sm:$0xff]
        %v978 = vld [vmem:[%s236 + $0x15b0] sm:$0xff]
        %v979 = vld [vmem:[%s236 + $0x15b8] sm:$0xff]
        %v980 = vld [vmem:[%s236 + $0x15c0] sm:$0xff]
        %v981 = vld [vmem:[%s236 + $0x15c8] sm:$0xff]
        %v982 = vld [vmem:[%s236 + $0x15d0] sm:$0xff]
        %v983 = vld [vmem:[%s236 + $0x15d8] sm:$0xff]
        %v984 = vld [vmem:[%s236 + $0x15e0] sm:$0xff]
        %v985 = vld [vmem:[%s236 + $0x15e8] sm:$0xff]
        %v986 = vld [vmem:[%s236 + $0x15f0] sm:$0xff]
        %v987 = vld [vmem:[%s236 + $0x15f8] sm:$0xff]
        %v988 = vld [vmem:[%s236 + $0x1600] sm:$0xff]
        %v989 = vld [vmem:[%s236 + $0x1608] sm:$0xff]
        %v990 = vld [vmem:[%s236 + $0x1610] sm:$0xff]
        %v991 = vld [vmem:[%s236 + $0x1618] sm:$0xff]
        %v992 = vld [vmem:[%s236 + $0x1620] sm:$0xff]
        %v993 = vld [vmem:[%s236 + $0x1628] sm:$0xff]
        %v994 = vld [vmem:[%s236 + $0x1630] sm:$0xff]
        %v995 = vld [vmem:[%s236 + $0x1638] sm:$0xff]
        %v996 = vld [vmem:[%s236 + $0x1640] sm:$0xff]
        %v997 = vld [vmem:[%s236 + $0x1648] sm:$0xff]
        %v998 = vld [vmem:[%s236 + $0x1650] sm:$0xff]
        %v999 = vld [vmem:[%s236 + $0x1658] sm:$0xff]
        %v1000 = vld [vmem:[%s236 + $0x1660] sm:$0xff]
        %v1001 = vld [vmem:[%s236 + $0x1668] sm:$0xff]
        %v1002 = vld [vmem:[%s236 + $0x1670] sm:$0xff]
        %v1003 = vld [vmem:[%s236 + $0x1678] sm:$0xff]
        %v1004 = vld [vmem:[%s236 + $0x1680] sm:$0xff]
        %v1005 = vld [vmem:[%s236 + $0x1688] sm:$0xff]
        %v1006 = vld [vmem:[%s236 + $0x1690] sm:$0xff]
        %v1007 = vld [vmem:[%s236 + $0x1698] sm:$0xff]
        %v1008 = vld [vmem:[%s236 + $0x16a0] sm:$0xff]
        %v1009 = vld [vmem:[%s236 + $0x16a8] sm:$0xff]
        %v1010 = vld [vmem:[%s236 + $0x16b0] sm:$0xff]
        %v1011 = vld [vmem:[%s236 + $0x16b8] sm:$0xff]
        %v1012 = vld [vmem:[%s236 + $0x16c0] sm:$0xff]
        %v1013 = vld [vmem:[%s236 + $0x16c8] sm:$0xff]
        %v1014 = vld [vmem:[%s236 + $0x16d0] sm:$0xff]
        %v1015 = vld [vmem:[%s236 + $0x16d8] sm:$0xff]
        %v1016 = vld [vmem:[%s236 + $0x16e0] sm:$0xff]
        %v1017 = vld [vmem:[%s236 + $0x16e8] sm:$0xff]
        %v1018 = vld [vmem:[%s236 + $0x16f0] sm:$0xff]
        %v1019 = vld [vmem:[%s236 + $0x16f8] sm:$0xff]
        %v1020 = vld [vmem:[%s236 + $0x1700] sm:$0xff]
        %v1021 = vld [vmem:[%s236 + $0x1708] sm:$0xff]
        %v1022 = vld [vmem:[%s236 + $0x1710] sm:$0xff]
        %v1023 = vld [vmem:[%s236 + $0x1718] sm:$0xff]
        %v1024 = vld [vmem:[%s236 + $0x1720] sm:$0xff]
        %v1025 = vld [vmem:[%s236 + $0x1728] sm:$0xff]
        %v1026 = vld [vmem:[%s236 + $0x1730] sm:$0xff]
        %v1027 = vld [vmem:[%s236 + $0x1738] sm:$0xff]
        %v1028 = vld [vmem:[%s236 + $0x1740] sm:$0xff]
        %v1029 = vld [vmem:[%s236 + $0x1748] sm:$0xff]
        %v1030 = vld [vmem:[%s236 + $0x1750] sm:$0xff]
        %v1031 = vld [vmem:[%s236 + $0x1758] sm:$0xff]
        %v1032 = vld [vmem:[%s236 + $0x1760] sm:$0xff]
        %v1033 = vld [vmem:[%s236 + $0x1768] sm:$0xff]
        %v1034 = vld [vmem:[%s236 + $0x1770] sm:$0xff]
        %v1035 = vld [vmem:[%s236 + $0x1778] sm:$0xff]
        %v1036 = vld [vmem:[%s236 + $0x1780] sm:$0xff]
        %v1037 = vld [vmem:[%s236 + $0x1788] sm:$0xff]
        %v1038 = vld [vmem:[%s236 + $0x1790] sm:$0xff]
        %v1039 = vld [vmem:[%s236 + $0x1798] sm:$0xff]
        %v1040 = vld [vmem:[%s236 + $0x17a0] sm:$0xff]
        %v1041 = vld [vmem:[%s236 + $0x17a8] sm:$0xff]
        %v1042 = vld [vmem:[%s236 + $0x17b0] sm:$0xff]
        %v1043 = vld [vmem:[%s236 + $0x17b8] sm:$0xff]
        %v1044 = vld [vmem:[%s236 + $0x17c0] sm:$0xff]
        %v1045 = vld [vmem:[%s236 + $0x17c8] sm:$0xff]
        %v1046 = vld [vmem:[%s236 + $0x17d0] sm:$0xff]
        %v1047 = vld [vmem:[%s236 + $0x17d8] sm:$0xff]
        %v1048 = vld [vmem:[%s236 + $0x17e0] sm:$0xff]
        %v1049 = vld [vmem:[%s236 + $0x17e8] sm:$0xff]
        %v1050 = vld [vmem:[%s236 + $0x17f0] sm:$0xff]
        %v1051 = vld [vmem:[%s236 + $0x17f8] sm:$0xff]
        %v1052 = vld [vmem:[%s236 + $0x1800] sm:$0xff]
        %v1053 = vld [vmem:[%s236 + $0x1808] sm:$0xff]
        %v1054 = vld [vmem:[%s236 + $0x1810] sm:$0xff]
        %v1055 = vld [vmem:[%s236 + $0x1818] sm:$0xff]
        %v1056 = vld [vmem:[%s236 + $0x1820] sm:$0xff]
        %v1057 = vld [vmem:[%s236 + $0x1828] sm:$0xff]
        %v1058 = vld [vmem:[%s236 + $0x1830] sm:$0xff]
        %v1059 = vld [vmem:[%s236 + $0x1838] sm:$0xff]
        %v1060 = vld [vmem:[%s236 + $0x1840] sm:$0xff]
        %v1061 = vld [vmem:[%s236 + $0x1848] sm:$0xff]
        %v1062 = vld [vmem:[%s236 + $0x1850] sm:$0xff]
        %v1063 = vld [vmem:[%s236 + $0x1858] sm:$0xff]
        %v1064 = vld [vmem:[%s236 + $0x1860] sm:$0xff]
        %v1065 = vld [vmem:[%s236 + $0x1868] sm:$0xff]
        %v1066 = vld [vmem:[%s236 + $0x1870] sm:$0xff]
        %v1067 = vld [vmem:[%s236 + $0x1878] sm:$0xff]
        %v1068 = vld [vmem:[%s236 + $0x1880] sm:$0xff]
        %v1069 = vld [vmem:[%s236 + $0x1888] sm:$0xff]
        %v1070 = vld [vmem:[%s236 + $0x1890] sm:$0xff]
        %v1071 = vld [vmem:[%s236 + $0x1898] sm:$0xff]
        %v1072 = vld [vmem:[%s236 + $0x18a0] sm:$0xff]
        %v1073 = vld [vmem:[%s236 + $0x18a8] sm:$0xff]
        %v1074 = vld [vmem:[%s236 + $0x18b0] sm:$0xff]
        %v1075 = vld [vmem:[%s236 + $0x18b8] sm:$0xff]
        %v1076 = vld [vmem:[%s236 + $0x18c0] sm:$0xff]
        %v1077 = vld [vmem:[%s236 + $0x18c8] sm:$0xff]
        %v1078 = vld [vmem:[%s236 + $0x18d0] sm:$0xff]
        %v1079 = vld [vmem:[%s236 + $0x18d8] sm:$0xff]
        %v1080 = vld [vmem:[%s236 + $0x18e0] sm:$0xff]
        %v1081 = vld [vmem:[%s236 + $0x18e8] sm:$0xff]
        %v1082 = vld [vmem:[%s236 + $0x18f0] sm:$0xff]
        %v1083 = vld [vmem:[%s236 + $0x18f8] sm:$0xff]
        %v1084 = vld [vmem:[%s236 + $0x1900] sm:$0xff]
        %v1085 = vld [vmem:[%s236 + $0x1908] sm:$0xff]
        %v1086 = vld [vmem:[%s236 + $0x1910] sm:$0xff]
        %v1087 = vld [vmem:[%s236 + $0x1918] sm:$0xff]
        %v1088 = vld [vmem:[%s236 + $0x1920] sm:$0xff]
        %v1089 = vld [vmem:[%s236 + $0x1928] sm:$0xff]
        %v1090 = vld [vmem:[%s236 + $0x1930] sm:$0xff]
        %v1091 = vld [vmem:[%s236 + $0x1938] sm:$0xff]
        %v1092 = vld [vmem:[%s236 + $0x1940] sm:$0xff]
        %v1093 = vld [vmem:[%s236 + $0x1948] sm:$0xff]
        %v1094 = vld [vmem:[%s236 + $0x1950] sm:$0xff]
        %v1095 = vld [vmem:[%s236 + $0x1958] sm:$0xff]
        %v1096 = vld [vmem:[%s236 + $0x1960] sm:$0xff]
        %v1097 = vld [vmem:[%s236 + $0x1968] sm:$0xff]
        %v1098 = vld [vmem:[%s236 + $0x1970] sm:$0xff]
        %v1099 = vld [vmem:[%s236 + $0x1978] sm:$0xff]
        %v1100 = vld [vmem:[%s236 + $0x1980] sm:$0xff]
        %v1101 = vld [vmem:[%s236 + $0x1988] sm:$0xff]
        %v1102 = vld [vmem:[%s236 + $0x1990] sm:$0xff]
        %v1103 = vld [vmem:[%s236 + $0x1998] sm:$0xff]
        %v1104 = vld [vmem:[%s236 + $0x19a0] sm:$0xff]
        %v1105 = vld [vmem:[%s236 + $0x19a8] sm:$0xff]
        %v1106 = vld [vmem:[%s236 + $0x19b0] sm:$0xff]
        %v1107 = vld [vmem:[%s236 + $0x19b8] sm:$0xff]
        %v1108 = vld [vmem:[%s236 + $0x19c0] sm:$0xff]
        %v1109 = vld [vmem:[%s236 + $0x19c8] sm:$0xff]
        %v1110 = vld [vmem:[%s236 + $0x19d0] sm:$0xff]
        %v1111 = vld [vmem:[%s236 + $0x19d8] sm:$0xff]
        %v1112 = vld [vmem:[%s236 + $0x19e0] sm:$0xff]
        %v1113 = vld [vmem:[%s236 + $0x19e8] sm:$0xff]
        %v1114 = vld [vmem:[%s236 + $0x19f0] sm:$0xff]
        %v1115 = vld [vmem:[%s236 + $0x19f8] sm:$0xff]
        %v1116 = vld [vmem:[%s236 + $0x1a00] sm:$0xff]
        %v1117 = vld [vmem:[%s236 + $0x1a08] sm:$0xff]
        %v1118 = vld [vmem:[%s236 + $0x1a10] sm:$0xff]
        %v1119 = vld [vmem:[%s236 + $0x1a18] sm:$0xff]
        %v1120 = vld [vmem:[%s236 + $0x1a20] sm:$0xff]
        %v1121 = vld [vmem:[%s236 + $0x1a28] sm:$0xff]
        %v1122 = vld [vmem:[%s236 + $0x1a30] sm:$0xff]
        %v1123 = vld [vmem:[%s236 + $0x1a38] sm:$0xff]
        %v1124 = vld [vmem:[%s236 + $0x1a40] sm:$0xff]
        %v1125 = vld [vmem:[%s236 + $0x1a48] sm:$0xff]
        %v1126 = vld [vmem:[%s236 + $0x1a50] sm:$0xff]
        %v1127 = vld [vmem:[%s236 + $0x1a58] sm:$0xff]
        %v1128 = vld [vmem:[%s236 + $0x1a60] sm:$0xff]
        %v1129 = vld [vmem:[%s236 + $0x1a68] sm:$0xff]
        %v1130 = vld [vmem:[%s236 + $0x1a70] sm:$0xff]
        %v1131 = vld [vmem:[%s236 + $0x1a78] sm:$0xff]
        %v1132 = vld [vmem:[%s236 + $0x1a80] sm:$0xff]
        %v1133 = vld [vmem:[%s236 + $0x1a88] sm:$0xff]
        %v1134 = vld [vmem:[%s236 + $0x1a90] sm:$0xff]
        %v1135 = vld [vmem:[%s236 + $0x1a98] sm:$0xff]
        %v1136 = vld [vmem:[%s236 + $0x1aa0] sm:$0xff]
        %v1137 = vld [vmem:[%s236 + $0x1aa8] sm:$0xff]
        %v1138 = vld [vmem:[%s236 + $0x1ab0] sm:$0xff]
        %v1139 = vld [vmem:[%s236 + $0x1ab8] sm:$0xff]
        %v1140 = vld [vmem:[%s236 + $0x1ac0] sm:$0xff]
        %v1141 = vld [vmem:[%s236 + $0x1ac8] sm:$0xff]
        %v1142 = vld [vmem:[%s236 + $0x1ad0] sm:$0xff]
        %v1143 = vld [vmem:[%s236 + $0x1ad8] sm:$0xff]
        %v1144 = vld [vmem:[%s236 + $0x1ae0] sm:$0xff]
        %v1145 = vld [vmem:[%s236 + $0x1ae8] sm:$0xff]
        %v1146 = vld [vmem:[%s236 + $0x1af0] sm:$0xff]
        %v1147 = vld [vmem:[%s236 + $0x1af8] sm:$0xff]
        %v1148 = vld [vmem:[%s236 + $0x1b00] sm:$0xff]
        %v1149 = vld [vmem:[%s236 + $0x1b08] sm:$0xff]
        %v1150 = vld [vmem:[%s236 + $0x1b10] sm:$0xff]
        %v1151 = vld [vmem:[%s236 + $0x1b18] sm:$0xff]
        %v1152 = vld [vmem:[%s236 + $0x1b20] sm:$0xff]
        %v1153 = vld [vmem:[%s236 + $0x1b28] sm:$0xff]
        %v1154 = vld [vmem:[%s236 + $0x1b30] sm:$0xff]
        %v1155 = vld [vmem:[%s236 + $0x1b38] sm:$0xff]
        %v1156 = vld [vmem:[%s236 + $0x1b40] sm:$0xff]
        %v1157 = vld [vmem:[%s236 + $0x1b48] sm:$0xff]
        %v1158 = vld [vmem:[%s236 + $0x1b50] sm:$0xff]
        %v1159 = vld [vmem:[%s236 + $0x1b58] sm:$0xff]
        %v1160 = vld [vmem:[%s236 + $0x1b60] sm:$0xff]
        %v1161 = vld [vmem:[%s236 + $0x1b68] sm:$0xff]
        %v1162 = vld [vmem:[%s236 + $0x1b70] sm:$0xff]
        %v1163 = vld [vmem:[%s236 + $0x1b78] sm:$0xff]
        %v1164 = vld [vmem:[%s236 + $0x1b80] sm:$0xff]
        %v1165 = vld [vmem:[%s236 + $0x1b88] sm:$0xff]
        %v1166 = vld [vmem:[%s236 + $0x1b90] sm:$0xff]
        %v1167 = vld [vmem:[%s236 + $0x1b98] sm:$0xff]
        %v1168 = vld [vmem:[%s236 + $0x1ba0] sm:$0xff]
        %v1169 = vld [vmem:[%s236 + $0x1ba8] sm:$0xff]
        %v1170 = vld [vmem:[%s236 + $0x1bb0] sm:$0xff]
        %v1171 = vld [vmem:[%s236 + $0x1bb8] sm:$0xff]
        %v1172 = vld [vmem:[%s236 + $0x1bc0] sm:$0xff]
        %v1173 = vld [vmem:[%s236 + $0x1bc8] sm:$0xff]
        %v1174 = vld [vmem:[%s236 + $0x1bd0] sm:$0xff]
        %v1175 = vld [vmem:[%s236 + $0x1bd8] sm:$0xff]
        %v1176 = vld [vmem:[%s236 + $0x1be0] sm:$0xff]
        %v1177 = vld [vmem:[%s236 + $0x1be8] sm:$0xff]
        %v1178 = vld [vmem:[%s236 + $0x1bf0] sm:$0xff]
        %v1179 = vld [vmem:[%s236 + $0x1bf8] sm:$0xff]
        %v1180 = vld [vmem:[%s236 + $0x1c00] sm:$0xff]
        %v1181 = vld [vmem:[%s236 + $0x1c08] sm:$0xff]
        %v1182 = vld [vmem:[%s236 + $0x1c10] sm:$0xff]
        %v1183 = vld [vmem:[%s236 + $0x1c18] sm:$0xff]
        %v1184 = vld [vmem:[%s236 + $0x1c20] sm:$0xff]
        %v1185 = vld [vmem:[%s236 + $0x1c28] sm:$0xff]
        %v1186 = vld [vmem:[%s236 + $0x1c30] sm:$0xff]
        %v1187 = vld [vmem:[%s236 + $0x1c38] sm:$0xff]
        %v1188 = vld [vmem:[%s236 + $0x1c40] sm:$0xff]
        %v1189 = vld [vmem:[%s236 + $0x1c48] sm:$0xff]
        %v1190 = vld [vmem:[%s236 + $0x1c50] sm:$0xff]
        %v1191 = vld [vmem:[%s236 + $0x1c58] sm:$0xff]
        %v1192 = vld [vmem:[%s236 + $0x1c60] sm:$0xff]
        %v1193 = vld [vmem:[%s236 + $0x1c68] sm:$0xff]
        %v1194 = vld [vmem:[%s236 + $0x1c70] sm:$0xff]
        %v1195 = vld [vmem:[%s236 + $0x1c78] sm:$0xff]
        %v1196 = vld [vmem:[%s236 + $0x1c80] sm:$0xff]
        %v1197 = vld [vmem:[%s236 + $0x1c88] sm:$0xff]
        %v1198 = vld [vmem:[%s236 + $0x1c90] sm:$0xff]
        %v1199 = vld [vmem:[%s236 + $0x1c98] sm:$0xff]
        %v1200 = vld [vmem:[%s236 + $0x1ca0] sm:$0xff]
        %v1201 = vld [vmem:[%s236 + $0x1ca8] sm:$0xff]
        %v1202 = vld [vmem:[%s236 + $0x1cb0] sm:$0xff]
        %v1203 = vld [vmem:[%s236 + $0x1cb8] sm:$0xff]
        %v1204 = vld [vmem:[%s236 + $0x1cc0] sm:$0xff]
        %v1205 = vld [vmem:[%s236 + $0x1cc8] sm:$0xff]
        %v1206 = vld [vmem:[%s236 + $0x1cd0] sm:$0xff]
        %v1207 = vld [vmem:[%s236 + $0x1cd8] sm:$0xff]
        %v1208 = vld [vmem:[%s236 + $0x1ce0] sm:$0xff]
        %v1209 = vld [vmem:[%s236 + $0x1ce8] sm:$0xff]
        %v1210 = vld [vmem:[%s236 + $0x1cf0] sm:$0xff]
        %v1211 = vld [vmem:[%s236 + $0x1cf8] sm:$0xff]
        %v1212 = vld [vmem:[%s236 + $0x1d00] sm:$0xff]
        %v1213 = vld [vmem:[%s236 + $0x1d08] sm:$0xff]
        %v1214 = vld [vmem:[%s236 + $0x1d10] sm:$0xff]
        %v1215 = vld [vmem:[%s236 + $0x1d18] sm:$0xff]
        %v1216 = vld [vmem:[%s236 + $0x1d20] sm:$0xff]
        %v1217 = vld [vmem:[%s236 + $0x1d28] sm:$0xff]
        %v1218 = vld [vmem:[%s236 + $0x1d30] sm:$0xff]
        %v1219 = vld [vmem:[%s236 + $0x1d38] sm:$0xff]
        %v1220 = vld [vmem:[%s236 + $0x1d40] sm:$0xff]
        %v1221 = vld [vmem:[%s236 + $0x1d48] sm:$0xff]
        %v1222 = vld [vmem:[%s236 + $0x1d50] sm:$0xff]
        %v1223 = vld [vmem:[%s236 + $0x1d58] sm:$0xff]
        %v1224 = vld [vmem:[%s236 + $0x1d60] sm:$0xff]
        %v1225 = vld [vmem:[%s236 + $0x1d68] sm:$0xff]
        %v1226 = vld [vmem:[%s236 + $0x1d70] sm:$0xff]
        %v1227 = vld [vmem:[%s236 + $0x1d78] sm:$0xff]
        %v1228 = vld [vmem:[%s236 + $0x1d80] sm:$0xff]
        %v1229 = vld [vmem:[%s236 + $0x1d88] sm:$0xff]
        %v1230 = vld [vmem:[%s236 + $0x1d90] sm:$0xff]
        %v1231 = vld [vmem:[%s236 + $0x1d98] sm:$0xff]
        %v1232 = vld [vmem:[%s236 + $0x1da0] sm:$0xff]
        %v1233 = vld [vmem:[%s236 + $0x1da8] sm:$0xff]
        %v1234 = vld [vmem:[%s236 + $0x1db0] sm:$0xff]
        %v1235 = vld [vmem:[%s236 + $0x1db8] sm:$0xff]
        %v1236 = vld [vmem:[%s236 + $0x1dc0] sm:$0xff]
        %v1237 = vld [vmem:[%s236 + $0x1dc8] sm:$0xff]
        %v1238 = vld [vmem:[%s236 + $0x1dd0] sm:$0xff]
        %v1239 = vld [vmem:[%s236 + $0x1dd8] sm:$0xff]
        %v1240 = vld [vmem:[%s236 + $0x1de0] sm:$0xff]
        %v1241 = vld [vmem:[%s236 + $0x1de8] sm:$0xff]
        %v1242 = vld [vmem:[%s236 + $0x1df0] sm:$0xff]
        %v1243 = vld [vmem:[%s236 + $0x1df8] sm:$0xff]
        %v1244 = vld [vmem:[%s236 + $0x1e00] sm:$0xff]
        %v1245 = vld [vmem:[%s236 + $0x1e08] sm:$0xff]
        %v1246 = vld [vmem:[%s236 + $0x1e10] sm:$0xff]
        %v1247 = vld [vmem:[%s236 + $0x1e18] sm:$0xff]
        %v1248 = vld [vmem:[%s236 + $0x1e20] sm:$0xff]
        %v1249 = vld [vmem:[%s236 + $0x1e28] sm:$0xff]
        %v1250 = vld [vmem:[%s236 + $0x1e30] sm:$0xff]
        %v1251 = vld [vmem:[%s236 + $0x1e38] sm:$0xff]
        %v1252 = vld [vmem:[%s236 + $0x1e40] sm:$0xff]
        %v1253 = vld [vmem:[%s236 + $0x1e48] sm:$0xff]
        %v1254 = vld [vmem:[%s236 + $0x1e50] sm:$0xff]
        %v1255 = vld [vmem:[%s236 + $0x1e58] sm:$0xff]
        %v1256 = vld [vmem:[%s236 + $0x1e60] sm:$0xff]
        %v1257 = vld [vmem:[%s236 + $0x1e68] sm:$0xff]
        %v1258 = vld [vmem:[%s236 + $0x1e70] sm:$0xff]
        %v1259 = vld [vmem:[%s236 + $0x1e78] sm:$0xff]
        %v1260 = vld [vmem:[%s236 + $0x1e80] sm:$0xff]
        %v1261 = vld [vmem:[%s236 + $0x1e88] sm:$0xff]
        %v1262 = vld [vmem:[%s236 + $0x1e90] sm:$0xff]
        %v1263 = vld [vmem:[%s236 + $0x1e98] sm:$0xff]
        %v1264 = vld [vmem:[%s236 + $0x1ea0] sm:$0xff]
        %v1265 = vld [vmem:[%s236 + $0x1ea8] sm:$0xff]
        %v1266 = vld [vmem:[%s236 + $0x1eb0] sm:$0xff]
        %v1267 = vld [vmem:[%s236 + $0x1eb8] sm:$0xff]
        %v1268 = vld [vmem:[%s236 + $0x1ec0] sm:$0xff]
        %v1269 = vld [vmem:[%s236 + $0x1ec8] sm:$0xff]
        %v1270 = vld [vmem:[%s236 + $0x1ed0] sm:$0xff]
        %v1271 = vld [vmem:[%s236 + $0x1ed8] sm:$0xff]
        %v1272 = vld [vmem:[%s236 + $0x1ee0] sm:$0xff]
        %v1273 = vld [vmem:[%s236 + $0x1ee8] sm:$0xff]
        %v1274 = vld [vmem:[%s236 + $0x1ef0] sm:$0xff]
        %v1275 = vld [vmem:[%s236 + $0x1ef8] sm:$0xff]
        %v1276 = vld [vmem:[%s236 + $0x1f00] sm:$0xff]
        %v1277 = vld [vmem:[%s236 + $0x1f08] sm:$0xff]
        %v1278 = vld [vmem:[%s236 + $0x1f10] sm:$0xff]
        %v1279 = vld [vmem:[%s236 + $0x1f18] sm:$0xff]
        %v1280 = vld [vmem:[%s236 + $0x1f20] sm:$0xff]
        %v1281 = vld [vmem:[%s236 + $0x1f28] sm:$0xff]
        %v1282 = vld [vmem:[%s236 + $0x1f30] sm:$0xff]
        %v1283 = vld [vmem:[%s236 + $0x1f38] sm:$0xff]
        %v1284 = vld [vmem:[%s236 + $0x1f40] sm:$0xff]
        %v1285 = vld [vmem:[%s236 + $0x1f48] sm:$0xff]
        %v1286 = vld [vmem:[%s236 + $0x1f50] sm:$0xff]
        %v1287 = vld [vmem:[%s236 + $0x1f58] sm:$0xff]
        %v1288 = vld [vmem:[%s236 + $0x1f60] sm:$0xff]
        %v1289 = vld [vmem:[%s236 + $0x1f68] sm:$0xff]
        %v1290 = vld [vmem:[%s236 + $0x1f70] sm:$0xff]
        %v1291 = vld [vmem:[%s236 + $0x1f78] sm:$0xff]
        %v1292 = vld [vmem:[%s236 + $0x1f80] sm:$0xff]
        %v1293 = vld [vmem:[%s236 + $0x1f88] sm:$0xff]
        %v1294 = vld [vmem:[%s236 + $0x1f90] sm:$0xff]
        %v1295 = vld [vmem:[%s236 + $0x1f98] sm:$0xff]
        %v1296 = vld [vmem:[%s236 + $0x1fa0] sm:$0xff]
        %v1297 = vld [vmem:[%s236 + $0x1fa8] sm:$0xff]
        %v1298 = vld [vmem:[%s236 + $0x1fb0] sm:$0xff]
        %v1299 = vld [vmem:[%s236 + $0x1fb8] sm:$0xff]
        %v1300 = vld [vmem:[%s236 + $0x1fc0] sm:$0xff]
        %v1301 = vld [vmem:[%s236 + $0x1fc8] sm:$0xff]
        %v1302 = vld [vmem:[%s236 + $0x1fd0] sm:$0xff]
        %v1303 = vld [vmem:[%s236 + $0x1fd8] sm:$0xff]
        %v1304 = vld [vmem:[%s236 + $0x1fe0] sm:$0xff]
        %v1305 = vld [vmem:[%s236 + $0x1fe8] sm:$0xff]
        %v1306 = vld [vmem:[%s236 + $0x1ff0] sm:$0xff]
        %v1307 = vld [vmem:[%s236 + $0x1ff8] sm:$0xff]
        %v1312 = vcombine.high %v280, %v280
        %v1314 = vunpack.c.l.s4 1983009808
        %v1315 = vunpack.c.0.s8 %v1314
        %v1316 = vlaneseq
        %v1317 = vshrl.u32 %v1316, 7
        %v1318 = vsub.s32 %v1315, %v1317
        %v1319 = vrot.slane %v280, %v1318
        %v1321 = vunpack.c.l.s4 1983009808
        %v1322 = vunpack.c.0.s8 %v1321
        %v1323 = vlaneseq
        %v1324 = vshrl.u32 %v1323, 7
        %v1325 = vsub.s32 %v1322, %v1324
        %v1326 = vrot.slane %v1312, %v1325
        %v1327 = vcombine.high %v1319, %v1319
        %v1328 = vcombine.high %v1326, %v1326
        %v1329 = vcombine.high %v281, %v281
        %v1331 = vunpack.c.l.s4 1983009808
        %v1332 = vunpack.c.0.s8 %v1331
        %v1333 = vlaneseq
        %v1334 = vshrl.u32 %v1333, 7
        %v1335 = vsub.s32 %v1332, %v1334
        %v1336 = vrot.slane %v281, %v1335
        %v1338 = vunpack.c.l.s4 1983009808
        %v1339 = vunpack.c.0.s8 %v1338
        %v1340 = vlaneseq
        %v1341 = vshrl.u32 %v1340, 7
        %v1342 = vsub.s32 %v1339, %v1341
        %v1343 = vrot.slane %v1329, %v1342
        %v1344 = vcombine.high %v1336, %v1336
        %v1345 = vcombine.high %v1343, %v1343
        %v1346 = vcombine.high %v282, %v282
        %v1348 = vunpack.c.l.s4 1983009808
        %v1349 = vunpack.c.0.s8 %v1348
        %v1350 = vlaneseq
        %v1351 = vshrl.u32 %v1350, 7
        %v1352 = vsub.s32 %v1349, %v1351
        %v1353 = vrot.slane %v282, %v1352
        %v1355 = vunpack.c.l.s4 1983009808
        %v1356 = vunpack.c.0.s8 %v1355
        %v1357 = vlaneseq
        %v1358 = vshrl.u32 %v1357, 7
        %v1359 = vsub.s32 %v1356, %v1358
        %v1360 = vrot.slane %v1346, %v1359
        %v1361 = vcombine.high %v1353, %v1353
        %v1362 = vcombine.high %v1360, %v1360
        %v1363 = vcombine.high %v283, %v283
        %v1365 = vunpack.c.l.s4 1983009808
        %v1366 = vunpack.c.0.s8 %v1365
        %v1367 = vlaneseq
        %v1368 = vshrl.u32 %v1367, 7
        %v1369 = vsub.s32 %v1366, %v1368
        %v1370 = vrot.slane %v283, %v1369
        %v1372 = vunpack.c.l.s4 1983009808
        %v1373 = vunpack.c.0.s8 %v1372
        %v1374 = vlaneseq
        %v1375 = vshrl.u32 %v1374, 7
        %v1376 = vsub.s32 %v1373, %v1375
        %v1377 = vrot.slane %v1363, %v1376
        %v1378 = vcombine.high %v1370, %v1370
        %v1379 = vcombine.high %v1377, %v1377
        %1396 = vmatprep.subr.mxu0 %v285
        %1397 = vmatpush1.msra.mxu0 %v284
        %1398 = vmatprep.subr.mxu0 %v289
        %1399 = vmatpush1.msra.mxu0 %v288
        %1400 = vmatprep.subr.mxu0 %v293
        %1401 = vmatpush1.msra.mxu0 %v292
        %1402 = vmatprep.subr.mxu0 %v297
        %1403 = vmatpush1.msra.mxu0 %v296
        %1404 = vmatprep.subr.mxu0 %v301
        %1405 = vmatpush1.msra.mxu0 %v300
        %1406 = vmatprep.subr.mxu0 %v305
        %1407 = vmatpush1.msra.mxu0 %v304
        %1408 = vmatprep.subr.mxu0 %v309
        %1409 = vmatpush1.msra.mxu0 %v308
        %1410 = vmatprep.subr.mxu0 %v313
        %1411 = vmatpush1.msra.mxu0 %v312
        %1412 = vmatprep.subr.mxu0 %v317
        %1413 = vmatpush1.msra.mxu0 %v316
        %1414 = vmatprep.subr.mxu0 %v321
        %1415 = vmatpush1.msra.mxu0 %v320
        %1416 = vmatprep.subr.mxu0 %v325
        %1417 = vmatpush1.msra.mxu0 %v324
        %1418 = vmatprep.subr.mxu0 %v329
        %1419 = vmatpush1.msra.mxu0 %v328
        %1420 = vmatprep.subr.mxu0 %v333
        %1421 = vmatpush1.msra.mxu0 %v332
        %1422 = vmatprep.subr.mxu0 %v337
        %1423 = vmatpush1.msra.mxu0 %v336
        %1424 = vmatprep.subr.mxu0 %v341
        %1425 = vmatpush1.msra.mxu0 %v340
        %1426 = vmatprep.subr.mxu0 %v345
        %1427 = vmatpush1.msra.mxu0 %v344
        %1428 = vmatprep.subr.mxu0 %v349
        %1429 = vmatpush1.msra.mxu0 %v348
        %1430 = vmatprep.subr.mxu0 %v353
        %1431 = vmatpush1.msra.mxu0 %v352
        %1432 = vmatprep.subr.mxu0 %v357
        %1433 = vmatpush1.msra.mxu0 %v356
        %1434 = vmatprep.subr.mxu0 %v361
        %1435 = vmatpush1.msra.mxu0 %v360
        %1436 = vmatprep.subr.mxu0 %v365
        %1437 = vmatpush1.msra.mxu0 %v364
        %1438 = vmatprep.subr.mxu0 %v369
        %1439 = vmatpush1.msra.mxu0 %v368
        %1440 = vmatprep.subr.mxu0 %v373
        %1441 = vmatpush1.msra.mxu0 %v372
        %1442 = vmatprep.subr.mxu0 %v377
        %1443 = vmatpush1.msra.mxu0 %v376
        %1444 = vmatprep.subr.mxu0 %v381
        %1445 = vmatpush1.msra.mxu0 %v380
        %1446 = vmatprep.subr.mxu0 %v385
        %1447 = vmatpush1.msra.mxu0 %v384
        %1448 = vmatprep.subr.mxu0 %v389
        %1449 = vmatpush1.msra.mxu0 %v388
        %1450 = vmatprep.subr.mxu0 %v393
        %1451 = vmatpush1.msra.mxu0 %v392
        %1452 = vmatprep.subr.mxu0 %v397
        %1453 = vmatpush1.msra.mxu0 %v396
        %1454 = vmatprep.subr.mxu0 %v401
        %1455 = vmatpush1.msra.mxu0 %v400
        %1456 = vmatprep.subr.mxu0 %v405
        %1457 = vmatpush1.msra.mxu0 %v404
        %1458 = vmatprep.subr.mxu0 %v409
        %1459 = vmatpush1.msra.mxu0 %v408
        %1460 = vmatprep.mubr.f32.mxu0 %v1327
        %1461 = vmatmul.mubr.f32.gmra.mrb[0].mxu0 %v1319
        %v1462 = vpop.f32.mrb[0].mxu0
        %v1463 = vadd.f32 0.0, %v1462
        %v1464 = vpop.f32.mrb[0].mxu0
        %v1465 = vadd.f32 0.0, %v1464
        %1466 = vdwg.mxu0
        %1467 = vmatprep.subr.mxu0 %v413
        %1468 = vmatpush1.msra.mxu0 %v412
        %1469 = vmatprep.subr.mxu0 %v417
        %1470 = vmatpush1.msra.mxu0 %v416
        %1471 = vmatprep.subr.mxu0 %v421
        %1472 = vmatpush1.msra.mxu0 %v420
        %1473 = vmatprep.subr.mxu0 %v425
        %1474 = vmatpush1.msra.mxu0 %v424
        %1475 = vmatprep.subr.mxu0 %v429
        %1476 = vmatpush1.msra.mxu0 %v428
        %1477 = vmatprep.subr.mxu0 %v433
        %1478 = vmatpush1.msra.mxu0 %v432
        %1479 = vmatprep.subr.mxu0 %v437
        %1480 = vmatpush1.msra.mxu0 %v436
        %1481 = vmatprep.subr.mxu0 %v441
        %1482 = vmatpush1.msra.mxu0 %v440
        %1483 = vmatprep.subr.mxu0 %v445
        %1484 = vmatpush1.msra.mxu0 %v444
        %1485 = vmatprep.subr.mxu0 %v449
        %1486 = vmatpush1.msra.mxu0 %v448
        %1487 = vmatprep.subr.mxu0 %v453
        %1488 = vmatpush1.msra.mxu0 %v452
        %1489 = vmatprep.subr.mxu0 %v457
        %1490 = vmatpush1.msra.mxu0 %v456
        %1491 = vmatprep.subr.mxu0 %v461
        %1492 = vmatpush1.msra.mxu0 %v460
        %1493 = vmatprep.subr.mxu0 %v465
        %1494 = vmatpush1.msra.mxu0 %v464
        %1495 = vmatprep.subr.mxu0 %v469
        %1496 = vmatpush1.msra.mxu0 %v468
        %1497 = vmatprep.subr.mxu0 %v473
        %1498 = vmatpush1.msra.mxu0 %v472
        %1499 = vmatprep.subr.mxu0 %v477
        %1500 = vmatpush1.msra.mxu0 %v476
        %1501 = vmatprep.subr.mxu0 %v481
        %1502 = vmatpush1.msra.mxu0 %v480
        %1503 = vmatprep.subr.mxu0 %v485
        %1504 = vmatpush1.msra.mxu0 %v484
        %1505 = vmatprep.subr.mxu0 %v489
        %1506 = vmatpush1.msra.mxu0 %v488
        %1507 = vmatprep.subr.mxu0 %v493
        %1508 = vmatpush1.msra.mxu0 %v492
        %1509 = vmatprep.subr.mxu0 %v497
        %1510 = vmatpush1.msra.mxu0 %v496
        %1511 = vmatprep.subr.mxu0 %v501
        %1512 = vmatpush1.msra.mxu0 %v500
        %1513 = vmatprep.subr.mxu0 %v505
        %1514 = vmatpush1.msra.mxu0 %v504
        %1515 = vmatprep.subr.mxu0 %v509
        %1516 = vmatpush1.msra.mxu0 %v508
        %1517 = vmatprep.subr.mxu0 %v513
        %1518 = vmatpush1.msra.mxu0 %v512
        %1519 = vmatprep.subr.mxu0 %v517
        %1520 = vmatpush1.msra.mxu0 %v516
        %1521 = vmatprep.subr.mxu0 %v521
        %1522 = vmatpush1.msra.mxu0 %v520
        %1523 = vmatprep.subr.mxu0 %v525
        %1524 = vmatpush1.msra.mxu0 %v524
        %1525 = vmatprep.subr.mxu0 %v529
        %1526 = vmatpush1.msra.mxu0 %v528
        %1527 = vmatprep.subr.mxu0 %v533
        %1528 = vmatpush1.msra.mxu0 %v532
        %1529 = vmatprep.subr.mxu0 %v537
        %1530 = vmatpush1.msra.mxu0 %v536
        %1531 = vmatprep.mubr.f32.mxu0 %v1328
        %1532 = vmatmul.mubr.f32.gmra.mrb[0].mxu0 %v1326
        %v1533 = vpop.f32.mrb[0].mxu0
        %v1534 = vadd.f32 %v1463, %v1533
        %v1535 = vpop.f32.mrb[0].mxu0
        %v1536 = vadd.f32 %v1465, %v1535
        %1537 = vdwg.mxu0
        %1538 = vmatprep.subr.mxu0 %v541
        %1539 = vmatpush1.msra.mxu0 %v540
        %1540 = vmatprep.subr.mxu0 %v545
        %1541 = vmatpush1.msra.mxu0 %v544
        %1542 = vmatprep.subr.mxu0 %v549
        %1543 = vmatpush1.msra.mxu0 %v548
        %1544 = vmatprep.subr.mxu0 %v553
        %1545 = vmatpush1.msra.mxu0 %v552
        %1546 = vmatprep.subr.mxu0 %v557
        %1547 = vmatpush1.msra.mxu0 %v556
        %1548 = vmatprep.subr.mxu0 %v561
        %1549 = vmatpush1.msra.mxu0 %v560
        %1550 = vmatprep.subr.mxu0 %v565
        %1551 = vmatpush1.msra.mxu0 %v564
        %1552 = vmatprep.subr.mxu0 %v569
        %1553 = vmatpush1.msra.mxu0 %v568
        %1554 = vmatprep.subr.mxu0 %v573
        %1555 = vmatpush1.msra.mxu0 %v572
        %1556 = vmatprep.subr.mxu0 %v577
        %1557 = vmatpush1.msra.mxu0 %v576
        %1558 = vmatprep.subr.mxu0 %v581
        %1559 = vmatpush1.msra.mxu0 %v580
        %1560 = vmatprep.subr.mxu0 %v585
        %1561 = vmatpush1.msra.mxu0 %v584
        %1562 = vmatprep.subr.mxu0 %v589
        %1563 = vmatpush1.msra.mxu0 %v588
        %1564 = vmatprep.subr.mxu0 %v593
        %1565 = vmatpush1.msra.mxu0 %v592
        %1566 = vmatprep.subr.mxu0 %v597
        %1567 = vmatpush1.msra.mxu0 %v596
        %1568 = vmatprep.subr.mxu0 %v601
        %1569 = vmatpush1.msra.mxu0 %v600
        %1570 = vmatprep.subr.mxu0 %v605
        %1571 = vmatpush1.msra.mxu0 %v604
        %1572 = vmatprep.subr.mxu0 %v609
        %1573 = vmatpush1.msra.mxu0 %v608
        %1574 = vmatprep.subr.mxu0 %v613
        %1575 = vmatpush1.msra.mxu0 %v612
        %1576 = vmatprep.subr.mxu0 %v617
        %1577 = vmatpush1.msra.mxu0 %v616
        %1578 = vmatprep.subr.mxu0 %v621
        %1579 = vmatpush1.msra.mxu0 %v620
        %1580 = vmatprep.subr.mxu0 %v625
        %1581 = vmatpush1.msra.mxu0 %v624
        %1582 = vmatprep.subr.mxu0 %v629
        %1583 = vmatpush1.msra.mxu0 %v628
        %1584 = vmatprep.subr.mxu0 %v633
        %1585 = vmatpush1.msra.mxu0 %v632
        %1586 = vmatprep.subr.mxu0 %v637
        %1587 = vmatpush1.msra.mxu0 %v636
        %1588 = vmatprep.subr.mxu0 %v641
        %1589 = vmatpush1.msra.mxu0 %v640
        %1590 = vmatprep.subr.mxu0 %v645
        %1591 = vmatpush1.msra.mxu0 %v644
        %1592 = vmatprep.subr.mxu0 %v649
        %1593 = vmatpush1.msra.mxu0 %v648
        %1594 = vmatprep.subr.mxu0 %v653
        %1595 = vmatpush1.msra.mxu0 %v652
        %1596 = vmatprep.subr.mxu0 %v657
        %1597 = vmatpush1.msra.mxu0 %v656
        %1598 = vmatprep.subr.mxu0 %v661
        %1599 = vmatpush1.msra.mxu0 %v660
        %1600 = vmatprep.subr.mxu0 %v665
        %1601 = vmatpush1.msra.mxu0 %v664
        %1602 = vmatprep.mubr.f32.mxu0 %v1344
        %1603 = vmatmul.mubr.f32.gmra.mrb[0].mxu0 %v1336
        %v1604 = vpop.f32.mrb[0].mxu0
        %v1605 = vadd.f32 %v1534, %v1604
        %v1606 = vpop.f32.mrb[0].mxu0
        %v1607 = vadd.f32 %v1536, %v1606
        %1608 = vdwg.mxu0
        %1609 = vmatprep.subr.mxu0 %v669
        %1610 = vmatpush1.msra.mxu0 %v668
        %1611 = vmatprep.subr.mxu0 %v673
        %1612 = vmatpush1.msra.mxu0 %v672
        %1613 = vmatprep.subr.mxu0 %v677
        %1614 = vmatpush1.msra.mxu0 %v676
        %1615 = vmatprep.subr.mxu0 %v681
        %1616 = vmatpush1.msra.mxu0 %v680
        %1617 = vmatprep.subr.mxu0 %v685
        %1618 = vmatpush1.msra.mxu0 %v684
        %1619 = vmatprep.subr.mxu0 %v689
        %1620 = vmatpush1.msra.mxu0 %v688
        %1621 = vmatprep.subr.mxu0 %v693
        %1622 = vmatpush1.msra.mxu0 %v692
        %1623 = vmatprep.subr.mxu0 %v697
        %1624 = vmatpush1.msra.mxu0 %v696
        %1625 = vmatprep.subr.mxu0 %v701
        %1626 = vmatpush1.msra.mxu0 %v700
        %1627 = vmatprep.subr.mxu0 %v705
        %1628 = vmatpush1.msra.mxu0 %v704
        %1629 = vmatprep.subr.mxu0 %v709
        %1630 = vmatpush1.msra.mxu0 %v708
        %1631 = vmatprep.subr.mxu0 %v713
        %1632 = vmatpush1.msra.mxu0 %v712
        %1633 = vmatprep.subr.mxu0 %v717
        %1634 = vmatpush1.msra.mxu0 %v716
        %1635 = vmatprep.subr.mxu0 %v721
        %1636 = vmatpush1.msra.mxu0 %v720
        %1637 = vmatprep.subr.mxu0 %v725
        %1638 = vmatpush1.msra.mxu0 %v724
        %1639 = vmatprep.subr.mxu0 %v729
        %1640 = vmatpush1.msra.mxu0 %v728
        %1641 = vmatprep.subr.mxu0 %v733
        %1642 = vmatpush1.msra.mxu0 %v732
        %1643 = vmatprep.subr.mxu0 %v737
        %1644 = vmatpush1.msra.mxu0 %v736
        %1645 = vmatprep.subr.mxu0 %v741
        %1646 = vmatpush1.msra.mxu0 %v740
        %1647 = vmatprep.subr.mxu0 %v745
        %1648 = vmatpush1.msra.mxu0 %v744
        %1649 = vmatprep.subr.mxu0 %v749
        %1650 = vmatpush1.msra.mxu0 %v748
        %1651 = vmatprep.subr.mxu0 %v753
        %1652 = vmatpush1.msra.mxu0 %v752
        %1653 = vmatprep.subr.mxu0 %v757
        %1654 = vmatpush1.msra.mxu0 %v756
        %1655 = vmatprep.subr.mxu0 %v761
        %1656 = vmatpush1.msra.mxu0 %v760
        %1657 = vmatprep.subr.mxu0 %v765
        %1658 = vmatpush1.msra.mxu0 %v764
        %1659 = vmatprep.subr.mxu0 %v769
        %1660 = vmatpush1.msra.mxu0 %v768
        %1661 = vmatprep.subr.mxu0 %v773
        %1662 = vmatpush1.msra.mxu0 %v772
        %1663 = vmatprep.subr.mxu0 %v777
        %1664 = vmatpush1.msra.mxu0 %v776
        %1665 = vmatprep.subr.mxu0 %v781
        %1666 = vmatpush1.msra.mxu0 %v780
        %1667 = vmatprep.subr.mxu0 %v785
        %1668 = vmatpush1.msra.mxu0 %v784
        %1669 = vmatprep.subr.mxu0 %v789
        %1670 = vmatpush1.msra.mxu0 %v788
        %1671 = vmatprep.subr.mxu0 %v793
        %1672 = vmatpush1.msra.mxu0 %v792
        %1673 = vmatprep.mubr.f32.mxu0 %v1345
        %1674 = vmatmul.mubr.f32.gmra.mrb[0].mxu0 %v1343
        %v1675 = vpop.f32.mrb[0].mxu0
        %v1676 = vadd.f32 %v1605, %v1675
        %v1677 = vpop.f32.mrb[0].mxu0
        %v1678 = vadd.f32 %v1607, %v1677
        %1679 = vdwg.mxu0
        %1680 = vmatprep.subr.mxu0 %v797
        %1681 = vmatpush1.msra.mxu0 %v796
        %1682 = vmatprep.subr.mxu0 %v801
        %1683 = vmatpush1.msra.mxu0 %v800
        %1684 = vmatprep.subr.mxu0 %v805
        %1685 = vmatpush1.msra.mxu0 %v804
        %1686 = vmatprep.subr.mxu0 %v809
        %1687 = vmatpush1.msra.mxu0 %v808
        %1688 = vmatprep.subr.mxu0 %v813
        %1689 = vmatpush1.msra.mxu0 %v812
        %1690 = vmatprep.subr.mxu0 %v817
        %1691 = vmatpush1.msra.mxu0 %v816
        %1692 = vmatprep.subr.mxu0 %v821
        %1693 = vmatpush1.msra.mxu0 %v820
        %1694 = vmatprep.subr.mxu0 %v825
        %1695 = vmatpush1.msra.mxu0 %v824
        %1696 = vmatprep.subr.mxu0 %v829
        %1697 = vmatpush1.msra.mxu0 %v828
        %1698 = vmatprep.subr.mxu0 %v833
        %1699 = vmatpush1.msra.mxu0 %v832
        %1700 = vmatprep.subr.mxu0 %v837
        %1701 = vmatpush1.msra.mxu0 %v836
        %1702 = vmatprep.subr.mxu0 %v841
        %1703 = vmatpush1.msra.mxu0 %v840
        %1704 = vmatprep.subr.mxu0 %v845
        %1705 = vmatpush1.msra.mxu0 %v844
        %1706 = vmatprep.subr.mxu0 %v849
        %1707 = vmatpush1.msra.mxu0 %v848
        %1708 = vmatprep.subr.mxu0 %v853
        %1709 = vmatpush1.msra.mxu0 %v852
        %1710 = vmatprep.subr.mxu0 %v857
        %1711 = vmatpush1.msra.mxu0 %v856
        %1712 = vmatprep.subr.mxu0 %v861
        %1713 = vmatpush1.msra.mxu0 %v860
        %1714 = vmatprep.subr.mxu0 %v865
        %1715 = vmatpush1.msra.mxu0 %v864
        %1716 = vmatprep.subr.mxu0 %v869
        %1717 = vmatpush1.msra.mxu0 %v868
        %1718 = vmatprep.subr.mxu0 %v873
        %1719 = vmatpush1.msra.mxu0 %v872
        %1720 = vmatprep.subr.mxu0 %v877
        %1721 = vmatpush1.msra.mxu0 %v876
        %1722 = vmatprep.subr.mxu0 %v881
        %1723 = vmatpush1.msra.mxu0 %v880
        %1724 = vmatprep.subr.mxu0 %v885
        %1725 = vmatpush1.msra.mxu0 %v884
        %1726 = vmatprep.subr.mxu0 %v889
        %1727 = vmatpush1.msra.mxu0 %v888
        %1728 = vmatprep.subr.mxu0 %v893
        %1729 = vmatpush1.msra.mxu0 %v892
        %1730 = vmatprep.subr.mxu0 %v897
        %1731 = vmatpush1.msra.mxu0 %v896
        %1732 = vmatprep.subr.mxu0 %v901
        %1733 = vmatpush1.msra.mxu0 %v900
        %1734 = vmatprep.subr.mxu0 %v905
        %1735 = vmatpush1.msra.mxu0 %v904
        %1736 = vmatprep.subr.mxu0 %v909
        %1737 = vmatpush1.msra.mxu0 %v908
        %1738 = vmatprep.subr.mxu0 %v913
        %1739 = vmatpush1.msra.mxu0 %v912
        %1740 = vmatprep.subr.mxu0 %v917
        %1741 = vmatpush1.msra.mxu0 %v916
        %1742 = vmatprep.subr.mxu0 %v921
        %1743 = vmatpush1.msra.mxu0 %v920
        %1744 = vmatprep.mubr.f32.mxu0 %v1361
        %1745 = vmatmul.mubr.f32.gmra.mrb[0].mxu0 %v1353
        %v1746 = vpop.f32.mrb[0].mxu0
        %v1747 = vadd.f32 %v1676, %v1746
        %v1748 = vpop.f32.mrb[0].mxu0
        %v1749 = vadd.f32 %v1678, %v1748
        %1750 = vdwg.mxu0
        %1751 = vmatprep.subr.mxu0 %v925
        %1752 = vmatpush1.msra.mxu0 %v924
        %1753 = vmatprep.subr.mxu0 %v929
        %1754 = vmatpush1.msra.mxu0 %v928
        %1755 = vmatprep.subr.mxu0 %v933
        %1756 = vmatpush1.msra.mxu0 %v932
        %1757 = vmatprep.subr.mxu0 %v937
        %1758 = vmatpush1.msra.mxu0 %v936
        %1759 = vmatprep.subr.mxu0 %v941
        %1760 = vmatpush1.msra.mxu0 %v940
        %1761 = vmatprep.subr.mxu0 %v945
        %1762 = vmatpush1.msra.mxu0 %v944
        %1763 = vmatprep.subr.mxu0 %v949
        %1764 = vmatpush1.msra.mxu0 %v948
        %1765 = vmatprep.subr.mxu0 %v953
        %1766 = vmatpush1.msra.mxu0 %v952
        %1767 = vmatprep.subr.mxu0 %v957
        %1768 = vmatpush1.msra.mxu0 %v956
        %1769 = vmatprep.subr.mxu0 %v961
        %1770 = vmatpush1.msra.mxu0 %v960
        %1771 = vmatprep.subr.mxu0 %v965
        %1772 = vmatpush1.msra.mxu0 %v964
        %1773 = vmatprep.subr.mxu0 %v969
        %1774 = vmatpush1.msra.mxu0 %v968
        %1775 = vmatprep.subr.mxu0 %v973
        %1776 = vmatpush1.msra.mxu0 %v972
        %1777 = vmatprep.subr.mxu0 %v977
        %1778 = vmatpush1.msra.mxu0 %v976
        %1779 = vmatprep.subr.mxu0 %v981
        %1780 = vmatpush1.msra.mxu0 %v980
        %1781 = vmatprep.subr.mxu0 %v985
        %1782 = vmatpush1.msra.mxu0 %v984
        %1783 = vmatprep.subr.mxu0 %v989
        %1784 = vmatpush1.msra.mxu0 %v988
        %1785 = vmatprep.subr.mxu0 %v993
        %1786 = vmatpush1.msra.mxu0 %v992
        %1787 = vmatprep.subr.mxu0 %v997
        %1788 = vmatpush1.msra.mxu0 %v996
        %1789 = vmatprep.subr.mxu0 %v1001
        %1790 = vmatpush1.msra.mxu0 %v1000
        %1791 = vmatprep.subr.mxu0 %v1005
        %1792 = vmatpush1.msra.mxu0 %v1004
        %1793 = vmatprep.subr.mxu0 %v1009
        %1794 = vmatpush1.msra.mxu0 %v1008
        %1795 = vmatprep.subr.mxu0 %v1013
        %1796 = vmatpush1.msra.mxu0 %v1012
        %1797 = vmatprep.subr.mxu0 %v1017
        %1798 = vmatpush1.msra.mxu0 %v1016
        %1799 = vmatprep.subr.mxu0 %v1021
        %1800 = vmatpush1.msra.mxu0 %v1020
        %1801 = vmatprep.subr.mxu0 %v1025
        %1802 = vmatpush1.msra.mxu0 %v1024
        %1803 = vmatprep.subr.mxu0 %v1029
        %1804 = vmatpush1.msra.mxu0 %v1028
        %1805 = vmatprep.subr.mxu0 %v1033
        %1806 = vmatpush1.msra.mxu0 %v1032
        %1807 = vmatprep.subr.mxu0 %v1037
        %1808 = vmatpush1.msra.mxu0 %v1036
        %1809 = vmatprep.subr.mxu0 %v1041
        %1810 = vmatpush1.msra.mxu0 %v1040
        %1811 = vmatprep.subr.mxu0 %v1045
        %1812 = vmatpush1.msra.mxu0 %v1044
        %1813 = vmatprep.subr.mxu0 %v1049
        %1814 = vmatpush1.msra.mxu0 %v1048
        %1815 = vmatprep.mubr.f32.mxu0 %v1362
        %1816 = vmatmul.mubr.f32.gmra.mrb[0].mxu0 %v1360
        %v1817 = vpop.f32.mrb[0].mxu0
        %v1818 = vadd.f32 %v1747, %v1817
        %v1819 = vpop.f32.mrb[0].mxu0
        %v1820 = vadd.f32 %v1749, %v1819
        %1821 = vdwg.mxu0
        %1822 = vmatprep.subr.mxu0 %v1053
        %1823 = vmatpush1.msra.mxu0 %v1052
        %1824 = vmatprep.subr.mxu0 %v1057
        %1825 = vmatpush1.msra.mxu0 %v1056
        %1826 = vmatprep.subr.mxu0 %v1061
        %1827 = vmatpush1.msra.mxu0 %v1060
        %1828 = vmatprep.subr.mxu0 %v1065
        %1829 = vmatpush1.msra.mxu0 %v1064
        %1830 = vmatprep.subr.mxu0 %v1069
        %1831 = vmatpush1.msra.mxu0 %v1068
        %1832 = vmatprep.subr.mxu0 %v1073
        %1833 = vmatpush1.msra.mxu0 %v1072
        %1834 = vmatprep.subr.mxu0 %v1077
        %1835 = vmatpush1.msra.mxu0 %v1076
        %1836 = vmatprep.subr.mxu0 %v1081
        %1837 = vmatpush1.msra.mxu0 %v1080
        %1838 = vmatprep.subr.mxu0 %v1085
        %1839 = vmatpush1.msra.mxu0 %v1084
        %1840 = vmatprep.subr.mxu0 %v1089
        %1841 = vmatpush1.msra.mxu0 %v1088
        %1842 = vmatprep.subr.mxu0 %v1093
        %1843 = vmatpush1.msra.mxu0 %v1092
        %1844 = vmatprep.subr.mxu0 %v1097
        %1845 = vmatpush1.msra.mxu0 %v1096
        %1846 = vmatprep.subr.mxu0 %v1101
        %1847 = vmatpush1.msra.mxu0 %v1100
        %1848 = vmatprep.subr.mxu0 %v1105
        %1849 = vmatpush1.msra.mxu0 %v1104
        %1850 = vmatprep.subr.mxu0 %v1109
        %1851 = vmatpush1.msra.mxu0 %v1108
        %1852 = vmatprep.subr.mxu0 %v1113
        %1853 = vmatpush1.msra.mxu0 %v1112
        %1854 = vmatprep.subr.mxu0 %v1117
        %1855 = vmatpush1.msra.mxu0 %v1116
        %1856 = vmatprep.subr.mxu0 %v1121
        %1857 = vmatpush1.msra.mxu0 %v1120
        %1858 = vmatprep.subr.mxu0 %v1125
        %1859 = vmatpush1.msra.mxu0 %v1124
        %1860 = vmatprep.subr.mxu0 %v1129
        %1861 = vmatpush1.msra.mxu0 %v1128
        %1862 = vmatprep.subr.mxu0 %v1133
        %1863 = vmatpush1.msra.mxu0 %v1132
        %1864 = vmatprep.subr.mxu0 %v1137
        %1865 = vmatpush1.msra.mxu0 %v1136
        %1866 = vmatprep.subr.mxu0 %v1141
        %1867 = vmatpush1.msra.mxu0 %v1140
        %1868 = vmatprep.subr.mxu0 %v1145
        %1869 = vmatpush1.msra.mxu0 %v1144
        %1870 = vmatprep.subr.mxu0 %v1149
        %1871 = vmatpush1.msra.mxu0 %v1148
        %1872 = vmatprep.subr.mxu0 %v1153
        %1873 = vmatpush1.msra.mxu0 %v1152
        %1874 = vmatprep.subr.mxu0 %v1157
        %1875 = vmatpush1.msra.mxu0 %v1156
        %1876 = vmatprep.subr.mxu0 %v1161
        %1877 = vmatpush1.msra.mxu0 %v1160
        %1878 = vmatprep.subr.mxu0 %v1165
        %1879 = vmatpush1.msra.mxu0 %v1164
        %1880 = vmatprep.subr.mxu0 %v1169
        %1881 = vmatpush1.msra.mxu0 %v1168
        %1882 = vmatprep.subr.mxu0 %v1173
        %1883 = vmatpush1.msra.mxu0 %v1172
        %1884 = vmatprep.subr.mxu0 %v1177
        %1885 = vmatpush1.msra.mxu0 %v1176
        %1886 = vmatprep.mubr.f32.mxu0 %v1378
        %1887 = vmatmul.mubr.f32.gmra.mrb[0].mxu0 %v1370
        %v1888 = vpop.f32.mrb[0].mxu0
        %v1889 = vadd.f32 %v1818, %v1888
        %v1890 = vpop.f32.mrb[0].mxu0
        %v1891 = vadd.f32 %v1820, %v1890
        %1892 = vdwg.mxu0
        %1893 = vmatprep.subr.mxu0 %v1181
        %1894 = vmatpush1.msra.mxu0 %v1180
        %1895 = vmatprep.subr.mxu0 %v1185
        %1896 = vmatpush1.msra.mxu0 %v1184
        %1897 = vmatprep.subr.mxu0 %v1189
        %1898 = vmatpush1.msra.mxu0 %v1188
        %1899 = vmatprep.subr.mxu0 %v1193
        %1900 = vmatpush1.msra.mxu0 %v1192
        %1901 = vmatprep.subr.mxu0 %v1197
        %1902 = vmatpush1.msra.mxu0 %v1196
        %1903 = vmatprep.subr.mxu0 %v1201
        %1904 = vmatpush1.msra.mxu0 %v1200
        %1905 = vmatprep.subr.mxu0 %v1205
        %1906 = vmatpush1.msra.mxu0 %v1204
        %1907 = vmatprep.subr.mxu0 %v1209
        %1908 = vmatpush1.msra.mxu0 %v1208
        %1909 = vmatprep.subr.mxu0 %v1213
        %1910 = vmatpush1.msra.mxu0 %v1212
        %1911 = vmatprep.subr.mxu0 %v1217
        %1912 = vmatpush1.msra.mxu0 %v1216
        %1913 = vmatprep.subr.mxu0 %v1221
        %1914 = vmatpush1.msra.mxu0 %v1220
        %1915 = vmatprep.subr.mxu0 %v1225
        %1916 = vmatpush1.msra.mxu0 %v1224
        %1917 = vmatprep.subr.mxu0 %v1229
        %1918 = vmatpush1.msra.mxu0 %v1228
        %1919 = vmatprep.subr.mxu0 %v1233
        %1920 = vmatpush1.msra.mxu0 %v1232
        %1921 = vmatprep.subr.mxu0 %v1237
        %1922 = vmatpush1.msra.mxu0 %v1236
        %1923 = vmatprep.subr.mxu0 %v1241
        %1924 = vmatpush1.msra.mxu0 %v1240
        %1925 = vmatprep.subr.mxu0 %v1245
        %1926 = vmatpush1.msra.mxu0 %v1244
        %1927 = vmatprep.subr.mxu0 %v1249
        %1928 = vmatpush1.msra.mxu0 %v1248
        %1929 = vmatprep.subr.mxu0 %v1253
        %1930 = vmatpush1.msra.mxu0 %v1252
        %1931 = vmatprep.subr.mxu0 %v1257
        %1932 = vmatpush1.msra.mxu0 %v1256
        %1933 = vmatprep.subr.mxu0 %v1261
        %1934 = vmatpush1.msra.mxu0 %v1260
        %1935 = vmatprep.subr.mxu0 %v1265
        %1936 = vmatpush1.msra.mxu0 %v1264
        %1937 = vmatprep.subr.mxu0 %v1269
        %1938 = vmatpush1.msra.mxu0 %v1268
        %1939 = vmatprep.subr.mxu0 %v1273
        %1940 = vmatpush1.msra.mxu0 %v1272
        %1941 = vmatprep.subr.mxu0 %v1277
        %1942 = vmatpush1.msra.mxu0 %v1276
        %1943 = vmatprep.subr.mxu0 %v1281
        %1944 = vmatpush1.msra.mxu0 %v1280
        %1945 = vmatprep.subr.mxu0 %v1285
        %1946 = vmatpush1.msra.mxu0 %v1284
        %1947 = vmatprep.subr.mxu0 %v1289
        %1948 = vmatpush1.msra.mxu0 %v1288
        %1949 = vmatprep.subr.mxu0 %v1293
        %1950 = vmatpush1.msra.mxu0 %v1292
        %1951 = vmatprep.subr.mxu0 %v1297
        %1952 = vmatpush1.msra.mxu0 %v1296
        %1953 = vmatprep.subr.mxu0 %v1301
        %1954 = vmatpush1.msra.mxu0 %v1300
        %1955 = vmatprep.subr.mxu0 %v1305
        %1956 = vmatpush1.msra.mxu0 %v1304
        %1957 = vmatprep.mubr.f32.mxu0 %v1379
        %1958 = vmatmul.mubr.f32.gmra.mrb[0].mxu0 %v1377
        %v1959 = vpop.f32.mrb[0].mxu0
        %v1960 = vadd.f32 %v1889, %v1959
        %v1961 = vpop.f32.mrb[0].mxu0
        %v1962 = vadd.f32 %v1891, %v1961
        %1963 = vdwg.mxu0
        %1964 = vmatprep.subr.mxu0 %v287
        %1965 = vmatpush1.msra.mxu0 %v286
        %1966 = vmatprep.subr.mxu0 %v291
        %1967 = vmatpush1.msra.mxu0 %v290
        %1968 = vmatprep.subr.mxu0 %v295
        %1969 = vmatpush1.msra.mxu0 %v294
        %1970 = vmatprep.subr.mxu0 %v299
        %1971 = vmatpush1.msra.mxu0 %v298
        %1972 = vmatprep.subr.mxu0 %v303
        %1973 = vmatpush1.msra.mxu0 %v302
        %1974 = vmatprep.subr.mxu0 %v307
        %1975 = vmatpush1.msra.mxu0 %v306
        %1976 = vmatprep.subr.mxu0 %v311
        %1977 = vmatpush1.msra.mxu0 %v310
        %1978 = vmatprep.subr.mxu0 %v315
        %1979 = vmatpush1.msra.mxu0 %v314
        %1980 = vmatprep.subr.mxu0 %v319
        %1981 = vmatpush1.msra.mxu0 %v318
        %1982 = vmatprep.subr.mxu0 %v323
        %1983 = vmatpush1.msra.mxu0 %v322
        %1984 = vmatprep.subr.mxu0 %v327
        %1985 = vmatpush1.msra.mxu0 %v326
        %1986 = vmatprep.subr.mxu0 %v331
        %1987 = vmatpush1.msra.mxu0 %v330
        %1988 = vmatprep.subr.mxu0 %v335
        %1989 = vmatpush1.msra.mxu0 %v334
        %1990 = vmatprep.subr.mxu0 %v339
        %1991 = vmatpush1.msra.mxu0 %v338
        %1992 = vmatprep.subr.mxu0 %v343
        %1993 = vmatpush1.msra.mxu0 %v342
        %1994 = vmatprep.subr.mxu0 %v347
        %1995 = vmatpush1.msra.mxu0 %v346
        %1996 = vmatprep.subr.mxu0 %v351
        %1997 = vmatpush1.msra.mxu0 %v350
        %1998 = vmatprep.subr.mxu0 %v355
        %1999 = vmatpush1.msra.mxu0 %v354
        %2000 = vmatprep.subr.mxu0 %v359
        %2001 = vmatpush1.msra.mxu0 %v358
        %2002 = vmatprep.subr.mxu0 %v363
        %2003 = vmatpush1.msra.mxu0 %v362
        %2004 = vmatprep.subr.mxu0 %v367
        %2005 = vmatpush1.msra.mxu0 %v366
        %2006 = vmatprep.subr.mxu0 %v371
        %2007 = vmatpush1.msra.mxu0 %v370
        %2008 = vmatprep.subr.mxu0 %v375
        %2009 = vmatpush1.msra.mxu0 %v374
        %2010 = vmatprep.subr.mxu0 %v379
        %2011 = vmatpush1.msra.mxu0 %v378
        %2012 = vmatprep.subr.mxu0 %v383
        %2013 = vmatpush1.msra.mxu0 %v382
        %2014 = vmatprep.subr.mxu0 %v387
        %2015 = vmatpush1.msra.mxu0 %v386
        %2016 = vmatprep.subr.mxu0 %v391
        %2017 = vmatpush1.msra.mxu0 %v390
        %2018 = vmatprep.subr.mxu0 %v395
        %2019 = vmatpush1.msra.mxu0 %v394
        %2020 = vmatprep.subr.mxu0 %v399
        %2021 = vmatpush1.msra.mxu0 %v398
        %2022 = vmatprep.subr.mxu0 %v403
        %2023 = vmatpush1.msra.mxu0 %v402
        %2024 = vmatprep.subr.mxu0 %v407
        %2025 = vmatpush1.msra.mxu0 %v406
        %2026 = vmatprep.subr.mxu0 %v411
        %2027 = vmatpush1.msra.mxu0 %v410
        %2028 = vmatprep.mubr.f32.mxu0 %v1327
        %2029 = vmatmul.mubr.f32.gmra.mrb[0].mxu0 %v1319
        %v2030 = vpop.f32.mrb[0].mxu0
        %v2031 = vadd.f32 0.0, %v2030
        %v2032 = vpop.f32.mrb[0].mxu0
        %v2033 = vadd.f32 0.0, %v2032
        %2034 = vdwg.mxu0
        %2035 = vmatprep.subr.mxu0 %v415
        %2036 = vmatpush1.msra.mxu0 %v414
        %2037 = vmatprep.subr.mxu0 %v419
        %2038 = vmatpush1.msra.mxu0 %v418
        %2039 = vmatprep.subr.mxu0 %v423
        %2040 = vmatpush1.msra.mxu0 %v422
        %2041 = vmatprep.subr.mxu0 %v427
        %2042 = vmatpush1.msra.mxu0 %v426
        %2043 = vmatprep.subr.mxu0 %v431
        %2044 = vmatpush1.msra.mxu0 %v430
        %2045 = vmatprep.subr.mxu0 %v435
        %2046 = vmatpush1.msra.mxu0 %v434
        %2047 = vmatprep.subr.mxu0 %v439
        %2048 = vmatpush1.msra.mxu0 %v438
        %2049 = vmatprep.subr.mxu0 %v443
        %2050 = vmatpush1.msra.mxu0 %v442
        %2051 = vmatprep.subr.mxu0 %v447
        %2052 = vmatpush1.msra.mxu0 %v446
        %2053 = vmatprep.subr.mxu0 %v451
        %2054 = vmatpush1.msra.mxu0 %v450
        %2055 = vmatprep.subr.mxu0 %v455
        %2056 = vmatpush1.msra.mxu0 %v454
        %2057 = vmatprep.subr.mxu0 %v459
        %2058 = vmatpush1.msra.mxu0 %v458
        %2059 = vmatprep.subr.mxu0 %v463
        %2060 = vmatpush1.msra.mxu0 %v462
        %2061 = vmatprep.subr.mxu0 %v467
        %2062 = vmatpush1.msra.mxu0 %v466
        %2063 = vmatprep.subr.mxu0 %v471
        %2064 = vmatpush1.msra.mxu0 %v470
        %2065 = vmatprep.subr.mxu0 %v475
        %2066 = vmatpush1.msra.mxu0 %v474
        %2067 = vmatprep.subr.mxu0 %v479
        %2068 = vmatpush1.msra.mxu0 %v478
        %2069 = vmatprep.subr.mxu0 %v483
        %2070 = vmatpush1.msra.mxu0 %v482
        %2071 = vmatprep.subr.mxu0 %v487
        %2072 = vmatpush1.msra.mxu0 %v486
        %2073 = vmatprep.subr.mxu0 %v491
        %2074 = vmatpush1.msra.mxu0 %v490
        %2075 = vmatprep.subr.mxu0 %v495
        %2076 = vmatpush1.msra.mxu0 %v494
        %2077 = vmatprep.subr.mxu0 %v499
        %2078 = vmatpush1.msra.mxu0 %v498
        %2079 = vmatprep.subr.mxu0 %v503
        %2080 = vmatpush1.msra.mxu0 %v502
        %2081 = vmatprep.subr.mxu0 %v507
        %2082 = vmatpush1.msra.mxu0 %v506
        %2083 = vmatprep.subr.mxu0 %v511
        %2084 = vmatpush1.msra.mxu0 %v510
        %2085 = vmatprep.subr.mxu0 %v515
        %2086 = vmatpush1.msra.mxu0 %v514
        %2087 = vmatprep.subr.mxu0 %v519
        %2088 = vmatpush1.msra.mxu0 %v518
        %2089 = vmatprep.subr.mxu0 %v523
        %2090 = vmatpush1.msra.mxu0 %v522
        %2091 = vmatprep.subr.mxu0 %v527
        %2092 = vmatpush1.msra.mxu0 %v526
        %2093 = vmatprep.subr.mxu0 %v531
        %2094 = vmatpush1.msra.mxu0 %v530
        %2095 = vmatprep.subr.mxu0 %v535
        %2096 = vmatpush1.msra.mxu0 %v534
        %2097 = vmatprep.subr.mxu0 %v539
        %2098 = vmatpush1.msra.mxu0 %v538
        %2099 = vmatprep.mubr.f32.mxu0 %v1328
        %2100 = vmatmul.mubr.f32.gmra.mrb[0].mxu0 %v1326
        %v2101 = vpop.f32.mrb[0].mxu0
        %v2102 = vadd.f32 %v2031, %v2101
        %v2103 = vpop.f32.mrb[0].mxu0
        %v2104 = vadd.f32 %v2033, %v2103
        %2105 = vdwg.mxu0
        %2106 = vmatprep.subr.mxu0 %v543
        %2107 = vmatpush1.msra.mxu0 %v542
        %2108 = vmatprep.subr.mxu0 %v547
        %2109 = vmatpush1.msra.mxu0 %v546
        %2110 = vmatprep.subr.mxu0 %v551
        %2111 = vmatpush1.msra.mxu0 %v550
        %2112 = vmatprep.subr.mxu0 %v555
        %2113 = vmatpush1.msra.mxu0 %v554
        %2114 = vmatprep.subr.mxu0 %v559
        %2115 = vmatpush1.msra.mxu0 %v558
        %2116 = vmatprep.subr.mxu0 %v563
        %2117 = vmatpush1.msra.mxu0 %v562
        %2118 = vmatprep.subr.mxu0 %v567
        %2119 = vmatpush1.msra.mxu0 %v566
        %2120 = vmatprep.subr.mxu0 %v571
        %2121 = vmatpush1.msra.mxu0 %v570
        %2122 = vmatprep.subr.mxu0 %v575
        %2123 = vmatpush1.msra.mxu0 %v574
        %2124 = vmatprep.subr.mxu0 %v579
        %2125 = vmatpush1.msra.mxu0 %v578
        %2126 = vmatprep.subr.mxu0 %v583
        %2127 = vmatpush1.msra.mxu0 %v582
        %2128 = vmatprep.subr.mxu0 %v587
        %2129 = vmatpush1.msra.mxu0 %v586
        %2130 = vmatprep.subr.mxu0 %v591
        %2131 = vmatpush1.msra.mxu0 %v590
        %2132 = vmatprep.subr.mxu0 %v595
        %2133 = vmatpush1.msra.mxu0 %v594
        %2134 = vmatprep.subr.mxu0 %v599
        %2135 = vmatpush1.msra.mxu0 %v598
        %2136 = vmatprep.subr.mxu0 %v603
        %2137 = vmatpush1.msra.mxu0 %v602
        %2138 = vmatprep.subr.mxu0 %v607
        %2139 = vmatpush1.msra.mxu0 %v606
        %2140 = vmatprep.subr.mxu0 %v611
        %2141 = vmatpush1.msra.mxu0 %v610
        %2142 = vmatprep.subr.mxu0 %v615
        %2143 = vmatpush1.msra.mxu0 %v614
        %2144 = vmatprep.subr.mxu0 %v619
        %2145 = vmatpush1.msra.mxu0 %v618
        %2146 = vmatprep.subr.mxu0 %v623
        %2147 = vmatpush1.msra.mxu0 %v622
        %2148 = vmatprep.subr.mxu0 %v627
        %2149 = vmatpush1.msra.mxu0 %v626
        %2150 = vmatprep.subr.mxu0 %v631
        %2151 = vmatpush1.msra.mxu0 %v630
        %2152 = vmatprep.subr.mxu0 %v635
        %2153 = vmatpush1.msra.mxu0 %v634
        %2154 = vmatprep.subr.mxu0 %v639
        %2155 = vmatpush1.msra.mxu0 %v638
        %2156 = vmatprep.subr.mxu0 %v643
        %2157 = vmatpush1.msra.mxu0 %v642
        %2158 = vmatprep.subr.mxu0 %v647
        %2159 = vmatpush1.msra.mxu0 %v646
        %2160 = vmatprep.subr.mxu0 %v651
        %2161 = vmatpush1.msra.mxu0 %v650
        %2162 = vmatprep.subr.mxu0 %v655
        %2163 = vmatpush1.msra.mxu0 %v654
        %2164 = vmatprep.subr.mxu0 %v659
        %2165 = vmatpush1.msra.mxu0 %v658
        %2166 = vmatprep.subr.mxu0 %v663
        %2167 = vmatpush1.msra.mxu0 %v662
        %2168 = vmatprep.subr.mxu0 %v667
        %2169 = vmatpush1.msra.mxu0 %v666
        %2170 = vmatprep.mubr.f32.mxu0 %v1344
        %2171 = vmatmul.mubr.f32.gmra.mrb[0].mxu0 %v1336
        %v2172 = vpop.f32.mrb[0].mxu0
        %v2173 = vadd.f32 %v2102, %v2172
        %v2174 = vpop.f32.mrb[0].mxu0
        %v2175 = vadd.f32 %v2104, %v2174
        %2176 = vdwg.mxu0
        %2177 = vmatprep.subr.mxu0 %v671
        %2178 = vmatpush1.msra.mxu0 %v670
        %2179 = vmatprep.subr.mxu0 %v675
        %2180 = vmatpush1.msra.mxu0 %v674
        %2181 = vmatprep.subr.mxu0 %v679
        %2182 = vmatpush1.msra.mxu0 %v678
        %2183 = vmatprep.subr.mxu0 %v683
        %2184 = vmatpush1.msra.mxu0 %v682
        %2185 = vmatprep.subr.mxu0 %v687
        %2186 = vmatpush1.msra.mxu0 %v686
        %2187 = vmatprep.subr.mxu0 %v691
        %2188 = vmatpush1.msra.mxu0 %v690
        %2189 = vmatprep.subr.mxu0 %v695
        %2190 = vmatpush1.msra.mxu0 %v694
        %2191 = vmatprep.subr.mxu0 %v699
        %2192 = vmatpush1.msra.mxu0 %v698
        %2193 = vmatprep.subr.mxu0 %v703
        %2194 = vmatpush1.msra.mxu0 %v702
        %2195 = vmatprep.subr.mxu0 %v707
        %2196 = vmatpush1.msra.mxu0 %v706
        %2197 = vmatprep.subr.mxu0 %v711
        %2198 = vmatpush1.msra.mxu0 %v710
        %2199 = vmatprep.subr.mxu0 %v715
        %2200 = vmatpush1.msra.mxu0 %v714
        %2201 = vmatprep.subr.mxu0 %v719
        %2202 = vmatpush1.msra.mxu0 %v718
        %2203 = vmatprep.subr.mxu0 %v723
        %2204 = vmatpush1.msra.mxu0 %v722
        %2205 = vmatprep.subr.mxu0 %v727
        %2206 = vmatpush1.msra.mxu0 %v726
        %2207 = vmatprep.subr.mxu0 %v731
        %2208 = vmatpush1.msra.mxu0 %v730
        %2209 = vmatprep.subr.mxu0 %v735
        %2210 = vmatpush1.msra.mxu0 %v734
        %2211 = vmatprep.subr.mxu0 %v739
        %2212 = vmatpush1.msra.mxu0 %v738
        %2213 = vmatprep.subr.mxu0 %v743
        %2214 = vmatpush1.msra.mxu0 %v742
        %2215 = vmatprep.subr.mxu0 %v747
        %2216 = vmatpush1.msra.mxu0 %v746
        %2217 = vmatprep.subr.mxu0 %v751
        %2218 = vmatpush1.msra.mxu0 %v750
        %2219 = vmatprep.subr.mxu0 %v755
        %2220 = vmatpush1.msra.mxu0 %v754
        %2221 = vmatprep.subr.mxu0 %v759
        %2222 = vmatpush1.msra.mxu0 %v758
        %2223 = vmatprep.subr.mxu0 %v763
        %2224 = vmatpush1.msra.mxu0 %v762
        %2225 = vmatprep.subr.mxu0 %v767
        %2226 = vmatpush1.msra.mxu0 %v766
        %2227 = vmatprep.subr.mxu0 %v771
        %2228 = vmatpush1.msra.mxu0 %v770
        %2229 = vmatprep.subr.mxu0 %v775
        %2230 = vmatpush1.msra.mxu0 %v774
        %2231 = vmatprep.subr.mxu0 %v779
        %2232 = vmatpush1.msra.mxu0 %v778
        %2233 = vmatprep.subr.mxu0 %v783
        %2234 = vmatpush1.msra.mxu0 %v782
        %2235 = vmatprep.subr.mxu0 %v787
        %2236 = vmatpush1.msra.mxu0 %v786
        %2237 = vmatprep.subr.mxu0 %v791
        %2238 = vmatpush1.msra.mxu0 %v790
        %2239 = vmatprep.subr.mxu0 %v795
        %2240 = vmatpush1.msra.mxu0 %v794
        %2241 = vmatprep.mubr.f32.mxu0 %v1345
        %2242 = vmatmul.mubr.f32.gmra.mrb[0].mxu0 %v1343
        %v2243 = vpop.f32.mrb[0].mxu0
        %v2244 = vadd.f32 %v2173, %v2243
        %v2245 = vpop.f32.mrb[0].mxu0
        %v2246 = vadd.f32 %v2175, %v2245
        %2247 = vdwg.mxu0
        %2248 = vmatprep.subr.mxu0 %v799
        %2249 = vmatpush1.msra.mxu0 %v798
        %2250 = vmatprep.subr.mxu0 %v803
        %2251 = vmatpush1.msra.mxu0 %v802
        %2252 = vmatprep.subr.mxu0 %v807
        %2253 = vmatpush1.msra.mxu0 %v806
        %2254 = vmatprep.subr.mxu0 %v811
        %2255 = vmatpush1.msra.mxu0 %v810
        %2256 = vmatprep.subr.mxu0 %v815
        %2257 = vmatpush1.msra.mxu0 %v814
        %2258 = vmatprep.subr.mxu0 %v819
        %2259 = vmatpush1.msra.mxu0 %v818
        %2260 = vmatprep.subr.mxu0 %v823
        %2261 = vmatpush1.msra.mxu0 %v822
        %2262 = vmatprep.subr.mxu0 %v827
        %2263 = vmatpush1.msra.mxu0 %v826
        %2264 = vmatprep.subr.mxu0 %v831
        %2265 = vmatpush1.msra.mxu0 %v830
        %2266 = vmatprep.subr.mxu0 %v835
        %2267 = vmatpush1.msra.mxu0 %v834
        %2268 = vmatprep.subr.mxu0 %v839
        %2269 = vmatpush1.msra.mxu0 %v838
        %2270 = vmatprep.subr.mxu0 %v843
        %2271 = vmatpush1.msra.mxu0 %v842
        %2272 = vmatprep.subr.mxu0 %v847
        %2273 = vmatpush1.msra.mxu0 %v846
        %2274 = vmatprep.subr.mxu0 %v851
        %2275 = vmatpush1.msra.mxu0 %v850
        %2276 = vmatprep.subr.mxu0 %v855
        %2277 = vmatpush1.msra.mxu0 %v854
        %2278 = vmatprep.subr.mxu0 %v859
        %2279 = vmatpush1.msra.mxu0 %v858
        %2280 = vmatprep.subr.mxu0 %v863
        %2281 = vmatpush1.msra.mxu0 %v862
        %2282 = vmatprep.subr.mxu0 %v867
        %2283 = vmatpush1.msra.mxu0 %v866
        %2284 = vmatprep.subr.mxu0 %v871
        %2285 = vmatpush1.msra.mxu0 %v870
        %2286 = vmatprep.subr.mxu0 %v875
        %2287 = vmatpush1.msra.mxu0 %v874
        %2288 = vmatprep.subr.mxu0 %v879
        %2289 = vmatpush1.msra.mxu0 %v878
        %2290 = vmatprep.subr.mxu0 %v883
        %2291 = vmatpush1.msra.mxu0 %v882
        %2292 = vmatprep.subr.mxu0 %v887
        %2293 = vmatpush1.msra.mxu0 %v886
        %2294 = vmatprep.subr.mxu0 %v891
        %2295 = vmatpush1.msra.mxu0 %v890
        %2296 = vmatprep.subr.mxu0 %v895
        %2297 = vmatpush1.msra.mxu0 %v894
        %2298 = vmatprep.subr.mxu0 %v899
        %2299 = vmatpush1.msra.mxu0 %v898
        %2300 = vmatprep.subr.mxu0 %v903
        %2301 = vmatpush1.msra.mxu0 %v902
        %2302 = vmatprep.subr.mxu0 %v907
        %2303 = vmatpush1.msra.mxu0 %v906
        %2304 = vmatprep.subr.mxu0 %v911
        %2305 = vmatpush1.msra.mxu0 %v910
        %2306 = vmatprep.subr.mxu0 %v915
        %2307 = vmatpush1.msra.mxu0 %v914
        %2308 = vmatprep.subr.mxu0 %v919
        %2309 = vmatpush1.msra.mxu0 %v918
        %2310 = vmatprep.subr.mxu0 %v923
        %2311 = vmatpush1.msra.mxu0 %v922
        %2312 = vmatprep.mubr.f32.mxu0 %v1361
        %2313 = vmatmul.mubr.f32.gmra.mrb[0].mxu0 %v1353
        %v2314 = vpop.f32.mrb[0].mxu0
        %v2315 = vadd.f32 %v2244, %v2314
        %v2316 = vpop.f32.mrb[0].mxu0
        %v2317 = vadd.f32 %v2246, %v2316
        %2318 = vdwg.mxu0
        %2319 = vmatprep.subr.mxu0 %v927
        %2320 = vmatpush1.msra.mxu0 %v926
        %2321 = vmatprep.subr.mxu0 %v931
        %2322 = vmatpush1.msra.mxu0 %v930
        %2323 = vmatprep.subr.mxu0 %v935
        %2324 = vmatpush1.msra.mxu0 %v934
        %2325 = vmatprep.subr.mxu0 %v939
        %2326 = vmatpush1.msra.mxu0 %v938
        %2327 = vmatprep.subr.mxu0 %v943
        %2328 = vmatpush1.msra.mxu0 %v942
        %2329 = vmatprep.subr.mxu0 %v947
        %2330 = vmatpush1.msra.mxu0 %v946
        %2331 = vmatprep.subr.mxu0 %v951
        %2332 = vmatpush1.msra.mxu0 %v950
        %2333 = vmatprep.subr.mxu0 %v955
        %2334 = vmatpush1.msra.mxu0 %v954
        %2335 = vmatprep.subr.mxu0 %v959
        %2336 = vmatpush1.msra.mxu0 %v958
        %2337 = vmatprep.subr.mxu0 %v963
        %2338 = vmatpush1.msra.mxu0 %v962
        %2339 = vmatprep.subr.mxu0 %v967
        %2340 = vmatpush1.msra.mxu0 %v966
        %2341 = vmatprep.subr.mxu0 %v971
        %2342 = vmatpush1.msra.mxu0 %v970
        %2343 = vmatprep.subr.mxu0 %v975
        %2344 = vmatpush1.msra.mxu0 %v974
        %2345 = vmatprep.subr.mxu0 %v979
        %2346 = vmatpush1.msra.mxu0 %v978
        %2347 = vmatprep.subr.mxu0 %v983
        %2348 = vmatpush1.msra.mxu0 %v982
        %2349 = vmatprep.subr.mxu0 %v987
        %2350 = vmatpush1.msra.mxu0 %v986
        %2351 = vmatprep.subr.mxu0 %v991
        %2352 = vmatpush1.msra.mxu0 %v990
        %2353 = vmatprep.subr.mxu0 %v995
        %2354 = vmatpush1.msra.mxu0 %v994
        %2355 = vmatprep.subr.mxu0 %v999
        %2356 = vmatpush1.msra.mxu0 %v998
        %2357 = vmatprep.subr.mxu0 %v1003
        %2358 = vmatpush1.msra.mxu0 %v1002
        %2359 = vmatprep.subr.mxu0 %v1007
        %2360 = vmatpush1.msra.mxu0 %v1006
        %2361 = vmatprep.subr.mxu0 %v1011
        %2362 = vmatpush1.msra.mxu0 %v1010
        %2363 = vmatprep.subr.mxu0 %v1015
        %2364 = vmatpush1.msra.mxu0 %v1014
        %2365 = vmatprep.subr.mxu0 %v1019
        %2366 = vmatpush1.msra.mxu0 %v1018
        %2367 = vmatprep.subr.mxu0 %v1023
        %2368 = vmatpush1.msra.mxu0 %v1022
        %2369 = vmatprep.subr.mxu0 %v1027
        %2370 = vmatpush1.msra.mxu0 %v1026
        %2371 = vmatprep.subr.mxu0 %v1031
        %2372 = vmatpush1.msra.mxu0 %v1030
        %2373 = vmatprep.subr.mxu0 %v1035
        %2374 = vmatpush1.msra.mxu0 %v1034
        %2375 = vmatprep.subr.mxu0 %v1039
        %2376 = vmatpush1.msra.mxu0 %v1038
        %2377 = vmatprep.subr.mxu0 %v1043
        %2378 = vmatpush1.msra.mxu0 %v1042
        %2379 = vmatprep.subr.mxu0 %v1047
        %2380 = vmatpush1.msra.mxu0 %v1046
        %2381 = vmatprep.subr.mxu0 %v1051
        %2382 = vmatpush1.msra.mxu0 %v1050
        %2383 = vmatprep.mubr.f32.mxu0 %v1362
        %2384 = vmatmul.mubr.f32.gmra.mrb[0].mxu0 %v1360
        %v2385 = vpop.f32.mrb[0].mxu0
        %v2386 = vadd.f32 %v2315, %v2385
        %v2387 = vpop.f32.mrb[0].mxu0
        %v2388 = vadd.f32 %v2317, %v2387
        %2389 = vdwg.mxu0
        %2390 = vmatprep.subr.mxu0 %v1055
        %2391 = vmatpush1.msra.mxu0 %v1054
        %2392 = vmatprep.subr.mxu0 %v1059
        %2393 = vmatpush1.msra.mxu0 %v1058
        %2394 = vmatprep.subr.mxu0 %v1063
        %2395 = vmatpush1.msra.mxu0 %v1062
        %2396 = vmatprep.subr.mxu0 %v1067
        %2397 = vmatpush1.msra.mxu0 %v1066
        %2398 = vmatprep.subr.mxu0 %v1071
        %2399 = vmatpush1.msra.mxu0 %v1070
        %2400 = vmatprep.subr.mxu0 %v1075
        %2401 = vmatpush1.msra.mxu0 %v1074
        %2402 = vmatprep.subr.mxu0 %v1079
        %2403 = vmatpush1.msra.mxu0 %v1078
        %2404 = vmatprep.subr.mxu0 %v1083
        %2405 = vmatpush1.msra.mxu0 %v1082
        %2406 = vmatprep.subr.mxu0 %v1087
        %2407 = vmatpush1.msra.mxu0 %v1086
        %2408 = vmatprep.subr.mxu0 %v1091
        %2409 = vmatpush1.msra.mxu0 %v1090
        %2410 = vmatprep.subr.mxu0 %v1095
        %2411 = vmatpush1.msra.mxu0 %v1094
        %2412 = vmatprep.subr.mxu0 %v1099
        %2413 = vmatpush1.msra.mxu0 %v1098
        %2414 = vmatprep.subr.mxu0 %v1103
        %2415 = vmatpush1.msra.mxu0 %v1102
        %2416 = vmatprep.subr.mxu0 %v1107
        %2417 = vmatpush1.msra.mxu0 %v1106
        %2418 = vmatprep.subr.mxu0 %v1111
        %2419 = vmatpush1.msra.mxu0 %v1110
        %2420 = vmatprep.subr.mxu0 %v1115
        %2421 = vmatpush1.msra.mxu0 %v1114
        %2422 = vmatprep.subr.mxu0 %v1119
        %2423 = vmatpush1.msra.mxu0 %v1118
        %2424 = vmatprep.subr.mxu0 %v1123
        %2425 = vmatpush1.msra.mxu0 %v1122
        %2426 = vmatprep.subr.mxu0 %v1127
        %2427 = vmatpush1.msra.mxu0 %v1126
        %2428 = vmatprep.subr.mxu0 %v1131
        %2429 = vmatpush1.msra.mxu0 %v1130
        %2430 = vmatprep.subr.mxu0 %v1135
        %2431 = vmatpush1.msra.mxu0 %v1134
        %2432 = vmatprep.subr.mxu0 %v1139
        %2433 = vmatpush1.msra.mxu0 %v1138
        %2434 = vmatprep.subr.mxu0 %v1143
        %2435 = vmatpush1.msra.mxu0 %v1142
        %2436 = vmatprep.subr.mxu0 %v1147
        %2437 = vmatpush1.msra.mxu0 %v1146
        %2438 = vmatprep.subr.mxu0 %v1151
        %2439 = vmatpush1.msra.mxu0 %v1150
        %2440 = vmatprep.subr.mxu0 %v1155
        %2441 = vmatpush1.msra.mxu0 %v1154
        %2442 = vmatprep.subr.mxu0 %v1159
        %2443 = vmatpush1.msra.mxu0 %v1158
        %2444 = vmatprep.subr.mxu0 %v1163
        %2445 = vmatpush1.msra.mxu0 %v1162
        %2446 = vmatprep.subr.mxu0 %v1167
        %2447 = vmatpush1.msra.mxu0 %v1166
        %2448 = vmatprep.subr.mxu0 %v1171
        %2449 = vmatpush1.msra.mxu0 %v1170
        %2450 = vmatprep.subr.mxu0 %v1175
        %2451 = vmatpush1.msra.mxu0 %v1174
        %2452 = vmatprep.subr.mxu0 %v1179
        %2453 = vmatpush1.msra.mxu0 %v1178
        %2454 = vmatprep.mubr.f32.mxu0 %v1378
        %2455 = vmatmul.mubr.f32.gmra.mrb[0].mxu0 %v1370
        %v2456 = vpop.f32.mrb[0].mxu0
        %v2457 = vadd.f32 %v2386, %v2456
        %v2458 = vpop.f32.mrb[0].mxu0
        %v2459 = vadd.f32 %v2388, %v2458
        %2460 = vdwg.mxu0
        %2461 = vmatprep.subr.mxu0 %v1183
        %2462 = vmatpush1.msra.mxu0 %v1182
        %2463 = vmatprep.subr.mxu0 %v1187
        %2464 = vmatpush1.msra.mxu0 %v1186
        %2465 = vmatprep.subr.mxu0 %v1191
        %2466 = vmatpush1.msra.mxu0 %v1190
        %2467 = vmatprep.subr.mxu0 %v1195
        %2468 = vmatpush1.msra.mxu0 %v1194
        %2469 = vmatprep.subr.mxu0 %v1199
        %2470 = vmatpush1.msra.mxu0 %v1198
        %2471 = vmatprep.subr.mxu0 %v1203
        %2472 = vmatpush1.msra.mxu0 %v1202
        %2473 = vmatprep.subr.mxu0 %v1207
        %2474 = vmatpush1.msra.mxu0 %v1206
        %2475 = vmatprep.subr.mxu0 %v1211
        %2476 = vmatpush1.msra.mxu0 %v1210
        %2477 = vmatprep.subr.mxu0 %v1215
        %2478 = vmatpush1.msra.mxu0 %v1214
        %2479 = vmatprep.subr.mxu0 %v1219
        %2480 = vmatpush1.msra.mxu0 %v1218
        %2481 = vmatprep.subr.mxu0 %v1223
        %2482 = vmatpush1.msra.mxu0 %v1222
        %2483 = vmatprep.subr.mxu0 %v1227
        %2484 = vmatpush1.msra.mxu0 %v1226
        %2485 = vmatprep.subr.mxu0 %v1231
        %2486 = vmatpush1.msra.mxu0 %v1230
        %2487 = vmatprep.subr.mxu0 %v1235
        %2488 = vmatpush1.msra.mxu0 %v1234
        %2489 = vmatprep.subr.mxu0 %v1239
        %2490 = vmatpush1.msra.mxu0 %v1238
        %2491 = vmatprep.subr.mxu0 %v1243
        %2492 = vmatpush1.msra.mxu0 %v1242
        %2493 = vmatprep.subr.mxu0 %v1247
        %2494 = vmatpush1.msra.mxu0 %v1246
        %2495 = vmatprep.subr.mxu0 %v1251
        %2496 = vmatpush1.msra.mxu0 %v1250
        %2497 = vmatprep.subr.mxu0 %v1255
        %2498 = vmatpush1.msra.mxu0 %v1254
        %2499 = vmatprep.subr.mxu0 %v1259
        %2500 = vmatpush1.msra.mxu0 %v1258
        %2501 = vmatprep.subr.mxu0 %v1263
        %2502 = vmatpush1.msra.mxu0 %v1262
        %2503 = vmatprep.subr.mxu0 %v1267
        %2504 = vmatpush1.msra.mxu0 %v1266
        %2505 = vmatprep.subr.mxu0 %v1271
        %2506 = vmatpush1.msra.mxu0 %v1270
        %2507 = vmatprep.subr.mxu0 %v1275
        %2508 = vmatpush1.msra.mxu0 %v1274
        %2509 = vmatprep.subr.mxu0 %v1279
        %2510 = vmatpush1.msra.mxu0 %v1278
        %2511 = vmatprep.subr.mxu0 %v1283
        %2512 = vmatpush1.msra.mxu0 %v1282
        %2513 = vmatprep.subr.mxu0 %v1287
        %2514 = vmatpush1.msra.mxu0 %v1286
        %2515 = vmatprep.subr.mxu0 %v1291
        %2516 = vmatpush1.msra.mxu0 %v1290
        %2517 = vmatprep.subr.mxu0 %v1295
        %2518 = vmatpush1.msra.mxu0 %v1294
        %2519 = vmatprep.subr.mxu0 %v1299
        %2520 = vmatpush1.msra.mxu0 %v1298
        %2521 = vmatprep.subr.mxu0 %v1303
        %2522 = vmatpush1.msra.mxu0 %v1302
        %2523 = vmatprep.subr.mxu0 %v1307
        %2524 = vmatpush1.msra.mxu0 %v1306
        %2525 = vmatprep.mubr.f32.mxu0 %v1379
        %2526 = vmatmul.mubr.f32.gmra.mrb[0].mxu0 %v1377
        %v2527 = vpop.f32.mrb[0].mxu0
        %v2528 = vadd.f32 %v2457, %v2527
        %v2529 = vpop.f32.mrb[0].mxu0
        %v2530 = vadd.f32 %v2459, %v2529
        %2531 = vdwg.mxu0
        %v2536 = vcombine.low %v1960, %v1962
        %v2537 = vcombine.low %v2528, %v2530
        %v2539 = vunpack.c.l.s4 1983009808
        %v2540 = vunpack.c.0.s8 %v2539
        %v2541 = vlaneseq
        %v2542 = vshrl.u32 %v2541, 7
        %v2543 = vsub.s32 %v2540, %v2542
        %v2544 = vrot.slane %v2536, %v2543
        %v2546 = vunpack.c.l.s4 1983009808
        %v2547 = vunpack.c.0.s8 %v2546
        %v2548 = vlaneseq
        %v2549 = vshrl.u32 %v2548, 7
        %v2550 = vsub.s32 %v2547, %v2549
        %v2551 = vrot.slane %v2537, %v2550
        %v2552 = vcombine.low %v2544, %v2551
        %v2554 = vadd.f32 %v279, %v2552
        %2555 = vst [vmem:[#allocation2] sm:$0xff] %v2554
        %p2556 = scmp.eq.s32.totalorder %s17, 1
        // Predicated region
        $region45: #{cnn_forward.5} parent=39 // pred_check
          %p2557 = pneg %p2556
        $region46: #{cnn_forward.5} parent=39 // pred_check_branch
          %2559 = sbr.rel (%p2557) target = $region48
        $region47: #{cnn_forward.5} parent=39 // pred_region
          %v2560 = vld [vmem:[#allocation2] sm:$0xff]
          %v2561 = vmax.f32 %v2560, 0.0
          %v2562 = vld [vmem:[%s3] sm:$0xff]
          %v2563 = vld [vmem:[%s3 + $0x8] sm:$0xff]
          %v2564 = vld [vmem:[%s3 + $0x10] sm:$0xff]
          %v2565 = vld [vmem:[%s3 + $0x18] sm:$0xff]
          %v2566 = vld [vmem:[%s3 + $0x20] sm:$0xff]
          %v2567 = vld [vmem:[%s3 + $0x28] sm:$0xff]
          %v2568 = vld [vmem:[%s3 + $0x30] sm:$0xff]
          %v2569 = vld [vmem:[%s3 + $0x38] sm:$0xff]
          %v2570 = vld [vmem:[%s3 + $0x40] sm:$0xff]
          %v2571 = vld [vmem:[%s3 + $0x48] sm:$0xff]
          %v2572 = vld [vmem:[%s3 + $0x50] sm:$0xff]
          %v2573 = vld [vmem:[%s3 + $0x58] sm:$0xff]
          %v2574 = vld [vmem:[%s3 + $0x60] sm:$0xff]
          %v2575 = vld [vmem:[%s3 + $0x68] sm:$0xff]
          %v2576 = vld [vmem:[%s3 + $0x70] sm:$0xff]
          %v2577 = vld [vmem:[%s3 + $0x78] sm:$0xff]
          %v2578 = vld [vmem:[%s3 + $0x80] sm:$0xff]
          %v2579 = vld [vmem:[%s3 + $0x88] sm:$0xff]
          %v2580 = vld [vmem:[%s3 + $0x90] sm:$0xff]
          %v2581 = vld [vmem:[%s3 + $0x98] sm:$0xff]
          %v2582 = vld [vmem:[%s3 + $0xa0] sm:$0xff]
          %v2583 = vld [vmem:[%s3 + $0xa8] sm:$0xff]
          %v2584 = vld [vmem:[%s3 + $0xb0] sm:$0xff]
          %v2585 = vld [vmem:[%s3 + $0xb8] sm:$0xff]
          %v2586 = vld [vmem:[%s3 + $0xc0] sm:$0xff]
          %v2587 = vld [vmem:[%s3 + $0xc8] sm:$0xff]
          %v2588 = vld [vmem:[%s3 + $0xd0] sm:$0xff]
          %v2589 = vld [vmem:[%s3 + $0xd8] sm:$0xff]
          %v2590 = vld [vmem:[%s3 + $0xe0] sm:$0xff]
          %v2591 = vld [vmem:[%s3 + $0xe8] sm:$0xff]
          %v2592 = vld [vmem:[%s3 + $0xf0] sm:$0xff]
          %v2593 = vld [vmem:[%s3 + $0xf8] sm:$0xff]
          %v2594 = vld [vmem:[%s3 + $0x100] sm:$0xff]
          %v2595 = vld [vmem:[%s3 + $0x108] sm:$0xff]
          %v2596 = vld [vmem:[%s3 + $0x110] sm:$0xff]
          %v2597 = vld [vmem:[%s3 + $0x118] sm:$0xff]
          %v2598 = vld [vmem:[%s3 + $0x120] sm:$0xff]
          %v2599 = vld [vmem:[%s3 + $0x128] sm:$0xff]
          %v2600 = vld [vmem:[%s3 + $0x130] sm:$0xff]
          %v2601 = vld [vmem:[%s3 + $0x138] sm:$0xff]
          %v2602 = vld [vmem:[%s3 + $0x140] sm:$0xff]
          %v2603 = vld [vmem:[%s3 + $0x148] sm:$0xff]
          %v2604 = vld [vmem:[%s3 + $0x150] sm:$0xff]
          %v2605 = vld [vmem:[%s3 + $0x158] sm:$0xff]
          %v2606 = vld [vmem:[%s3 + $0x160] sm:$0xff]
          %v2607 = vld [vmem:[%s3 + $0x168] sm:$0xff]
          %v2608 = vld [vmem:[%s3 + $0x170] sm:$0xff]
          %v2609 = vld [vmem:[%s3 + $0x178] sm:$0xff]
          %v2610 = vld [vmem:[%s3 + $0x180] sm:$0xff]
          %v2611 = vld [vmem:[%s3 + $0x188] sm:$0xff]
          %v2612 = vld [vmem:[%s3 + $0x190] sm:$0xff]
          %v2613 = vld [vmem:[%s3 + $0x198] sm:$0xff]
          %v2614 = vld [vmem:[%s3 + $0x1a0] sm:$0xff]
          %v2615 = vld [vmem:[%s3 + $0x1a8] sm:$0xff]
          %v2616 = vld [vmem:[%s3 + $0x1b0] sm:$0xff]
          %v2617 = vld [vmem:[%s3 + $0x1b8] sm:$0xff]
          %v2618 = vld [vmem:[%s3 + $0x1c0] sm:$0xff]
          %v2619 = vld [vmem:[%s3 + $0x1c8] sm:$0xff]
          %v2620 = vld [vmem:[%s3 + $0x1d0] sm:$0xff]
          %v2621 = vld [vmem:[%s3 + $0x1d8] sm:$0xff]
          %v2622 = vld [vmem:[%s3 + $0x1e0] sm:$0xff]
          %v2623 = vld [vmem:[%s3 + $0x1e8] sm:$0xff]
          %v2624 = vld [vmem:[%s3 + $0x1f0] sm:$0xff]
          %v2625 = vld [vmem:[%s3 + $0x1f8] sm:$0xff]
          %v2626 = vld [vmem:[%s4] sm:$0x1]
          %v2628 = vlaneseq
          %v2629 = vshrl.u32 %v2628, 7
          %v2630 = vsub.s32 0, %v2629
          %v2631 = vrot.slane %v2626, %v2630
          %v2634 = vcombine.high %v2561, %v2561
          %v2636 = vunpack.c.l.s4 1983009808
          %v2637 = vunpack.c.0.s8 %v2636
          %v2638 = vlaneseq
          %v2639 = vshrl.u32 %v2638, 7
          %v2640 = vsub.s32 %v2637, %v2639
          %v2641 = vrot.slane %v2561, %v2640
          %v2643 = vunpack.c.l.s4 1983009808
          %v2644 = vunpack.c.0.s8 %v2643
          %v2645 = vlaneseq
          %v2646 = vshrl.u32 %v2645, 7
          %v2647 = vsub.s32 %v2644, %v2646
          %v2648 = vrot.slane %v2634, %v2647
          %v2649 = vcombine.high %v2641, %v2641
          %v2650 = vcombine.high %v2648, %v2648
          %2655 = vmatprep.subr.mxu0 0.0
          %2656 = vmatpush1.msra.mxu0 %v2562
          %2657 = vmatprep.subr.mxu0 0.0
          %2658 = vmatpush1.msra.mxu0 %v2563
          %2659 = vmatprep.subr.mxu0 0.0
          %2660 = vmatpush1.msra.mxu0 %v2564
          %2661 = vmatprep.subr.mxu0 0.0
          %2662 = vmatpush1.msra.mxu0 %v2565
          %2663 = vmatprep.subr.mxu0 0.0
          %2664 = vmatpush1.msra.mxu0 %v2566
          %2665 = vmatprep.subr.mxu0 0.0
          %2666 = vmatpush1.msra.mxu0 %v2567
          %2667 = vmatprep.subr.mxu0 0.0
          %2668 = vmatpush1.msra.mxu0 %v2568
          %2669 = vmatprep.subr.mxu0 0.0
          %2670 = vmatpush1.msra.mxu0 %v2569
          %2671 = vmatprep.subr.mxu0 0.0
          %2672 = vmatpush1.msra.mxu0 %v2570
          %2673 = vmatprep.subr.mxu0 0.0
          %2674 = vmatpush1.msra.mxu0 %v2571
          %2675 = vmatprep.subr.mxu0 0.0
          %2676 = vmatpush1.msra.mxu0 %v2572
          %2677 = vmatprep.subr.mxu0 0.0
          %2678 = vmatpush1.msra.mxu0 %v2573
          %2679 = vmatprep.subr.mxu0 0.0
          %2680 = vmatpush1.msra.mxu0 %v2574
          %2681 = vmatprep.subr.mxu0 0.0
          %2682 = vmatpush1.msra.mxu0 %v2575
          %2683 = vmatprep.subr.mxu0 0.0
          %2684 = vmatpush1.msra.mxu0 %v2576
          %2685 = vmatprep.subr.mxu0 0.0
          %2686 = vmatpush1.msra.mxu0 %v2577
          %2687 = vmatprep.subr.mxu0 0.0
          %2688 = vmatpush1.msra.mxu0 %v2578
          %2689 = vmatprep.subr.mxu0 0.0
          %2690 = vmatpush1.msra.mxu0 %v2579
          %2691 = vmatprep.subr.mxu0 0.0
          %2692 = vmatpush1.msra.mxu0 %v2580
          %2693 = vmatprep.subr.mxu0 0.0
          %2694 = vmatpush1.msra.mxu0 %v2581
          %2695 = vmatprep.subr.mxu0 0.0
          %2696 = vmatpush1.msra.mxu0 %v2582
          %2697 = vmatprep.subr.mxu0 0.0
          %2698 = vmatpush1.msra.mxu0 %v2583
          %2699 = vmatprep.subr.mxu0 0.0
          %2700 = vmatpush1.msra.mxu0 %v2584
          %2701 = vmatprep.subr.mxu0 0.0
          %2702 = vmatpush1.msra.mxu0 %v2585
          %2703 = vmatprep.subr.mxu0 0.0
          %2704 = vmatpush1.msra.mxu0 %v2586
          %2705 = vmatprep.subr.mxu0 0.0
          %2706 = vmatpush1.msra.mxu0 %v2587
          %2707 = vmatprep.subr.mxu0 0.0
          %2708 = vmatpush1.msra.mxu0 %v2588
          %2709 = vmatprep.subr.mxu0 0.0
          %2710 = vmatpush1.msra.mxu0 %v2589
          %2711 = vmatprep.subr.mxu0 0.0
          %2712 = vmatpush1.msra.mxu0 %v2590
          %2713 = vmatprep.subr.mxu0 0.0
          %2714 = vmatpush1.msra.mxu0 %v2591
          %2715 = vmatprep.subr.mxu0 0.0
          %2716 = vmatpush1.msra.mxu0 %v2592
          %2717 = vmatprep.subr.mxu0 0.0
          %2718 = vmatpush1.msra.mxu0 %v2593
          %2719 = vmatprep.mubr.f32.mxu0 %v2649
          %2720 = vmatmul.mubr.f32.gmra.mrb[0].mxu0 %v2641
          %v2721 = vpop.f32.mrb[0].mxu0
          %v2722 = vadd.f32 %v2631, %v2721
          %v2723 = vpop.f32.mrb[0].mxu0
          %2724 = vdwg.mxu0
          %2725 = vmatprep.subr.mxu0 0.0
          %2726 = vmatpush1.msra.mxu0 %v2594
          %2727 = vmatprep.subr.mxu0 0.0
          %2728 = vmatpush1.msra.mxu0 %v2595
          %2729 = vmatprep.subr.mxu0 0.0
          %2730 = vmatpush1.msra.mxu0 %v2596
          %2731 = vmatprep.subr.mxu0 0.0
          %2732 = vmatpush1.msra.mxu0 %v2597
          %2733 = vmatprep.subr.mxu0 0.0
          %2734 = vmatpush1.msra.mxu0 %v2598
          %2735 = vmatprep.subr.mxu0 0.0
          %2736 = vmatpush1.msra.mxu0 %v2599
          %2737 = vmatprep.subr.mxu0 0.0
          %2738 = vmatpush1.msra.mxu0 %v2600
          %2739 = vmatprep.subr.mxu0 0.0
          %2740 = vmatpush1.msra.mxu0 %v2601
          %2741 = vmatprep.subr.mxu0 0.0
          %2742 = vmatpush1.msra.mxu0 %v2602
          %2743 = vmatprep.subr.mxu0 0.0
          %2744 = vmatpush1.msra.mxu0 %v2603
          %2745 = vmatprep.subr.mxu0 0.0
          %2746 = vmatpush1.msra.mxu0 %v2604
          %2747 = vmatprep.subr.mxu0 0.0
          %2748 = vmatpush1.msra.mxu0 %v2605
          %2749 = vmatprep.subr.mxu0 0.0
          %2750 = vmatpush1.msra.mxu0 %v2606
          %2751 = vmatprep.subr.mxu0 0.0
          %2752 = vmatpush1.msra.mxu0 %v2607
          %2753 = vmatprep.subr.mxu0 0.0
          %2754 = vmatpush1.msra.mxu0 %v2608
          %2755 = vmatprep.subr.mxu0 0.0
          %2756 = vmatpush1.msra.mxu0 %v2609
          %2757 = vmatprep.subr.mxu0 0.0
          %2758 = vmatpush1.msra.mxu0 %v2610
          %2759 = vmatprep.subr.mxu0 0.0
          %2760 = vmatpush1.msra.mxu0 %v2611
          %2761 = vmatprep.subr.mxu0 0.0
          %2762 = vmatpush1.msra.mxu0 %v2612
          %2763 = vmatprep.subr.mxu0 0.0
          %2764 = vmatpush1.msra.mxu0 %v2613
          %2765 = vmatprep.subr.mxu0 0.0
          %2766 = vmatpush1.msra.mxu0 %v2614
          %2767 = vmatprep.subr.mxu0 0.0
          %2768 = vmatpush1.msra.mxu0 %v2615
          %2769 = vmatprep.subr.mxu0 0.0
          %2770 = vmatpush1.msra.mxu0 %v2616
          %2771 = vmatprep.subr.mxu0 0.0
          %2772 = vmatpush1.msra.mxu0 %v2617
          %2773 = vmatprep.subr.mxu0 0.0
          %2774 = vmatpush1.msra.mxu0 %v2618
          %2775 = vmatprep.subr.mxu0 0.0
          %2776 = vmatpush1.msra.mxu0 %v2619
          %2777 = vmatprep.subr.mxu0 0.0
          %2778 = vmatpush1.msra.mxu0 %v2620
          %2779 = vmatprep.subr.mxu0 0.0
          %2780 = vmatpush1.msra.mxu0 %v2621
          %2781 = vmatprep.subr.mxu0 0.0
          %2782 = vmatpush1.msra.mxu0 %v2622
          %2783 = vmatprep.subr.mxu0 0.0
          %2784 = vmatpush1.msra.mxu0 %v2623
          %2785 = vmatprep.subr.mxu0 0.0
          %2786 = vmatpush1.msra.mxu0 %v2624
          %2787 = vmatprep.subr.mxu0 0.0
          %2788 = vmatpush1.msra.mxu0 %v2625
          %2789 = vmatprep.mubr.f32.mxu0 %v2650
          %2790 = vmatmul.mubr.f32.gmra.mrb[0].mxu0 %v2648
          %v2791 = vpop.f32.mrb[0].mxu0
          %v2792 = vadd.f32 %v2722, %v2791
          %v2793 = vpop.f32.mrb[0].mxu0
          %2794 = vdwg.mxu0
          %vm2795 = vcmask 74752
          %2796 = vst.msk [vmem:[#allocation3] sm:$0x3] %vm2795, %v2792
        $region48: #{cnn_forward.5} parent=39 // pred_fallthru
          _
        // Predicated region
        $region49: #{cnn_forward.5} parent=39 // pred_check
          %p2797 = pneg %p145
        $region50: #{cnn_forward.5} parent=39 // pred_check_branch
          %2799 = sbr.rel (%p2797) target = $region52
        $region51: #{cnn_forward.5} parent=39 // pred_region
          %s2801 = ssub.s32 32, 32
          %2802 = vsyncadd [#allocation4], %s2801
          %s2804 = sshll.u32 [#allocation3], 4
          %s2805 = int_to_ptr.vmem [resolvable:$true] %s2804
          %2807 = dma.vmem_to_hbm [thread:$0]  %s2805, 32, %s5, [#allocation4]
        $region52: #{cnn_forward.5} parent=39 // pred_fallthru
          _
        // Predicated region
        $region53: #{cnn_forward.5} parent=39 // pred_check
          %p2808 = pneg %p145
        $region54: #{cnn_forward.5} parent=39 // pred_check_branch
          %2810 = sbr.rel (%p2808) target = $region56
        $region55: #{cnn_forward.5} parent=39 // pred_region
          %2811 = dma.done [#allocation4], 32
        $region56: #{cnn_forward.5} parent=39 // pred_fallthru
          _
      $region40: #{cnn_forward.5} parent=5 // pred_fallthru
        _
      %p2812 = scmp.le.s32.totalorder 2, %s12
      // Predicated region
      $region57: #{cnn_forward.5} parent=5 // pred_check
        %p2813 = pneg %p2812
      $region58: #{cnn_forward.5} parent=5 // pred_check_branch
        %2815 = sbr.rel (%p2813) target = $region60
      $region59: #{cnn_forward.5} parent=5 // pred_region
        %s2816 = ssub.s32 %s12, 2
      $region60: #{cnn_forward.5} parent=5 // pred_fallthru
        _
    $region6: #{cnn_forward.5} parent=1 // loop_footer
      %s16 = sadd.s32 1, %s12
    $region7: #{cnn_forward.5} parent=1 // loop_footer_branch
      %11 = sbr.rel target = $region3
    $region8: #{cnn_forward.5} parent=1 // loop_exit
      _
    %2817 = vsyncpa [#allocation4], 1
    %s2818 = scalar_lea.sflag [#allocation4], 1
    %2819 = vsyncpa %s2818, 1

</llo_original>
